<compile_context>
chip_gen: v6e
topology: v6e:2x2x1
jax: 0.10.0
libtpu: 0.0.40
codegen_flags: <defaults>
</compile_context>

<pallas_src>
import functools

import jax
import jax.numpy as jnp
from jax.experimental import pallas as pl
from jax.experimental.pallas import tpu as pltpu

BN_EPS = 1e-5


def _round_up(x, m):
    return (x + m - 1) // m * m


# ----------------------------------------------------------------------------
# Pallas kernel: fused (im2col-matmul) + per-channel shift + ReLU + residual
# ----------------------------------------------------------------------------
def _conv_mm_kernel(*refs, relu, add_residual, post_relu):
    if add_residual:
        p_ref, w_ref, shift_ref, res_ref, o_ref = refs
    else:
        p_ref, w_ref, shift_ref, o_ref = refs
        res_ref = None
    # bf16 x bf16 -> f32 accumulate on the MXU.
    acc = jnp.dot(p_ref[...], w_ref[...], preferred_element_type=jnp.float32)
    y = acc + shift_ref[...]                       # f32 epilogue (v5e-safe)
    if relu:
        y = jnp.maximum(y, 0.0)
    if add_residual:
        y = y + res_ref[...]
        if post_relu:
            y = jnp.maximum(y, 0.0)
    o_ref[...] = y


def conv_mm(patches, w_mat, shift, residual=None, relu=False, post_relu=False):
    """patches: (M, K) f32, w_mat: (K, Cout) f32 (BN scale pre-folded),
    shift: (Cout,) f32, residual: optional (M, Cout) f32."""
    M, K = patches.shape
    _, Cout = w_mat.shape

    # Lane-dense / aligned padding.
    K_pad = _round_up(K, 128)
    C_pad = _round_up(Cout, 128)
    TILE_M = 256 if M >= 256 else _round_up(M, 16)
    M_pad = _round_up(M, TILE_M)

    p = jnp.pad(patches, ((0, M_pad - M), (0, K_pad - K))).astype(jnp.bfloat16)
    w = jnp.pad(w_mat, ((0, K_pad - K), (0, C_pad - Cout))).astype(jnp.bfloat16)
    sh = jnp.pad(shift.reshape(1, Cout).astype(jnp.float32),
                 ((0, 0), (0, C_pad - Cout)))

    args = [p, w, sh]
    in_specs = [
        pl.BlockSpec((TILE_M, K_pad), lambda i: (i, 0)),
        pl.BlockSpec((K_pad, C_pad), lambda i: (0, 0)),   # resident weight tile
        pl.BlockSpec((1, C_pad), lambda i: (0, 0)),
    ]

    add_residual = residual is not None
    if add_residual:
        r = jnp.pad(residual.astype(jnp.float32),
                    ((0, M_pad - M), (0, C_pad - Cout)))
        args.append(r)
        in_specs.append(pl.BlockSpec((TILE_M, C_pad), lambda i: (i, 0)))

    kernel = functools.partial(_conv_mm_kernel, relu=relu,
                               add_residual=add_residual, post_relu=post_relu)
    out = pl.pallas_call(
        kernel,
        out_shape=jax.ShapeDtypeStruct((M_pad, C_pad), jnp.float32),
        grid=(M_pad // TILE_M,),
        in_specs=in_specs,
        out_specs=pl.BlockSpec((TILE_M, C_pad), lambda i: (i, 0)),
        compiler_params=pltpu.CompilerParams(
            dimension_semantics=("parallel",),
            vmem_limit_bytes=48 * 1024 * 1024),
    )(*args)
    return out[:M, :Cout]


# ----------------------------------------------------------------------------
# Plain-JAX glue: im2col patch extraction (reshapes / slices only)
# ----------------------------------------------------------------------------
def im2col(x, k, stride, pad):
    """x: (N, H, W, C) -> (N*Ho*Wo, k*k*C), row layout ky-major, kx, cin."""
    N, H, W, C = x.shape
    xp = jnp.pad(x, ((0, 0), (pad, pad), (pad, pad), (0, 0)))
    Ho = (H + 2 * pad - k) // stride + 1
    Wo = (W + 2 * pad - k) // stride + 1
    cols = []
    for ky in range(k):
        for kx in range(k):
            cols.append(xp[:, ky:ky + stride * (Ho - 1) + 1:stride,
                           kx:kx + stride * (Wo - 1) + 1:stride, :])
    patches = jnp.concatenate(cols, axis=-1)
    return patches.reshape(N * Ho * Wo, k * k * C), (N, Ho, Wo)


def conv_layer(x, p, stride, pad, relu=False, residual=None, post_relu=False):
    """Conv2d + (folded bias/BN affine) + optional ReLU/residual, NHWC."""
    k = p['w'].shape[0]
    cout = p['w'].shape[-1]
    patches, (N, Ho, Wo) = im2col(x, k, stride, pad)
    scale = p['bn_scale']
    w_mat = (p['w'] * scale).reshape(-1, cout)      # fold BN scale into W
    shift = p['bn_shift'] + p['bias'] * scale       # fold conv bias + BN shift
    res_flat = None
    if residual is not None:
        res_flat = residual.reshape(N * Ho * Wo, cout)
    out = conv_mm(patches, w_mat, shift,
                  residual=res_flat, relu=relu, post_relu=post_relu)
    return out.reshape(N, Ho, Wo, cout)


# ----------------------------------------------------------------------------
# Parameter construction (deterministic, matches __init__ shapes)
# ----------------------------------------------------------------------------
def make_conv_params(key, k, cin, cout, bias=True, bn=True):
    kw, kb = jax.random.split(key)
    std = (2.0 / (cout * k * k)) ** 0.5                    # kaiming_normal fan_out
    w = std * jax.random.normal(kw, (k, k, cin, cout), jnp.float32)
    if bias:
        bound = 1.0 / ((cin * k * k) ** 0.5)
        b = jax.random.uniform(kb, (cout,), jnp.float32, -bound, bound)
    else:
        b = jnp.zeros((cout,), jnp.float32)
    if bn:  # eval-mode BN of a fresh module: mean=0, var=1, gamma=1, beta=0
        scale = jnp.full((cout,), 1.0 / (1.0 + BN_EPS) ** 0.5, jnp.float32)
        shift = jnp.zeros((cout,), jnp.float32)
    else:
        scale = jnp.ones((cout,), jnp.float32)
        shift = jnp.zeros((cout,), jnp.float32)
    return dict(w=w, bias=b, bn_scale=scale, bn_shift=shift)


def init_params(key, output_dim=64):
    ks = jax.random.split(key, 11)
    p = {}
    p['conv_start'] = make_conv_params(ks[0], 7, 3, 32)
    p['layer1_0'] = dict(conv1=make_conv_params(ks[1], 3, 32, 32),
                         conv2=make_conv_params(ks[2], 3, 32, 32))
    p['layer1_1'] = dict(conv1=make_conv_params(ks[3], 3, 32, 32),
                         conv2=make_conv_params(ks[4], 3, 32, 32))
    p['layer2_0'] = dict(conv1=make_conv_params(ks[5], 3, 32, 64),
                         conv2=make_conv_params(ks[6], 3, 64, 64),
                         down=make_conv_params(ks[7], 1, 32, 64))
    p['layer2_1'] = dict(conv1=make_conv_params(ks[8], 3, 64, 64),
                         conv2=make_conv_params(ks[9], 3, 64, 64))
    p['guidance0'] = make_conv_params(ks[10], 3, 64, output_dim,
                                      bias=False, bn=False)
    return p


# ----------------------------------------------------------------------------
# Module forward
# ----------------------------------------------------------------------------
def residual_block(x, p, stride):
    # y = relu(norm1(conv1(x)))
    y = conv_layer(x, p['conv1'], stride=stride, pad=1, relu=True)
    # optional downsample of x: 1x1 conv stride s + norm3
    if stride != 1:
        xr = conv_layer(x, p['down'], stride=stride, pad=0, relu=False)
    else:
        xr = x
    # out = relu(x + relu(norm2(conv2(y))))  -- fused in one kernel call
    # (matches the PyTorch ResidualBlock: inner ReLU before the residual add)
    return conv_layer(y, p['conv2'], stride=1, pad=1, relu=True,
                      residual=xr, post_relu=True)


def guidance_forward(x_nchw, params):
    x = jnp.transpose(x_nchw, (0, 2, 3, 1))                # NCHW -> NHWC
    x = conv_layer(x, params['conv_start'], stride=2, pad=3, relu=True)
    x = residual_block(x, params['layer1_0'], stride=1)
    x = residual_block(x, params['layer1_1'], stride=1)
    x = residual_block(x, params['layer2_0'], stride=2)
    x = residual_block(x, params['layer2_1'], stride=1)
    g = conv_layer(x, params['guidance0'], stride=1, pad=1, relu=False)
    return jnp.transpose(g, (0, 3, 1, 2))                  # NHWC -> NCHW


if __name__ == "__main__":
    key = jax.random.PRNGKey(0)
    kx, kp = jax.random.split(key)
    x = jax.random.normal(kx, (2, 3, 16, 16), jnp.float32)  # N, C=3, H, W
    params = init_params(kp, output_dim=64)

    g = jax.jit(guidance_forward)(x, params)
    jax.block_until_ready(g)
    assert g.shape == (2, 64, 4, 4), g.shape
    assert jnp.all(jnp.isfinite(g))
    print("KERNEL_OK")
</pallas_src>

<mosaic_0001>
module attributes {stable_mosaic.version = 11 : i64} {
  func.func @_conv_mm_kernel(%arg0: i32, %arg1: memref<128x256xbf16, #tpu.memory_space<vmem>>, %arg2: memref<256x128xbf16, #tpu.memory_space<vmem>>, %arg3: memref<1x128xf32, #tpu.memory_space<vmem>>, %arg4: memref<128x128xf32, #tpu.memory_space<vmem>>) attributes {dimension_semantics = [#tpu.dimension_semantics<parallel>], iteration_bounds = array<i64: 1>, scalar_prefetch = 0 : i64, scratch_operands = 0 : i64, tpu.core_type = #tpu.core_type<tc>, window_params = [{transform_indices = @transform_0, window_bounds = array<i64: 128, 256>}, {pipeline_mode = #tpu.pipeline_mode<synchronous>, transform_indices = @transform_1, window_bounds = array<i64: 256, 128>}, {pipeline_mode = #tpu.pipeline_mode<synchronous>, transform_indices = @transform_2, window_bounds = array<i64: 1, 128>}, {transform_indices = @transform_3, window_bounds = array<i64: 128, 128>}]} {
    %c0 = arith.constant 0 : index
    %c0_0 = arith.constant 0 : index
    %0 = vector.load %arg1[%c0, %c0_0] : memref<128x256xbf16, #tpu.memory_space<vmem>>, vector<128x256xbf16>
    %c0_1 = arith.constant 0 : index
    %c0_2 = arith.constant 0 : index
    %1 = vector.load %arg2[%c0_1, %c0_2] : memref<256x128xbf16, #tpu.memory_space<vmem>>, vector<256x128xbf16>
    %cst = arith.constant dense<0.000000e+00> : vector<128x128xf32>
    %2 = tpu.matmul %0, %1, %cst {dimension_numbers = #tpu.dot_dimension_numbers<[1], [0], [0], [1], [0, 0, 1, 1], [], []>} : vector<128x256xbf16>, vector<256x128xbf16>, vector<128x128xf32> -> vector<128x128xf32>
    %c0_3 = arith.constant 0 : index
    %c0_4 = arith.constant 0 : index
    %3 = vector.load %arg3[%c0_3, %c0_4] : memref<1x128xf32, #tpu.memory_space<vmem>>, vector<1x128xf32>
    %4 = vector.broadcast %3 : vector<1x128xf32> to vector<128x128xf32>
    %5 = arith.addf %2, %4 : vector<128x128xf32>
    %cst_5 = arith.constant 0.000000e+00 : f32
    %6 = vector.broadcast %cst_5 : f32 to vector<128x128xf32>
    %7 = arith.maximumf %5, %6 : vector<128x128xf32>
    %c0_6 = arith.constant 0 : index
    %c0_7 = arith.constant 0 : index
    %8 = vector.load %arg4[%c0_6, %c0_7] : memref<128x128xf32, #tpu.memory_space<vmem>>, vector<128x128xf32>
    tpu.vector_store %arg4[%c0_6, %c0_7], %7 {strides = array<i32>} : memref<128x128xf32, #tpu.memory_space<vmem>>, vector<128x128xf32>,
    return
  }
  func.func @transform_0(%arg0: i32) -> (i32, i32) {
    %c0_i32 = arith.constant 0 : i32
    %c0_i32_0 = arith.constant 0 : i32
    return %arg0, %c0_i32 : i32, i32
  }
  func.func @transform_1(%arg0: i32) -> (i32, i32) {
    %c0_i32 = arith.constant 0 : i32
    %c0_i32_0 = arith.constant 0 : i32
    %c0_i32_1 = arith.constant 0 : i32
    return %c0_i32, %c0_i32_0 : i32, i32
  }
  func.func @transform_2(%arg0: i32) -> (i32, i32) {
    %c0_i32 = arith.constant 0 : i32
    %c0_i32_0 = arith.constant 0 : i32
    %c0_i32_1 = arith.constant 0 : i32
    return %c0_i32, %c0_i32_0 : i32, i32
  }
  func.func @transform_3(%arg0: i32) -> (i32, i32) {
    %c0_i32 = arith.constant 0 : i32
    %c0_i32_0 = arith.constant 0 : i32
    return %arg0, %c0_i32 : i32, i32
  }
}

module attributes {stable_mosaic.version = 11 : i64} {
  func.func @_conv_mm_kernel(%arg0: i32, %arg1: memref<128x384xbf16, #tpu.memory_space<vmem>>, %arg2: memref<384x128xbf16, #tpu.memory_space<vmem>>, %arg3: memref<1x128xf32, #tpu.memory_space<vmem>>, %arg4: memref<128x128xf32, #tpu.memory_space<vmem>>) attributes {dimension_semantics = [#tpu.dimension_semantics<parallel>], iteration_bounds = array<i64: 1>, scalar_prefetch = 0 : i64, scratch_operands = 0 : i64, tpu.core_type = #tpu.core_type<tc>, window_params = [{transform_indices = @transform_0, window_bounds = array<i64: 128, 384>}, {pipeline_mode = #tpu.pipeline_mode<synchronous>, transform_indices = @transform_1, window_bounds = array<i64: 384, 128>}, {pipeline_mode = #tpu.pipeline_mode<synchronous>, transform_indices = @transform_2, window_bounds = array<i64: 1, 128>}, {transform_indices = @transform_3, window_bounds = array<i64: 128, 128>}]} {
    %c0 = arith.constant 0 : index
    %c0_0 = arith.constant 0 : index
    %0 = vector.load %arg1[%c0, %c0_0] : memref<128x384xbf16, #tpu.memory_space<vmem>>, vector<128x384xbf16>
    %c0_1 = arith.constant 0 : index
    %c0_2 = arith.constant 0 : index
    %1 = vector.load %arg2[%c0_1, %c0_2] : memref<384x128xbf16, #tpu.memory_space<vmem>>, vector<384x128xbf16>
    %cst = arith.constant dense<0.000000e+00> : vector<128x128xf32>
    %2 = tpu.matmul %0, %1, %cst {dimension_numbers = #tpu.dot_dimension_numbers<[1], [0], [0], [1], [0, 0, 1, 1], [], []>} : vector<128x384xbf16>, vector<384x128xbf16>, vector<128x128xf32> -> vector<128x128xf32>
    %c0_3 = arith.constant 0 : index
    %c0_4 = arith.constant 0 : index
    %3 = vector.load %arg3[%c0_3, %c0_4] : memref<1x128xf32, #tpu.memory_space<vmem>>, vector<1x128xf32>
    %4 = vector.broadcast %3 : vector<1x128xf32> to vector<128x128xf32>
    %5 = arith.addf %2, %4 : vector<128x128xf32>
    %cst_5 = arith.constant 0.000000e+00 : f32
    %6 = vector.broadcast %cst_5 : f32 to vector<128x128xf32>
    %7 = arith.maximumf %5, %6 : vector<128x128xf32>
    %c0_6 = arith.constant 0 : index
    %c0_7 = arith.constant 0 : index
    %8 = vector.load %arg4[%c0_6, %c0_7] : memref<128x128xf32, #tpu.memory_space<vmem>>, vector<128x128xf32>
    tpu.vector_store %arg4[%c0_6, %c0_7], %7 {strides = array<i32>} : memref<128x128xf32, #tpu.memory_space<vmem>>, vector<128x128xf32>,
    return
  }
  func.func @transform_0(%arg0: i32) -> (i32, i32) {
    %c0_i32 = arith.constant 0 : i32
    %c0_i32_0 = arith.constant 0 : i32
    return %arg0, %c0_i32 : i32, i32
  }
  func.func @transform_1(%arg0: i32) -> (i32, i32) {
    %c0_i32 = arith.constant 0 : i32
    %c0_i32_0 = arith.constant 0 : i32
    %c0_i32_1 = arith.constant 0 : i32
    return %c0_i32, %c0_i32_0 : i32, i32
  }
  func.func @transform_2(%arg0: i32) -> (i32, i32) {
    %c0_i32 = arith.constant 0 : i32
    %c0_i32_0 = arith.constant 0 : i32
    %c0_i32_1 = arith.constant 0 : i32
    return %c0_i32, %c0_i32_0 : i32, i32
  }
  func.func @transform_3(%arg0: i32) -> (i32, i32) {
    %c0_i32 = arith.constant 0 : i32
    %c0_i32_0 = arith.constant 0 : i32
    return %arg0, %c0_i32 : i32, i32
  }
}

module attributes {stable_mosaic.version = 11 : i64} {
  func.func @_conv_mm_kernel(%arg0: i32, %arg1: memref<128x384xbf16, #tpu.memory_space<vmem>>, %arg2: memref<384x128xbf16, #tpu.memory_space<vmem>>, %arg3: memref<1x128xf32, #tpu.memory_space<vmem>>, %arg4: memref<128x128xf32, #tpu.memory_space<vmem>>, %arg5: memref<128x128xf32, #tpu.memory_space<vmem>>) attributes {dimension_semantics = [#tpu.dimension_semantics<parallel>], iteration_bounds = array<i64: 1>, scalar_prefetch = 0 : i64, scratch_operands = 0 : i64, tpu.core_type = #tpu.core_type<tc>, window_params = [{transform_indices = @transform_0, window_bounds = array<i64: 128, 384>}, {pipeline_mode = #tpu.pipeline_mode<synchronous>, transform_indices = @transform_1, window_bounds = array<i64: 384, 128>}, {pipeline_mode = #tpu.pipeline_mode<synchronous>, transform_indices = @transform_2, window_bounds = array<i64: 1, 128>}, {transform_indices = @transform_3, window_bounds = array<i64: 128, 128>}, {transform_indices = @transform_4, window_bounds = array<i64: 128, 128>}]} {
    %c0 = arith.constant 0 : index
    %c0_0 = arith.constant 0 : index
    %0 = vector.load %arg1[%c0, %c0_0] : memref<128x384xbf16, #tpu.memory_space<vmem>>, vector<128x384xbf16>
    %c0_1 = arith.constant 0 : index
    %c0_2 = arith.constant 0 : index
    %1 = vector.load %arg2[%c0_1, %c0_2] : memref<384x128xbf16, #tpu.memory_space<vmem>>, vector<384x128xbf16>
    %cst = arith.constant dense<0.000000e+00> : vector<128x128xf32>
    %2 = tpu.matmul %0, %1, %cst {dimension_numbers = #tpu.dot_dimension_numbers<[1], [0], [0], [1], [0, 0, 1, 1], [], []>} : vector<128x384xbf16>, vector<384x128xbf16>, vector<128x128xf32> -> vector<128x128xf32>
    %c0_3 = arith.constant 0 : index
    %c0_4 = arith.constant 0 : index
    %3 = vector.load %arg3[%c0_3, %c0_4] : memref<1x128xf32, #tpu.memory_space<vmem>>, vector<1x128xf32>
    %4 = vector.broadcast %3 : vector<1x128xf32> to vector<128x128xf32>
    %5 = arith.addf %2, %4 : vector<128x128xf32>
    %cst_5 = arith.constant 0.000000e+00 : f32
    %6 = vector.broadcast %cst_5 : f32 to vector<128x128xf32>
    %7 = arith.maximumf %5, %6 : vector<128x128xf32>
    %c0_6 = arith.constant 0 : index
    %c0_7 = arith.constant 0 : index
    %8 = vector.load %arg4[%c0_6, %c0_7] : memref<128x128xf32, #tpu.memory_space<vmem>>, vector<128x128xf32>
    %9 = arith.addf %7, %8 : vector<128x128xf32>
    %cst_8 = arith.constant 0.000000e+00 : f32
    %10 = vector.broadcast %cst_8 : f32 to vector<128x128xf32>
    %11 = arith.maximumf %9, %10 : vector<128x128xf32>
    %c0_9 = arith.constant 0 : index
    %c0_10 = arith.constant 0 : index
    %12 = vector.load %arg5[%c0_9, %c0_10] : memref<128x128xf32, #tpu.memory_space<vmem>>, vector<128x128xf32>
    tpu.vector_store %arg5[%c0_9, %c0_10], %11 {strides = array<i32>} : memref<128x128xf32, #tpu.memory_space<vmem>>, vector<128x128xf32>,
    return
  }
  func.func @transform_0(%arg0: i32) -> (i32, i32) {
    %c0_i32 = arith.constant 0 : i32
    %c0_i32_0 = arith.constant 0 : i32
    return %arg0, %c0_i32 : i32, i32
  }
  func.func @transform_1(%arg0: i32) -> (i32, i32) {
    %c0_i32 = arith.constant 0 : i32
    %c0_i32_0 = arith.constant 0 : i32
    %c0_i32_1 = arith.constant 0 : i32
    return %c0_i32, %c0_i32_0 : i32, i32
  }
  func.func @transform_2(%arg0: i32) -> (i32, i32) {
    %c0_i32 = arith.constant 0 : i32
    %c0_i32_0 = arith.constant 0 : i32
    %c0_i32_1 = arith.constant 0 : i32
    return %c0_i32, %c0_i32_0 : i32, i32
  }
  func.func @transform_3(%arg0: i32) -> (i32, i32) {
    %c0_i32 = arith.constant 0 : i32
    %c0_i32_0 = arith.constant 0 : i32
    return %arg0, %c0_i32 : i32, i32
  }
  func.func @transform_4(%arg0: i32) -> (i32, i32) {
    %c0_i32 = arith.constant 0 : i32
    %c0_i32_0 = arith.constant 0 : i32
    return %arg0, %c0_i32 : i32, i32
  }
}

module attributes {stable_mosaic.version = 11 : i64} {
  func.func @_conv_mm_kernel(%arg0: i32, %arg1: memref<32x384xbf16, #tpu.memory_space<vmem>>, %arg2: memref<384x128xbf16, #tpu.memory_space<vmem>>, %arg3: memref<1x128xf32, #tpu.memory_space<vmem>>, %arg4: memref<32x128xf32, #tpu.memory_space<vmem>>) attributes {dimension_semantics = [#tpu.dimension_semantics<parallel>], iteration_bounds = array<i64: 1>, scalar_prefetch = 0 : i64, scratch_operands = 0 : i64, tpu.core_type = #tpu.core_type<tc>, window_params = [{transform_indices = @transform_0, window_bounds = array<i64: 32, 384>}, {pipeline_mode = #tpu.pipeline_mode<synchronous>, transform_indices = @transform_1, window_bounds = array<i64: 384, 128>}, {pipeline_mode = #tpu.pipeline_mode<synchronous>, transform_indices = @transform_2, window_bounds = array<i64: 1, 128>}, {transform_indices = @transform_3, window_bounds = array<i64: 32, 128>}]} {
    %c0 = arith.constant 0 : index
    %c0_0 = arith.constant 0 : index
    %0 = vector.load %arg1[%c0, %c0_0] : memref<32x384xbf16, #tpu.memory_space<vmem>>, vector<32x384xbf16>
    %c0_1 = arith.constant 0 : index
    %c0_2 = arith.constant 0 : index
    %1 = vector.load %arg2[%c0_1, %c0_2] : memref<384x128xbf16, #tpu.memory_space<vmem>>, vector<384x128xbf16>
    %cst = arith.constant dense<0.000000e+00> : vector<32x128xf32>
    %2 = tpu.matmul %0, %1, %cst {dimension_numbers = #tpu.dot_dimension_numbers<[1], [0], [0], [1], [0, 0, 1, 1], [], []>} : vector<32x384xbf16>, vector<384x128xbf16>, vector<32x128xf32> -> vector<32x128xf32>
    %c0_3 = arith.constant 0 : index
    %c0_4 = arith.constant 0 : index
    %3 = vector.load %arg3[%c0_3, %c0_4] : memref<1x128xf32, #tpu.memory_space<vmem>>, vector<1x128xf32>
    %4 = vector.broadcast %3 : vector<1x128xf32> to vector<32x128xf32>
    %5 = arith.addf %2, %4 : vector<32x128xf32>
    %cst_5 = arith.constant 0.000000e+00 : f32
    %6 = vector.broadcast %cst_5 : f32 to vector<32x128xf32>
    %7 = arith.maximumf %5, %6 : vector<32x128xf32>
    %c0_6 = arith.constant 0 : index
    %c0_7 = arith.constant 0 : index
    %8 = vector.load %arg4[%c0_6, %c0_7] : memref<32x128xf32, #tpu.memory_space<vmem>>, vector<32x128xf32>
    tpu.vector_store %arg4[%c0_6, %c0_7], %7 {strides = array<i32>} : memref<32x128xf32, #tpu.memory_space<vmem>>, vector<32x128xf32>,
    return
  }
  func.func @transform_0(%arg0: i32) -> (i32, i32) {
    %c0_i32 = arith.constant 0 : i32
    %c0_i32_0 = arith.constant 0 : i32
    return %arg0, %c0_i32 : i32, i32
  }
  func.func @transform_1(%arg0: i32) -> (i32, i32) {
    %c0_i32 = arith.constant 0 : i32
    %c0_i32_0 = arith.constant 0 : i32
    %c0_i32_1 = arith.constant 0 : i32
    return %c0_i32, %c0_i32_0 : i32, i32
  }
  func.func @transform_2(%arg0: i32) -> (i32, i32) {
    %c0_i32 = arith.constant 0 : i32
    %c0_i32_0 = arith.constant 0 : i32
    %c0_i32_1 = arith.constant 0 : i32
    return %c0_i32, %c0_i32_0 : i32, i32
  }
  func.func @transform_3(%arg0: i32) -> (i32, i32) {
    %c0_i32 = arith.constant 0 : i32
    %c0_i32_0 = arith.constant 0 : i32
    return %arg0, %c0_i32 : i32, i32
  }
}

module attributes {stable_mosaic.version = 11 : i64} {
  func.func @_conv_mm_kernel(%arg0: i32, %arg1: memref<32x128xbf16, #tpu.memory_space<vmem>>, %arg2: memref<128x128xbf16, #tpu.memory_space<vmem>>, %arg3: memref<1x128xf32, #tpu.memory_space<vmem>>, %arg4: memref<32x128xf32, #tpu.memory_space<vmem>>) attributes {dimension_semantics = [#tpu.dimension_semantics<parallel>], iteration_bounds = array<i64: 1>, scalar_prefetch = 0 : i64, scratch_operands = 0 : i64, tpu.core_type = #tpu.core_type<tc>, window_params = [{transform_indices = @transform_0, window_bounds = array<i64: 32, 128>}, {pipeline_mode = #tpu.pipeline_mode<synchronous>, transform_indices = @transform_1, window_bounds = array<i64: 128, 128>}, {pipeline_mode = #tpu.pipeline_mode<synchronous>, transform_indices = @transform_2, window_bounds = array<i64: 1, 128>}, {transform_indices = @transform_3, window_bounds = array<i64: 32, 128>}]} {
    %c0 = arith.constant 0 : index
    %c0_0 = arith.constant 0 : index
    %0 = vector.load %arg1[%c0, %c0_0] : memref<32x128xbf16, #tpu.memory_space<vmem>>, vector<32x128xbf16>
    %c0_1 = arith.constant 0 : index
    %c0_2 = arith.constant 0 : index
    %1 = vector.load %arg2[%c0_1, %c0_2] : memref<128x128xbf16, #tpu.memory_space<vmem>>, vector<128x128xbf16>
    %cst = arith.constant dense<0.000000e+00> : vector<32x128xf32>
    %2 = tpu.matmul %0, %1, %cst {dimension_numbers = #tpu.dot_dimension_numbers<[1], [0], [0], [1], [0, 0, 1, 1], [], []>} : vector<32x128xbf16>, vector<128x128xbf16>, vector<32x128xf32> -> vector<32x128xf32>
    %c0_3 = arith.constant 0 : index
    %c0_4 = arith.constant 0 : index
    %3 = vector.load %arg3[%c0_3, %c0_4] : memref<1x128xf32, #tpu.memory_space<vmem>>, vector<1x128xf32>
    %4 = vector.broadcast %3 : vector<1x128xf32> to vector<32x128xf32>
    %5 = arith.addf %2, %4 : vector<32x128xf32>
    %c0_5 = arith.constant 0 : index
    %c0_6 = arith.constant 0 : index
    %6 = vector.load %arg4[%c0_5, %c0_6] : memref<32x128xf32, #tpu.memory_space<vmem>>, vector<32x128xf32>
    tpu.vector_store %arg4[%c0_5, %c0_6], %5 {strides = array<i32>} : memref<32x128xf32, #tpu.memory_space<vmem>>, vector<32x128xf32>,
    return
  }
  func.func @transform_0(%arg0: i32) -> (i32, i32) {
    %c0_i32 = arith.constant 0 : i32
    %c0_i32_0 = arith.constant 0 : i32
    return %arg0, %c0_i32 : i32, i32
  }
  func.func @transform_1(%arg0: i32) -> (i32, i32) {
    %c0_i32 = arith.constant 0 : i32
    %c0_i32_0 = arith.constant 0 : i32
    %c0_i32_1 = arith.constant 0 : i32
    return %c0_i32, %c0_i32_0 : i32, i32
  }
  func.func @transform_2(%arg0: i32) -> (i32, i32) {
    %c0_i32 = arith.constant 0 : i32
    %c0_i32_0 = arith.constant 0 : i32
    %c0_i32_1 = arith.constant 0 : i32
    return %c0_i32, %c0_i32_0 : i32, i32
  }
  func.func @transform_3(%arg0: i32) -> (i32, i32) {
    %c0_i32 = arith.constant 0 : i32
    %c0_i32_0 = arith.constant 0 : i32
    return %arg0, %c0_i32 : i32, i32
  }
}

module attributes {stable_mosaic.version = 11 : i64} {
  func.func @_conv_mm_kernel(%arg0: i32, %arg1: memref<32x640xbf16, #tpu.memory_space<vmem>>, %arg2: memref<640x128xbf16, #tpu.memory_space<vmem>>, %arg3: memref<1x128xf32, #tpu.memory_space<vmem>>, %arg4: memref<32x128xf32, #tpu.memory_space<vmem>>, %arg5: memref<32x128xf32, #tpu.memory_space<vmem>>) attributes {dimension_semantics = [#tpu.dimension_semantics<parallel>], iteration_bounds = array<i64: 1>, scalar_prefetch = 0 : i64, scratch_operands = 0 : i64, tpu.core_type = #tpu.core_type<tc>, window_params = [{transform_indices = @transform_0, window_bounds = array<i64: 32, 640>}, {pipeline_mode = #tpu.pipeline_mode<synchronous>, transform_indices = @transform_1, window_bounds = array<i64: 640, 128>}, {pipeline_mode = #tpu.pipeline_mode<synchronous>, transform_indices = @transform_2, window_bounds = array<i64: 1, 128>}, {transform_indices = @transform_3, window_bounds = array<i64: 32, 128>}, {transform_indices = @transform_4, window_bounds = array<i64: 32, 128>}]} {
    %c0 = arith.constant 0 : index
    %c0_0 = arith.constant 0 : index
    %0 = vector.load %arg1[%c0, %c0_0] : memref<32x640xbf16, #tpu.memory_space<vmem>>, vector<32x640xbf16>
    %c0_1 = arith.constant 0 : index
    %c0_2 = arith.constant 0 : index
    %1 = vector.load %arg2[%c0_1, %c0_2] : memref<640x128xbf16, #tpu.memory_space<vmem>>, vector<640x128xbf16>
    %cst = arith.constant dense<0.000000e+00> : vector<32x128xf32>
    %2 = tpu.matmul %0, %1, %cst {dimension_numbers = #tpu.dot_dimension_numbers<[1], [0], [0], [1], [0, 0, 1, 1], [], []>} : vector<32x640xbf16>, vector<640x128xbf16>, vector<32x128xf32> -> vector<32x128xf32>
    %c0_3 = arith.constant 0 : index
    %c0_4 = arith.constant 0 : index
    %3 = vector.load %arg3[%c0_3, %c0_4] : memref<1x128xf32, #tpu.memory_space<vmem>>, vector<1x128xf32>
    %4 = vector.broadcast %3 : vector<1x128xf32> to vector<32x128xf32>
    %5 = arith.addf %2, %4 : vector<32x128xf32>
    %cst_5 = arith.constant 0.000000e+00 : f32
    %6 = vector.broadcast %cst_5 : f32 to vector<32x128xf32>
    %7 = arith.maximumf %5, %6 : vector<32x128xf32>
    %c0_6 = arith.constant 0 : index
    %c0_7 = arith.constant 0 : index
    %8 = vector.load %arg4[%c0_6, %c0_7] : memref<32x128xf32, #tpu.memory_space<vmem>>, vector<32x128xf32>
    %9 = arith.addf %7, %8 : vector<32x128xf32>
    %cst_8 = arith.constant 0.000000e+00 : f32
    %10 = vector.broadcast %cst_8 : f32 to vector<32x128xf32>
    %11 = arith.maximumf %9, %10 : vector<32x128xf32>
    %c0_9 = arith.constant 0 : index
    %c0_10 = arith.constant 0 : index
    %12 = vector.load %arg5[%c0_9, %c0_10] : memref<32x128xf32, #tpu.memory_space<vmem>>, vector<32x128xf32>
    tpu.vector_store %arg5[%c0_9, %c0_10], %11 {strides = array<i32>} : memref<32x128xf32, #tpu.memory_space<vmem>>, vector<32x128xf32>,
    return
  }
  func.func @transform_0(%arg0: i32) -> (i32, i32) {
    %c0_i32 = arith.constant 0 : i32
    %c0_i32_0 = arith.constant 0 : i32
    return %arg0, %c0_i32 : i32, i32
  }
  func.func @transform_1(%arg0: i32) -> (i32, i32) {
    %c0_i32 = arith.constant 0 : i32
    %c0_i32_0 = arith.constant 0 : i32
    %c0_i32_1 = arith.constant 0 : i32
    return %c0_i32, %c0_i32_0 : i32, i32
  }
  func.func @transform_2(%arg0: i32) -> (i32, i32) {
    %c0_i32 = arith.constant 0 : i32
    %c0_i32_0 = arith.constant 0 : i32
    %c0_i32_1 = arith.constant 0 : i32
    return %c0_i32, %c0_i32_0 : i32, i32
  }
  func.func @transform_3(%arg0: i32) -> (i32, i32) {
    %c0_i32 = arith.constant 0 : i32
    %c0_i32_0 = arith.constant 0 : i32
    return %arg0, %c0_i32 : i32, i32
  }
  func.func @transform_4(%arg0: i32) -> (i32, i32) {
    %c0_i32 = arith.constant 0 : i32
    %c0_i32_0 = arith.constant 0 : i32
    return %arg0, %c0_i32 : i32, i32
  }
}

module attributes {stable_mosaic.version = 11 : i64} {
  func.func @_conv_mm_kernel(%arg0: i32, %arg1: memref<32x640xbf16, #tpu.memory_space<vmem>>, %arg2: memref<640x128xbf16, #tpu.memory_space<vmem>>, %arg3: memref<1x128xf32, #tpu.memory_space<vmem>>, %arg4: memref<32x128xf32, #tpu.memory_space<vmem>>) attributes {dimension_semantics = [#tpu.dimension_semantics<parallel>], iteration_bounds = array<i64: 1>, scalar_prefetch = 0 : i64, scratch_operands = 0 : i64, tpu.core_type = #tpu.core_type<tc>, window_params = [{transform_indices = @transform_0, window_bounds = array<i64: 32, 640>}, {pipeline_mode = #tpu.pipeline_mode<synchronous>, transform_indices = @transform_1, window_bounds = array<i64: 640, 128>}, {pipeline_mode = #tpu.pipeline_mode<synchronous>, transform_indices = @transform_2, window_bounds = array<i64: 1, 128>}, {transform_indices = @transform_3, window_bounds = array<i64: 32, 128>}]} {
    %c0 = arith.constant 0 : index
    %c0_0 = arith.constant 0 : index
    %0 = vector.load %arg1[%c0, %c0_0] : memref<32x640xbf16, #tpu.memory_space<vmem>>, vector<32x640xbf16>
    %c0_1 = arith.constant 0 : index
    %c0_2 = arith.constant 0 : index
    %1 = vector.load %arg2[%c0_1, %c0_2] : memref<640x128xbf16, #tpu.memory_space<vmem>>, vector<640x128xbf16>
    %cst = arith.constant dense<0.000000e+00> : vector<32x128xf32>
    %2 = tpu.matmul %0, %1, %cst {dimension_numbers = #tpu.dot_dimension_numbers<[1], [0], [0], [1], [0, 0, 1, 1], [], []>} : vector<32x640xbf16>, vector<640x128xbf16>, vector<32x128xf32> -> vector<32x128xf32>
    %c0_3 = arith.constant 0 : index
    %c0_4 = arith.constant 0 : index
    %3 = vector.load %arg3[%c0_3, %c0_4] : memref<1x128xf32, #tpu.memory_space<vmem>>, vector<1x128xf32>
    %4 = vector.broadcast %3 : vector<1x128xf32> to vector<32x128xf32>
    %5 = arith.addf %2, %4 : vector<32x128xf32>
    %cst_5 = arith.constant 0.000000e+00 : f32
    %6 = vector.broadcast %cst_5 : f32 to vector<32x128xf32>
    %7 = arith.maximumf %5, %6 : vector<32x128xf32>
    %c0_6 = arith.constant 0 : index
    %c0_7 = arith.constant 0 : index
    %8 = vector.load %arg4[%c0_6, %c0_7] : memref<32x128xf32, #tpu.memory_space<vmem>>, vector<32x128xf32>
    tpu.vector_store %arg4[%c0_6, %c0_7], %7 {strides = array<i32>} : memref<32x128xf32, #tpu.memory_space<vmem>>, vector<32x128xf32>,
    return
  }
  func.func @transform_0(%arg0: i32) -> (i32, i32) {
    %c0_i32 = arith.constant 0 : i32
    %c0_i32_0 = arith.constant 0 : i32
    return %arg0, %c0_i32 : i32, i32
  }
  func.func @transform_1(%arg0: i32) -> (i32, i32) {
    %c0_i32 = arith.constant 0 : i32
    %c0_i32_0 = arith.constant 0 : i32
    %c0_i32_1 = arith.constant 0 : i32
    return %c0_i32, %c0_i32_0 : i32, i32
  }
  func.func @transform_2(%arg0: i32) -> (i32, i32) {
    %c0_i32 = arith.constant 0 : i32
    %c0_i32_0 = arith.constant 0 : i32
    %c0_i32_1 = arith.constant 0 : i32
    return %c0_i32, %c0_i32_0 : i32, i32
  }
  func.func @transform_3(%arg0: i32) -> (i32, i32) {
    %c0_i32 = arith.constant 0 : i32
    %c0_i32_0 = arith.constant 0 : i32
    return %arg0, %c0_i32 : i32, i32
  }
}

module attributes {stable_mosaic.version = 11 : i64} {
  func.func @_conv_mm_kernel(%arg0: i32, %arg1: memref<32x640xbf16, #tpu.memory_space<vmem>>, %arg2: memref<640x128xbf16, #tpu.memory_space<vmem>>, %arg3: memref<1x128xf32, #tpu.memory_space<vmem>>, %arg4: memref<32x128xf32, #tpu.memory_space<vmem>>) attributes {dimension_semantics = [#tpu.dimension_semantics<parallel>], iteration_bounds = array<i64: 1>, scalar_prefetch = 0 : i64, scratch_operands = 0 : i64, tpu.core_type = #tpu.core_type<tc>, window_params = [{transform_indices = @transform_0, window_bounds = array<i64: 32, 640>}, {pipeline_mode = #tpu.pipeline_mode<synchronous>, transform_indices = @transform_1, window_bounds = array<i64: 640, 128>}, {pipeline_mode = #tpu.pipeline_mode<synchronous>, transform_indices = @transform_2, window_bounds = array<i64: 1, 128>}, {transform_indices = @transform_3, window_bounds = array<i64: 32, 128>}]} {
    %c0 = arith.constant 0 : index
    %c0_0 = arith.constant 0 : index
    %0 = vector.load %arg1[%c0, %c0_0] : memref<32x640xbf16, #tpu.memory_space<vmem>>, vector<32x640xbf16>
    %c0_1 = arith.constant 0 : index
    %c0_2 = arith.constant 0 : index
    %1 = vector.load %arg2[%c0_1, %c0_2] : memref<640x128xbf16, #tpu.memory_space<vmem>>, vector<640x128xbf16>
    %cst = arith.constant dense<0.000000e+00> : vector<32x128xf32>
    %2 = tpu.matmul %0, %1, %cst {dimension_numbers = #tpu.dot_dimension_numbers<[1], [0], [0], [1], [0, 0, 1, 1], [], []>} : vector<32x640xbf16>, vector<640x128xbf16>, vector<32x128xf32> -> vector<32x128xf32>
    %c0_3 = arith.constant 0 : index
    %c0_4 = arith.constant 0 : index
    %3 = vector.load %arg3[%c0_3, %c0_4] : memref<1x128xf32, #tpu.memory_space<vmem>>, vector<1x128xf32>
    %4 = vector.broadcast %3 : vector<1x128xf32> to vector<32x128xf32>
    %5 = arith.addf %2, %4 : vector<32x128xf32>
    %c0_5 = arith.constant 0 : index
    %c0_6 = arith.constant 0 : index
    %6 = vector.load %arg4[%c0_5, %c0_6] : memref<32x128xf32, #tpu.memory_space<vmem>>, vector<32x128xf32>
    tpu.vector_store %arg4[%c0_5, %c0_6], %5 {strides = array<i32>} : memref<32x128xf32, #tpu.memory_space<vmem>>, vector<32x128xf32>,
    return
  }
  func.func @transform_0(%arg0: i32) -> (i32, i32) {
    %c0_i32 = arith.constant 0 : i32
    %c0_i32_0 = arith.constant 0 : i32
    return %arg0, %c0_i32 : i32, i32
  }
  func.func @transform_1(%arg0: i32) -> (i32, i32) {
    %c0_i32 = arith.constant 0 : i32
    %c0_i32_0 = arith.constant 0 : i32
    %c0_i32_1 = arith.constant 0 : i32
    return %c0_i32, %c0_i32_0 : i32, i32
  }
  func.func @transform_2(%arg0: i32) -> (i32, i32) {
    %c0_i32 = arith.constant 0 : i32
    %c0_i32_0 = arith.constant 0 : i32
    %c0_i32_1 = arith.constant 0 : i32
    return %c0_i32, %c0_i32_0 : i32, i32
  }
  func.func @transform_3(%arg0: i32) -> (i32, i32) {
    %c0_i32 = arith.constant 0 : i32
    %c0_i32_0 = arith.constant 0 : i32
    return %arg0, %c0_i32 : i32, i32
  }
}

</mosaic_0001>

<llo_original>
// kernel: guidance_forward.12
$region0: #{guidance_forward.12}
  #allocation0 [shape = 'u32[]', space=smem, size = 0x4, offset = 0x4, fixed_abs, tag = 'smem constant byte address 0x4 - core index']
  #allocation1 [shape = 'u32[144,128]{1,0:T(1,128)}', space=vmem, size = 0x12000, scoped, tag = 'internal scratch']
  %s0 = inlined_call_operand.vmem [shape: bf16[128,384], index: 0, kind: input, shape index: {}]
  %s1 = inlined_call_operand.vmem [shape: bf16[384,128], index: 1, kind: input, shape index: {}]
  %s2 = inlined_call_operand.vmem [shape: f32[1,128], index: 2, kind: input, shape index: {}]
  %s3 = inlined_call_operand.vmem [shape: f32[128,128], index: 3, kind: output, shape index: {}]
  %s4 = sld [smem:[#allocation0]]
  $region22: #{guidance_forward.12} parent=0
    _
  %s6 = ssub.s32 1, %s4
  %s7 = scalar_select 0, %s6, %s4
  // Predicated region
  $region2: #{guidance_forward.12} parent=0 // pred_check
    _
  $region3: #{guidance_forward.12} parent=0 // pred_check_branch
    %9 = sbr.rel (0) target = $region5
  $region4: #{guidance_forward.12} parent=0 // pred_region
    _
  $region5: #{guidance_forward.12} parent=0 // pred_fallthru
    _
  // Predicated region
  $region6: #{guidance_forward.12} parent=0 // pred_check
    _
  $region7: #{guidance_forward.12} parent=0 // pred_check_branch
    %11 = sbr.rel (0) target = $region9
  $region8: #{guidance_forward.12} parent=0 // pred_region
    _
  $region9: #{guidance_forward.12} parent=0 // pred_fallthru
    _
  // Predicated region
  $region10: #{guidance_forward.12} parent=0 // pred_check
    _
  $region11: #{guidance_forward.12} parent=0 // pred_check_branch
    %13 = sbr.rel (0) target = $region13
  $region12: #{guidance_forward.12} parent=0 // pred_region
    _
  $region13: #{guidance_forward.12} parent=0 // pred_fallthru
    _
  %v15 = vld [vmem:[%s0] sm:$0xff]
  %v16 = vld [vmem:[%s0 + $0x8] sm:$0xf]
  %v17 = vld [vmem:[%s0 + $0xc] sm:$0xff]
  %v18 = vld [vmem:[%s0 + $0x14] sm:$0xf]
  %v19 = vld [vmem:[%s0 + $0x18] sm:$0xff]
  %v20 = vld [vmem:[%s0 + $0x20] sm:$0xf]
  %v21 = vld [vmem:[%s0 + $0x24] sm:$0xff]
  %v22 = vld [vmem:[%s0 + $0x2c] sm:$0xf]
  %v23 = vld [vmem:[%s0 + $0x30] sm:$0xff]
  %v24 = vld [vmem:[%s0 + $0x38] sm:$0xf]
  %v25 = vld [vmem:[%s0 + $0x3c] sm:$0xff]
  %v26 = vld [vmem:[%s0 + $0x44] sm:$0xf]
  %v27 = vld [vmem:[%s0 + $0x48] sm:$0xff]
  %v28 = vld [vmem:[%s0 + $0x50] sm:$0xf]
  %v29 = vld [vmem:[%s0 + $0x54] sm:$0xff]
  %v30 = vld [vmem:[%s0 + $0x5c] sm:$0xf]
  %v31 = vld [vmem:[%s0 + $0x60] sm:$0xff]
  %v32 = vld [vmem:[%s0 + $0x68] sm:$0xf]
  %v33 = vld [vmem:[%s0 + $0x6c] sm:$0xff]
  %v34 = vld [vmem:[%s0 + $0x74] sm:$0xf]
  %v35 = vld [vmem:[%s0 + $0x78] sm:$0xff]
  %v36 = vld [vmem:[%s0 + $0x80] sm:$0xf]
  %v37 = vld [vmem:[%s0 + $0x84] sm:$0xff]
  %v38 = vld [vmem:[%s0 + $0x8c] sm:$0xf]
  %v39 = vld [vmem:[%s0 + $0x90] sm:$0xff]
  %v40 = vld [vmem:[%s0 + $0x98] sm:$0xf]
  %v41 = vld [vmem:[%s0 + $0x9c] sm:$0xff]
  %v42 = vld [vmem:[%s0 + $0xa4] sm:$0xf]
  %v43 = vld [vmem:[%s0 + $0xa8] sm:$0xff]
  %v44 = vld [vmem:[%s0 + $0xb0] sm:$0xf]
  %v45 = vld [vmem:[%s0 + $0xb4] sm:$0xff]
  %v46 = vld [vmem:[%s0 + $0xbc] sm:$0xf]
  %v47 = vld [vmem:[%s1] sm:$0xf]
  %v48 = vld [vmem:[%s1 + $0x4] sm:$0xf]
  %v49 = vld [vmem:[%s1 + $0x8] sm:$0xf]
  %v50 = vld [vmem:[%s1 + $0xc] sm:$0xf]
  %v51 = vld [vmem:[%s1 + $0x10] sm:$0xf]
  %v52 = vld [vmem:[%s1 + $0x14] sm:$0xf]
  %v53 = vld [vmem:[%s1 + $0x18] sm:$0xf]
  %v54 = vld [vmem:[%s1 + $0x1c] sm:$0xf]
  %v55 = vld [vmem:[%s1 + $0x20] sm:$0xf]
  %v56 = vld [vmem:[%s1 + $0x24] sm:$0xf]
  %v57 = vld [vmem:[%s1 + $0x28] sm:$0xf]
  %v58 = vld [vmem:[%s1 + $0x2c] sm:$0xf]
  %v59 = vld [vmem:[%s1 + $0x30] sm:$0xf]
  %v60 = vld [vmem:[%s1 + $0x34] sm:$0xf]
  %v61 = vld [vmem:[%s1 + $0x38] sm:$0xf]
  %v62 = vld [vmem:[%s1 + $0x3c] sm:$0xf]
  %v63 = vld [vmem:[%s1 + $0x40] sm:$0xf]
  %v64 = vld [vmem:[%s1 + $0x44] sm:$0xf]
  %v65 = vld [vmem:[%s1 + $0x48] sm:$0xf]
  %v66 = vld [vmem:[%s1 + $0x4c] sm:$0xf]
  %v67 = vld [vmem:[%s1 + $0x50] sm:$0xf]
  %v68 = vld [vmem:[%s1 + $0x54] sm:$0xf]
  %v69 = vld [vmem:[%s1 + $0x58] sm:$0xf]
  %v70 = vld [vmem:[%s1 + $0x5c] sm:$0xf]
  %v71 = vld [vmem:[%s1 + $0x60] sm:$0xf]
  %v72 = vld [vmem:[%s1 + $0x64] sm:$0xf]
  %v73 = vld [vmem:[%s1 + $0x68] sm:$0xf]
  %v74 = vld [vmem:[%s1 + $0x6c] sm:$0xf]
  %v75 = vld [vmem:[%s1 + $0x70] sm:$0xf]
  %v76 = vld [vmem:[%s1 + $0x74] sm:$0xf]
  %v77 = vld [vmem:[%s1 + $0x78] sm:$0xf]
  %v78 = vld [vmem:[%s1 + $0x7c] sm:$0xf]
  %v79 = vld [vmem:[%s1 + $0x80] sm:$0xf]
  %v80 = vld [vmem:[%s1 + $0x84] sm:$0xf]
  %v81 = vld [vmem:[%s1 + $0x88] sm:$0xf]
  %v82 = vld [vmem:[%s1 + $0x8c] sm:$0xf]
  %v83 = vld [vmem:[%s1 + $0x90] sm:$0xf]
  %v84 = vld [vmem:[%s1 + $0x94] sm:$0xf]
  %v85 = vld [vmem:[%s1 + $0x98] sm:$0xf]
  %v86 = vld [vmem:[%s1 + $0x9c] sm:$0xf]
  %v87 = vld [vmem:[%s1 + $0xa0] sm:$0xf]
  %v88 = vld [vmem:[%s1 + $0xa4] sm:$0xf]
  %v89 = vld [vmem:[%s1 + $0xa8] sm:$0xf]
  %v90 = vld [vmem:[%s1 + $0xac] sm:$0xf]
  %v91 = vld [vmem:[%s1 + $0xb0] sm:$0xf]
  %v92 = vld [vmem:[%s1 + $0xb4] sm:$0xf]
  %v93 = vld [vmem:[%s1 + $0xb8] sm:$0xf]
  %v94 = vld [vmem:[%s1 + $0xbc] sm:$0xf]
  %v95 = vld [vmem:[%s2] sm:$0x1]
  %v97 = vlaneseq
  %v98 = vshrl.u32 %v97, 7
  %v99 = vsub.s32 0, %v98
  %v100 = vrot.slane %v95, %v99
  %v134 = vunpack.c.l.b16 %v15
  %v135 = vunpack.c.h.b16 %v15
  %v136 = vunpack.c.l.b16 %v16
  %v137 = vunpack.c.l.b16 %v17
  %v138 = vunpack.c.h.b16 %v17
  %v139 = vunpack.c.l.b16 %v18
  %v140 = vunpack.c.l.b16 %v19
  %v141 = vunpack.c.h.b16 %v19
  %v142 = vunpack.c.l.b16 %v20
  %v143 = vunpack.c.l.b16 %v21
  %v144 = vunpack.c.h.b16 %v21
  %v145 = vunpack.c.l.b16 %v22
  %v146 = vunpack.c.l.b16 %v23
  %v147 = vunpack.c.h.b16 %v23
  %v148 = vunpack.c.l.b16 %v24
  %v149 = vunpack.c.l.b16 %v25
  %v150 = vunpack.c.h.b16 %v25
  %v151 = vunpack.c.l.b16 %v26
  %v152 = vunpack.c.l.b16 %v27
  %v153 = vunpack.c.h.b16 %v27
  %v154 = vunpack.c.l.b16 %v28
  %v155 = vunpack.c.l.b16 %v29
  %v156 = vunpack.c.h.b16 %v29
  %v157 = vunpack.c.l.b16 %v30
  %v158 = vunpack.c.l.b16 %v31
  %v159 = vunpack.c.h.b16 %v31
  %v160 = vunpack.c.l.b16 %v32
  %v161 = vunpack.c.l.b16 %v33
  %v162 = vunpack.c.h.b16 %v33
  %v163 = vunpack.c.l.b16 %v34
  %v164 = vunpack.c.l.b16 %v35
  %v165 = vunpack.c.h.b16 %v35
  %v166 = vunpack.c.l.b16 %v36
  %v167 = vunpack.c.l.b16 %v37
  %v168 = vunpack.c.h.b16 %v37
  %v169 = vunpack.c.l.b16 %v38
  %v170 = vunpack.c.l.b16 %v39
  %v171 = vunpack.c.h.b16 %v39
  %v172 = vunpack.c.l.b16 %v40
  %v173 = vunpack.c.l.b16 %v41
  %v174 = vunpack.c.h.b16 %v41
  %v175 = vunpack.c.l.b16 %v42
  %v176 = vunpack.c.l.b16 %v43
  %v177 = vunpack.c.h.b16 %v43
  %v178 = vunpack.c.l.b16 %v44
  %v179 = vunpack.c.l.b16 %v45
  %v180 = vunpack.c.h.b16 %v45
  %v181 = vunpack.c.l.b16 %v46
  %v182 = vpack.c.b16 %v137, %v134
  %v183 = vpack.c.b16 %v138, %v135
  %v184 = vpack.c.b16 %v139, %v136
  %v185 = vpack.c.b16 %v143, %v140
  %v186 = vpack.c.b16 %v144, %v141
  %v187 = vpack.c.b16 %v145, %v142
  %v188 = vpack.c.b16 %v149, %v146
  %v189 = vpack.c.b16 %v150, %v147
  %v190 = vpack.c.b16 %v151, %v148
  %v191 = vpack.c.b16 %v155, %v152
  %v192 = vpack.c.b16 %v156, %v153
  %v193 = vpack.c.b16 %v157, %v154
  %v194 = vpack.c.b16 %v161, %v158
  %v195 = vpack.c.b16 %v162, %v159
  %v196 = vpack.c.b16 %v163, %v160
  %v197 = vpack.c.b16 %v167, %v164
  %v198 = vpack.c.b16 %v168, %v165
  %v199 = vpack.c.b16 %v169, %v166
  %v200 = vpack.c.b16 %v173, %v170
  %v201 = vpack.c.b16 %v174, %v171
  %v202 = vpack.c.b16 %v175, %v172
  %v203 = vpack.c.b16 %v179, %v176
  %v204 = vpack.c.b16 %v180, %v177
  %v205 = vpack.c.b16 %v181, %v178
  %v278 = vunpack.c.l.b16 %v47
  %v279 = vunpack.c.l.b16 %v48
  %v280 = vunpack.c.l.b16 %v49
  %v281 = vunpack.c.l.b16 %v50
  %v282 = vunpack.c.l.b16 %v51
  %v283 = vunpack.c.l.b16 %v52
  %v284 = vunpack.c.l.b16 %v53
  %v285 = vunpack.c.l.b16 %v54
  %v286 = vunpack.c.l.b16 %v55
  %v287 = vunpack.c.l.b16 %v56
  %v288 = vunpack.c.l.b16 %v57
  %v289 = vunpack.c.l.b16 %v58
  %v290 = vunpack.c.l.b16 %v59
  %v291 = vunpack.c.l.b16 %v60
  %v292 = vunpack.c.l.b16 %v61
  %v293 = vunpack.c.l.b16 %v62
  %v294 = vunpack.c.l.b16 %v63
  %v295 = vunpack.c.l.b16 %v64
  %v296 = vunpack.c.l.b16 %v65
  %v297 = vunpack.c.l.b16 %v66
  %v298 = vunpack.c.l.b16 %v67
  %v299 = vunpack.c.l.b16 %v68
  %v300 = vunpack.c.l.b16 %v69
  %v301 = vunpack.c.l.b16 %v70
  %v302 = vunpack.c.l.b16 %v71
  %v303 = vunpack.c.l.b16 %v72
  %v304 = vunpack.c.l.b16 %v73
  %v305 = vunpack.c.l.b16 %v74
  %v306 = vunpack.c.l.b16 %v75
  %v307 = vunpack.c.l.b16 %v76
  %v308 = vunpack.c.l.b16 %v77
  %v309 = vunpack.c.l.b16 %v78
  %v310 = vunpack.c.l.b16 %v79
  %v311 = vunpack.c.l.b16 %v80
  %v312 = vunpack.c.l.b16 %v81
  %v313 = vunpack.c.l.b16 %v82
  %v314 = vunpack.c.l.b16 %v83
  %v315 = vunpack.c.l.b16 %v84
  %v316 = vunpack.c.l.b16 %v85
  %v317 = vunpack.c.l.b16 %v86
  %v318 = vunpack.c.l.b16 %v87
  %v319 = vunpack.c.l.b16 %v88
  %v320 = vunpack.c.l.b16 %v89
  %v321 = vunpack.c.l.b16 %v90
  %v322 = vunpack.c.l.b16 %v91
  %v323 = vunpack.c.l.b16 %v92
  %v324 = vunpack.c.l.b16 %v93
  %v325 = vunpack.c.l.b16 %v94
  %v326 = vpack.c.b16 %v279, %v278
  %v327 = vpack.c.b16 %v281, %v280
  %v328 = vpack.c.b16 %v283, %v282
  %v329 = vpack.c.b16 %v285, %v284
  %v330 = vpack.c.b16 %v287, %v286
  %v331 = vpack.c.b16 %v289, %v288
  %v332 = vpack.c.b16 %v291, %v290
  %v333 = vpack.c.b16 %v293, %v292
  %v334 = vpack.c.b16 %v295, %v294
  %v335 = vpack.c.b16 %v297, %v296
  %v336 = vpack.c.b16 %v299, %v298
  %v337 = vpack.c.b16 %v301, %v300
  %v338 = vpack.c.b16 %v303, %v302
  %v339 = vpack.c.b16 %v305, %v304
  %v340 = vpack.c.b16 %v307, %v306
  %v341 = vpack.c.b16 %v309, %v308
  %v342 = vpack.c.b16 %v311, %v310
  %v343 = vpack.c.b16 %v313, %v312
  %v344 = vpack.c.b16 %v315, %v314
  %v345 = vpack.c.b16 %v317, %v316
  %v346 = vpack.c.b16 %v319, %v318
  %v347 = vpack.c.b16 %v321, %v320
  %v348 = vpack.c.b16 %v323, %v322
  %v349 = vpack.c.b16 %v325, %v324
  %374 = vmatprep.subr.bf16.mxu0 0
  %375 = vmatpush1.bf16.msra.mxu0 %v333
  %376 = vmatprep.subr.bf16.mxu0 0
  %377 = vmatpush1.bf16.msra.mxu0 %v332
  %378 = vmatprep.subr.bf16.mxu0 0
  %379 = vmatpush1.bf16.msra.mxu0 %v331
  %380 = vmatprep.subr.bf16.mxu0 0
  %381 = vmatpush1.bf16.msra.mxu0 %v330
  %382 = vmatprep.subr.bf16.mxu0 0
  %383 = vmatpush1.bf16.msra.mxu0 %v329
  %384 = vmatprep.subr.bf16.mxu0 0
  %385 = vmatpush1.bf16.msra.mxu0 %v328
  %386 = vmatprep.subr.bf16.mxu0 0
  %387 = vmatpush1.bf16.msra.mxu0 %v327
  %388 = vmatprep.subr.bf16.mxu0 0
  %389 = vmatpush1.bf16.msra.mxu0 %v326
  %390 = vmatprep.subr.bf16.mxu0 0
  %391 = vmatpush2.bf16.msra.mxu0 %v341
  %392 = vmatprep.subr.bf16.mxu0 0
  %393 = vmatpush2.bf16.msra.mxu0 %v340
  %394 = vmatprep.subr.bf16.mxu0 0
  %395 = vmatpush2.bf16.msra.mxu0 %v339
  %396 = vmatprep.subr.bf16.mxu0 0
  %397 = vmatpush2.bf16.msra.mxu0 %v338
  %398 = vmatprep.subr.bf16.mxu0 0
  %399 = vmatpush2.bf16.msra.mxu0 %v337
  %400 = vmatprep.subr.bf16.mxu0 0
  %401 = vmatpush2.bf16.msra.mxu0 %v336
  %402 = vmatprep.subr.bf16.mxu0 0
  %403 = vmatpush2.bf16.msra.mxu0 %v335
  %404 = vmatprep.subr.bf16.mxu0 0
  %405 = vmatpush2.bf16.msra.mxu0 %v334
  %406 = vmatprep.mubr.bf16.mxu0 %v183
  %407 = vmatmul.mubr.bf16.gmra.mxu0 %v182
  %v408 = vpop.f32.mrf.mxu0
  %v409 = vadd.f32 %v100, %v408
  %v410 = vpop.f32.mrf.mxu0
  %v411 = vpop.f32.mrf.mxu0
  %v412 = vadd.f32 %v100, %v411
  %v413 = vpop.f32.mrf.mxu0
  %414 = vmatprep.mubr.bf16.mxu0 %v186
  %415 = vmatmul.mubr.bf16.gmra.mxu0 %v185
  %v416 = vpop.f32.mrf.mxu0
  %v417 = vadd.f32 %v100, %v416
  %v418 = vpop.f32.mrf.mxu0
  %v419 = vpop.f32.mrf.mxu0
  %v420 = vadd.f32 %v100, %v419
  %v421 = vpop.f32.mrf.mxu0
  %422 = vmatprep.mubr.bf16.mxu0 %v189
  %423 = vmatmul.mubr.bf16.gmra.mxu0 %v188
  %v424 = vpop.f32.mrf.mxu0
  %v425 = vadd.f32 %v100, %v424
  %v426 = vpop.f32.mrf.mxu0
  %v427 = vpop.f32.mrf.mxu0
  %v428 = vadd.f32 %v100, %v427
  %v429 = vpop.f32.mrf.mxu0
  %430 = vmatprep.mubr.bf16.mxu0 %v192
  %431 = vmatmul.mubr.bf16.gmra.mxu0 %v191
  %v432 = vpop.f32.mrf.mxu0
  %v433 = vadd.f32 %v100, %v432
  %v434 = vpop.f32.mrf.mxu0
  %v435 = vpop.f32.mrf.mxu0
  %v436 = vadd.f32 %v100, %v435
  %v437 = vpop.f32.mrf.mxu0
  %438 = vmatprep.mubr.bf16.mxu0 %v195
  %439 = vmatmul.mubr.bf16.gmra.mxu0 %v194
  %v440 = vpop.f32.mrf.mxu0
  %v441 = vadd.f32 %v100, %v440
  %v442 = vpop.f32.mrf.mxu0
  %v443 = vpop.f32.mrf.mxu0
  %v444 = vadd.f32 %v100, %v443
  %v445 = vpop.f32.mrf.mxu0
  %446 = vmatprep.mubr.bf16.mxu0 %v198
  %447 = vmatmul.mubr.bf16.gmra.mxu0 %v197
  %v448 = vpop.f32.mrf.mxu0
  %v449 = vadd.f32 %v100, %v448
  %v450 = vpop.f32.mrf.mxu0
  %v451 = vpop.f32.mrf.mxu0
  %v452 = vadd.f32 %v100, %v451
  %v453 = vpop.f32.mrf.mxu0
  %454 = vmatprep.mubr.bf16.mxu0 %v201
  %455 = vmatmul.mubr.bf16.gmra.mxu0 %v200
  %v456 = vpop.f32.mrf.mxu0
  %v457 = vadd.f32 %v100, %v456
  %v458 = vpop.f32.mrf.mxu0
  %v459 = vpop.f32.mrf.mxu0
  %v460 = vadd.f32 %v100, %v459
  %v461 = vpop.f32.mrf.mxu0
  %462 = vmatprep.mubr.bf16.mxu0 %v204
  %463 = vmatmul.mubr.bf16.gmra.mxu0 %v203
  %v464 = vpop.f32.mrf.mxu0
  %v465 = vadd.f32 %v100, %v464
  %v466 = vpop.f32.mrf.mxu0
  %v467 = vpop.f32.mrf.mxu0
  %v468 = vadd.f32 %v100, %v467
  %v469 = vpop.f32.mrf.mxu0
  %470 = vdwg.mxu0
  %471 = vmatprep.subr.bf16.mxu0 0
  %472 = vmatpush1.bf16.msra.mxu0 %v349
  %473 = vmatprep.subr.bf16.mxu0 0
  %474 = vmatpush1.bf16.msra.mxu0 %v348
  %475 = vmatprep.subr.bf16.mxu0 0
  %476 = vmatpush1.bf16.msra.mxu0 %v347
  %477 = vmatprep.subr.bf16.mxu0 0
  %478 = vmatpush1.bf16.msra.mxu0 %v346
  %479 = vmatprep.subr.bf16.mxu0 0
  %480 = vmatpush1.bf16.msra.mxu0 %v345
  %481 = vmatprep.subr.bf16.mxu0 0
  %482 = vmatpush1.bf16.msra.mxu0 %v344
  %483 = vmatprep.subr.bf16.mxu0 0
  %484 = vmatpush1.bf16.msra.mxu0 %v343
  %485 = vmatprep.subr.bf16.mxu0 0
  %486 = vmatpush1.bf16.msra.mxu0 %v342
  %487 = vmatprep.subr.bf16.mxu0 0
  %488 = vmatpush2.bf16.msra.mxu0 0
  %489 = vmatprep.subr.bf16.mxu0 0
  %490 = vmatpush2.bf16.msra.mxu0 0
  %491 = vmatprep.subr.bf16.mxu0 0
  %492 = vmatpush2.bf16.msra.mxu0 0
  %493 = vmatprep.subr.bf16.mxu0 0
  %494 = vmatpush2.bf16.msra.mxu0 0
  %495 = vmatprep.subr.bf16.mxu0 0
  %496 = vmatpush2.bf16.msra.mxu0 0
  %497 = vmatprep.subr.bf16.mxu0 0
  %498 = vmatpush2.bf16.msra.mxu0 0
  %499 = vmatprep.subr.bf16.mxu0 0
  %500 = vmatpush2.bf16.msra.mxu0 0
  %501 = vmatprep.subr.bf16.mxu0 0
  %502 = vmatpush2.bf16.msra.mxu0 0
  %503 = vmatprep.mubr.bf16.mxu0 0
  %504 = vmatmul.mubr.bf16.gmra.mxu0 %v184
  %v505 = vpop.f32.mrf.mxu0
  %v506 = vadd.f32 %v409, %v505
  %v507 = vpop.f32.mrf.mxu0
  %v508 = vpop.f32.mrf.mxu0
  %v509 = vadd.f32 %v412, %v508
  %v510 = vpop.f32.mrf.mxu0
  %511 = vmatprep.mubr.bf16.mxu0 0
  %512 = vmatmul.mubr.bf16.gmra.mxu0 %v187
  %v513 = vpop.f32.mrf.mxu0
  %v514 = vadd.f32 %v417, %v513
  %v515 = vpop.f32.mrf.mxu0
  %v516 = vpop.f32.mrf.mxu0
  %v517 = vadd.f32 %v420, %v516
  %v518 = vpop.f32.mrf.mxu0
  %519 = vmatprep.mubr.bf16.mxu0 0
  %520 = vmatmul.mubr.bf16.gmra.mxu0 %v190
  %v521 = vpop.f32.mrf.mxu0
  %v522 = vadd.f32 %v425, %v521
  %v523 = vpop.f32.mrf.mxu0
  %v524 = vpop.f32.mrf.mxu0
  %v525 = vadd.f32 %v428, %v524
  %v526 = vpop.f32.mrf.mxu0
  %527 = vmatprep.mubr.bf16.mxu0 0
  %528 = vmatmul.mubr.bf16.gmra.mxu0 %v193
  %v529 = vpop.f32.mrf.mxu0
  %v530 = vadd.f32 %v433, %v529
  %v531 = vpop.f32.mrf.mxu0
  %v532 = vpop.f32.mrf.mxu0
  %v533 = vadd.f32 %v436, %v532
  %v534 = vpop.f32.mrf.mxu0
  %535 = vmatprep.mubr.bf16.mxu0 0
  %536 = vmatmul.mubr.bf16.gmra.mxu0 %v196
  %v537 = vpop.f32.mrf.mxu0
  %v538 = vadd.f32 %v441, %v537
  %v539 = vpop.f32.mrf.mxu0
  %v540 = vpop.f32.mrf.mxu0
  %v541 = vadd.f32 %v444, %v540
  %v542 = vpop.f32.mrf.mxu0
  %543 = vmatprep.mubr.bf16.mxu0 0
  %544 = vmatmul.mubr.bf16.gmra.mxu0 %v199
  %v545 = vpop.f32.mrf.mxu0
  %v546 = vadd.f32 %v449, %v545
  %v547 = vpop.f32.mrf.mxu0
  %v548 = vpop.f32.mrf.mxu0
  %v549 = vadd.f32 %v452, %v548
  %v550 = vpop.f32.mrf.mxu0
  %551 = vmatprep.mubr.bf16.mxu0 0
  %552 = vmatmul.mubr.bf16.gmra.mxu0 %v202
  %v553 = vpop.f32.mrf.mxu0
  %v554 = vadd.f32 %v457, %v553
  %v555 = vpop.f32.mrf.mxu0
  %v556 = vpop.f32.mrf.mxu0
  %v557 = vadd.f32 %v460, %v556
  %v558 = vpop.f32.mrf.mxu0
  %559 = vmatprep.mubr.bf16.mxu0 0
  %560 = vmatmul.mubr.bf16.gmra.mxu0 %v205
  %v561 = vpop.f32.mrf.mxu0
  %v562 = vadd.f32 %v465, %v561
  %v563 = vpop.f32.mrf.mxu0
  %v564 = vpop.f32.mrf.mxu0
  %v565 = vadd.f32 %v468, %v564
  %v566 = vpop.f32.mrf.mxu0
  %567 = vdwg.mxu0
  %v568 = vmax.f32 %v506, 0.0
  %v569 = vmax.f32 %v509, 0.0
  %v570 = vmax.f32 %v514, 0.0
  %v571 = vmax.f32 %v517, 0.0
  %v572 = vmax.f32 %v522, 0.0
  %v573 = vmax.f32 %v525, 0.0
  %v574 = vmax.f32 %v530, 0.0
  %v575 = vmax.f32 %v533, 0.0
  %v576 = vmax.f32 %v538, 0.0
  %v577 = vmax.f32 %v541, 0.0
  %v578 = vmax.f32 %v546, 0.0
  %v579 = vmax.f32 %v549, 0.0
  %v580 = vmax.f32 %v554, 0.0
  %v581 = vmax.f32 %v557, 0.0
  %v582 = vmax.f32 %v562, 0.0
  %v583 = vmax.f32 %v565, 0.0
  %584 = vst [vmem:[%s3] sm:$0xff] %v568
  %585 = vst [vmem:[%s3 + $0x8] sm:$0xff] %v569
  %586 = vst [vmem:[%s3 + $0x10] sm:$0xff] %v570
  %587 = vst [vmem:[%s3 + $0x18] sm:$0xff] %v571
  %588 = vst [vmem:[%s3 + $0x20] sm:$0xff] %v572
  %589 = vst [vmem:[%s3 + $0x28] sm:$0xff] %v573
  %590 = vst [vmem:[%s3 + $0x30] sm:$0xff] %v574
  %591 = vst [vmem:[%s3 + $0x38] sm:$0xff] %v575
  %592 = vst [vmem:[%s3 + $0x40] sm:$0xff] %v576
  %593 = vst [vmem:[%s3 + $0x48] sm:$0xff] %v577
  %594 = vst [vmem:[%s3 + $0x50] sm:$0xff] %v578
  %595 = vst [vmem:[%s3 + $0x58] sm:$0xff] %v579
  %596 = vst [vmem:[%s3 + $0x60] sm:$0xff] %v580
  %597 = vst [vmem:[%s3 + $0x68] sm:$0xff] %v581
  %598 = vst [vmem:[%s3 + $0x70] sm:$0xff] %v582
  %599 = vst [vmem:[%s3 + $0x78] sm:$0xff] %v583
  // Predicated region
  $region14: #{guidance_forward.12} parent=0 // pred_check
    _
  $region15: #{guidance_forward.12} parent=0 // pred_check_branch
    %601 = sbr.rel (0) target = $region17
  $region16: #{guidance_forward.12} parent=0 // pred_region
    _
  $region17: #{guidance_forward.12} parent=0 // pred_fallthru
    _
  // Predicated region
  $region18: #{guidance_forward.12} parent=0 // pred_check
    _
  $region19: #{guidance_forward.12} parent=0 // pred_check_branch
    %603 = sbr.rel (0) target = $region21
  $region20: #{guidance_forward.12} parent=0 // pred_region
    _
  $region21: #{guidance_forward.12} parent=0 // pred_fallthru
    _

// kernel: guidance_forward.11
$region0: #{guidance_forward.11}
  #allocation0 [shape = 'u32[]', space=smem, size = 0x4, offset = 0x4, fixed_abs, tag = 'smem constant byte address 0x4 - core index']
  #allocation1 [shape = 'u32[144,128]{1,0:T(1,128)}', space=vmem, size = 0x12000, scoped, tag = 'internal scratch']
  %s0 = inlined_call_operand.vmem [shape: bf16[128,256], index: 0, kind: input, shape index: {}]
  %s1 = inlined_call_operand.vmem [shape: bf16[256,128], index: 1, kind: input, shape index: {}]
  %s2 = inlined_call_operand.vmem [shape: f32[1,128], index: 2, kind: input, shape index: {}]
  %s3 = inlined_call_operand.vmem [shape: f32[128,128], index: 3, kind: output, shape index: {}]
  %s4 = sld [smem:[#allocation0]]
  $region22: #{guidance_forward.11} parent=0
    _
  %s6 = ssub.s32 1, %s4
  %s7 = scalar_select 0, %s6, %s4
  // Predicated region
  $region2: #{guidance_forward.11} parent=0 // pred_check
    _
  $region3: #{guidance_forward.11} parent=0 // pred_check_branch
    %9 = sbr.rel (0) target = $region5
  $region4: #{guidance_forward.11} parent=0 // pred_region
    _
  $region5: #{guidance_forward.11} parent=0 // pred_fallthru
    _
  // Predicated region
  $region6: #{guidance_forward.11} parent=0 // pred_check
    _
  $region7: #{guidance_forward.11} parent=0 // pred_check_branch
    %11 = sbr.rel (0) target = $region9
  $region8: #{guidance_forward.11} parent=0 // pred_region
    _
  $region9: #{guidance_forward.11} parent=0 // pred_fallthru
    _
  // Predicated region
  $region10: #{guidance_forward.11} parent=0 // pred_check
    _
  $region11: #{guidance_forward.11} parent=0 // pred_check_branch
    %13 = sbr.rel (0) target = $region13
  $region12: #{guidance_forward.11} parent=0 // pred_region
    _
  $region13: #{guidance_forward.11} parent=0 // pred_fallthru
    _
  %v15 = vld [vmem:[%s0] sm:$0xff]
  %v16 = vld [vmem:[%s0 + $0x8] sm:$0xff]
  %v17 = vld [vmem:[%s0 + $0x10] sm:$0xff]
  %v18 = vld [vmem:[%s0 + $0x18] sm:$0xff]
  %v19 = vld [vmem:[%s0 + $0x20] sm:$0xff]
  %v20 = vld [vmem:[%s0 + $0x28] sm:$0xff]
  %v21 = vld [vmem:[%s0 + $0x30] sm:$0xff]
  %v22 = vld [vmem:[%s0 + $0x38] sm:$0xff]
  %v23 = vld [vmem:[%s0 + $0x40] sm:$0xff]
  %v24 = vld [vmem:[%s0 + $0x48] sm:$0xff]
  %v25 = vld [vmem:[%s0 + $0x50] sm:$0xff]
  %v26 = vld [vmem:[%s0 + $0x58] sm:$0xff]
  %v27 = vld [vmem:[%s0 + $0x60] sm:$0xff]
  %v28 = vld [vmem:[%s0 + $0x68] sm:$0xff]
  %v29 = vld [vmem:[%s0 + $0x70] sm:$0xff]
  %v30 = vld [vmem:[%s0 + $0x78] sm:$0xff]
  %v31 = vld [vmem:[%s1] sm:$0xf]
  %v32 = vld [vmem:[%s1 + $0x4] sm:$0xf]
  %v33 = vld [vmem:[%s1 + $0x8] sm:$0xf]
  %v34 = vld [vmem:[%s1 + $0xc] sm:$0xf]
  %v35 = vld [vmem:[%s1 + $0x10] sm:$0xf]
  %v36 = vld [vmem:[%s1 + $0x14] sm:$0xf]
  %v37 = vld [vmem:[%s1 + $0x18] sm:$0xf]
  %v38 = vld [vmem:[%s1 + $0x1c] sm:$0xf]
  %v39 = vld [vmem:[%s1 + $0x20] sm:$0xf]
  %v40 = vld [vmem:[%s1 + $0x24] sm:$0xf]
  %v41 = vld [vmem:[%s1 + $0x28] sm:$0xf]
  %v42 = vld [vmem:[%s1 + $0x2c] sm:$0xf]
  %v43 = vld [vmem:[%s1 + $0x30] sm:$0xf]
  %v44 = vld [vmem:[%s1 + $0x34] sm:$0xf]
  %v45 = vld [vmem:[%s1 + $0x38] sm:$0xf]
  %v46 = vld [vmem:[%s1 + $0x3c] sm:$0xf]
  %v47 = vld [vmem:[%s1 + $0x40] sm:$0xf]
  %v48 = vld [vmem:[%s1 + $0x44] sm:$0xf]
  %v49 = vld [vmem:[%s1 + $0x48] sm:$0xf]
  %v50 = vld [vmem:[%s1 + $0x4c] sm:$0xf]
  %v51 = vld [vmem:[%s1 + $0x50] sm:$0xf]
  %v52 = vld [vmem:[%s1 + $0x54] sm:$0xf]
  %v53 = vld [vmem:[%s1 + $0x58] sm:$0xf]
  %v54 = vld [vmem:[%s1 + $0x5c] sm:$0xf]
  %v55 = vld [vmem:[%s1 + $0x60] sm:$0xf]
  %v56 = vld [vmem:[%s1 + $0x64] sm:$0xf]
  %v57 = vld [vmem:[%s1 + $0x68] sm:$0xf]
  %v58 = vld [vmem:[%s1 + $0x6c] sm:$0xf]
  %v59 = vld [vmem:[%s1 + $0x70] sm:$0xf]
  %v60 = vld [vmem:[%s1 + $0x74] sm:$0xf]
  %v61 = vld [vmem:[%s1 + $0x78] sm:$0xf]
  %v62 = vld [vmem:[%s1 + $0x7c] sm:$0xf]
  %v63 = vld [vmem:[%s2] sm:$0x1]
  %v65 = vlaneseq
  %v66 = vshrl.u32 %v65, 7
  %v67 = vsub.s32 0, %v66
  %v68 = vrot.slane %v63, %v67
  %v86 = vunpack.c.l.b16 %v15
  %v87 = vunpack.c.h.b16 %v15
  %v88 = vunpack.c.l.b16 %v16
  %v89 = vunpack.c.h.b16 %v16
  %v90 = vunpack.c.l.b16 %v17
  %v91 = vunpack.c.h.b16 %v17
  %v92 = vunpack.c.l.b16 %v18
  %v93 = vunpack.c.h.b16 %v18
  %v94 = vunpack.c.l.b16 %v19
  %v95 = vunpack.c.h.b16 %v19
  %v96 = vunpack.c.l.b16 %v20
  %v97 = vunpack.c.h.b16 %v20
  %v98 = vunpack.c.l.b16 %v21
  %v99 = vunpack.c.h.b16 %v21
  %v100 = vunpack.c.l.b16 %v22
  %v101 = vunpack.c.h.b16 %v22
  %v102 = vunpack.c.l.b16 %v23
  %v103 = vunpack.c.h.b16 %v23
  %v104 = vunpack.c.l.b16 %v24
  %v105 = vunpack.c.h.b16 %v24
  %v106 = vunpack.c.l.b16 %v25
  %v107 = vunpack.c.h.b16 %v25
  %v108 = vunpack.c.l.b16 %v26
  %v109 = vunpack.c.h.b16 %v26
  %v110 = vunpack.c.l.b16 %v27
  %v111 = vunpack.c.h.b16 %v27
  %v112 = vunpack.c.l.b16 %v28
  %v113 = vunpack.c.h.b16 %v28
  %v114 = vunpack.c.l.b16 %v29
  %v115 = vunpack.c.h.b16 %v29
  %v116 = vunpack.c.l.b16 %v30
  %v117 = vunpack.c.h.b16 %v30
  %v118 = vpack.c.b16 %v88, %v86
  %v119 = vpack.c.b16 %v89, %v87
  %v120 = vpack.c.b16 %v92, %v90
  %v121 = vpack.c.b16 %v93, %v91
  %v122 = vpack.c.b16 %v96, %v94
  %v123 = vpack.c.b16 %v97, %v95
  %v124 = vpack.c.b16 %v100, %v98
  %v125 = vpack.c.b16 %v101, %v99
  %v126 = vpack.c.b16 %v104, %v102
  %v127 = vpack.c.b16 %v105, %v103
  %v128 = vpack.c.b16 %v108, %v106
  %v129 = vpack.c.b16 %v109, %v107
  %v130 = vpack.c.b16 %v112, %v110
  %v131 = vpack.c.b16 %v113, %v111
  %v132 = vpack.c.b16 %v116, %v114
  %v133 = vpack.c.b16 %v117, %v115
  %v182 = vunpack.c.l.b16 %v31
  %v183 = vunpack.c.l.b16 %v32
  %v184 = vunpack.c.l.b16 %v33
  %v185 = vunpack.c.l.b16 %v34
  %v186 = vunpack.c.l.b16 %v35
  %v187 = vunpack.c.l.b16 %v36
  %v188 = vunpack.c.l.b16 %v37
  %v189 = vunpack.c.l.b16 %v38
  %v190 = vunpack.c.l.b16 %v39
  %v191 = vunpack.c.l.b16 %v40
  %v192 = vunpack.c.l.b16 %v41
  %v193 = vunpack.c.l.b16 %v42
  %v194 = vunpack.c.l.b16 %v43
  %v195 = vunpack.c.l.b16 %v44
  %v196 = vunpack.c.l.b16 %v45
  %v197 = vunpack.c.l.b16 %v46
  %v198 = vunpack.c.l.b16 %v47
  %v199 = vunpack.c.l.b16 %v48
  %v200 = vunpack.c.l.b16 %v49
  %v201 = vunpack.c.l.b16 %v50
  %v202 = vunpack.c.l.b16 %v51
  %v203 = vunpack.c.l.b16 %v52
  %v204 = vunpack.c.l.b16 %v53
  %v205 = vunpack.c.l.b16 %v54
  %v206 = vunpack.c.l.b16 %v55
  %v207 = vunpack.c.l.b16 %v56
  %v208 = vunpack.c.l.b16 %v57
  %v209 = vunpack.c.l.b16 %v58
  %v210 = vunpack.c.l.b16 %v59
  %v211 = vunpack.c.l.b16 %v60
  %v212 = vunpack.c.l.b16 %v61
  %v213 = vunpack.c.l.b16 %v62
  %v214 = vpack.c.b16 %v183, %v182
  %v215 = vpack.c.b16 %v185, %v184
  %v216 = vpack.c.b16 %v187, %v186
  %v217 = vpack.c.b16 %v189, %v188
  %v218 = vpack.c.b16 %v191, %v190
  %v219 = vpack.c.b16 %v193, %v192
  %v220 = vpack.c.b16 %v195, %v194
  %v221 = vpack.c.b16 %v197, %v196
  %v222 = vpack.c.b16 %v199, %v198
  %v223 = vpack.c.b16 %v201, %v200
  %v224 = vpack.c.b16 %v203, %v202
  %v225 = vpack.c.b16 %v205, %v204
  %v226 = vpack.c.b16 %v207, %v206
  %v227 = vpack.c.b16 %v209, %v208
  %v228 = vpack.c.b16 %v211, %v210
  %v229 = vpack.c.b16 %v213, %v212
  %246 = vmatprep.subr.bf16.mxu0 0
  %247 = vmatpush1.bf16.msra.mxu0 %v221
  %248 = vmatprep.subr.bf16.mxu0 0
  %249 = vmatpush1.bf16.msra.mxu0 %v220
  %250 = vmatprep.subr.bf16.mxu0 0
  %251 = vmatpush1.bf16.msra.mxu0 %v219
  %252 = vmatprep.subr.bf16.mxu0 0
  %253 = vmatpush1.bf16.msra.mxu0 %v218
  %254 = vmatprep.subr.bf16.mxu0 0
  %255 = vmatpush1.bf16.msra.mxu0 %v217
  %256 = vmatprep.subr.bf16.mxu0 0
  %257 = vmatpush1.bf16.msra.mxu0 %v216
  %258 = vmatprep.subr.bf16.mxu0 0
  %259 = vmatpush1.bf16.msra.mxu0 %v215
  %260 = vmatprep.subr.bf16.mxu0 0
  %261 = vmatpush1.bf16.msra.mxu0 %v214
  %262 = vmatprep.subr.bf16.mxu0 0
  %263 = vmatpush2.bf16.msra.mxu0 %v229
  %264 = vmatprep.subr.bf16.mxu0 0
  %265 = vmatpush2.bf16.msra.mxu0 %v228
  %266 = vmatprep.subr.bf16.mxu0 0
  %267 = vmatpush2.bf16.msra.mxu0 %v227
  %268 = vmatprep.subr.bf16.mxu0 0
  %269 = vmatpush2.bf16.msra.mxu0 %v226
  %270 = vmatprep.subr.bf16.mxu0 0
  %271 = vmatpush2.bf16.msra.mxu0 %v225
  %272 = vmatprep.subr.bf16.mxu0 0
  %273 = vmatpush2.bf16.msra.mxu0 %v224
  %274 = vmatprep.subr.bf16.mxu0 0
  %275 = vmatpush2.bf16.msra.mxu0 %v223
  %276 = vmatprep.subr.bf16.mxu0 0
  %277 = vmatpush2.bf16.msra.mxu0 %v222
  %278 = vmatprep.mubr.bf16.mxu0 %v119
  %279 = vmatmul.mubr.bf16.gmra.mxu0 %v118
  %v280 = vpop.f32.mrf.mxu0
  %v281 = vadd.f32 %v68, %v280
  %v282 = vpop.f32.mrf.mxu0
  %v283 = vpop.f32.mrf.mxu0
  %v284 = vadd.f32 %v68, %v283
  %v285 = vpop.f32.mrf.mxu0
  %286 = vmatprep.mubr.bf16.mxu0 %v121
  %287 = vmatmul.mubr.bf16.gmra.mxu0 %v120
  %v288 = vpop.f32.mrf.mxu0
  %v289 = vadd.f32 %v68, %v288
  %v290 = vpop.f32.mrf.mxu0
  %v291 = vpop.f32.mrf.mxu0
  %v292 = vadd.f32 %v68, %v291
  %v293 = vpop.f32.mrf.mxu0
  %294 = vmatprep.mubr.bf16.mxu0 %v123
  %295 = vmatmul.mubr.bf16.gmra.mxu0 %v122
  %v296 = vpop.f32.mrf.mxu0
  %v297 = vadd.f32 %v68, %v296
  %v298 = vpop.f32.mrf.mxu0
  %v299 = vpop.f32.mrf.mxu0
  %v300 = vadd.f32 %v68, %v299
  %v301 = vpop.f32.mrf.mxu0
  %302 = vmatprep.mubr.bf16.mxu0 %v125
  %303 = vmatmul.mubr.bf16.gmra.mxu0 %v124
  %v304 = vpop.f32.mrf.mxu0
  %v305 = vadd.f32 %v68, %v304
  %v306 = vpop.f32.mrf.mxu0
  %v307 = vpop.f32.mrf.mxu0
  %v308 = vadd.f32 %v68, %v307
  %v309 = vpop.f32.mrf.mxu0
  %310 = vmatprep.mubr.bf16.mxu0 %v127
  %311 = vmatmul.mubr.bf16.gmra.mxu0 %v126
  %v312 = vpop.f32.mrf.mxu0
  %v313 = vadd.f32 %v68, %v312
  %v314 = vpop.f32.mrf.mxu0
  %v315 = vpop.f32.mrf.mxu0
  %v316 = vadd.f32 %v68, %v315
  %v317 = vpop.f32.mrf.mxu0
  %318 = vmatprep.mubr.bf16.mxu0 %v129
  %319 = vmatmul.mubr.bf16.gmra.mxu0 %v128
  %v320 = vpop.f32.mrf.mxu0
  %v321 = vadd.f32 %v68, %v320
  %v322 = vpop.f32.mrf.mxu0
  %v323 = vpop.f32.mrf.mxu0
  %v324 = vadd.f32 %v68, %v323
  %v325 = vpop.f32.mrf.mxu0
  %326 = vmatprep.mubr.bf16.mxu0 %v131
  %327 = vmatmul.mubr.bf16.gmra.mxu0 %v130
  %v328 = vpop.f32.mrf.mxu0
  %v329 = vadd.f32 %v68, %v328
  %v330 = vpop.f32.mrf.mxu0
  %v331 = vpop.f32.mrf.mxu0
  %v332 = vadd.f32 %v68, %v331
  %v333 = vpop.f32.mrf.mxu0
  %334 = vmatprep.mubr.bf16.mxu0 %v133
  %335 = vmatmul.mubr.bf16.gmra.mxu0 %v132
  %v336 = vpop.f32.mrf.mxu0
  %v337 = vadd.f32 %v68, %v336
  %v338 = vpop.f32.mrf.mxu0
  %v339 = vpop.f32.mrf.mxu0
  %v340 = vadd.f32 %v68, %v339
  %v341 = vpop.f32.mrf.mxu0
  %342 = vdwg.mxu0
  %v343 = vmax.f32 %v281, 0.0
  %v344 = vmax.f32 %v284, 0.0
  %v345 = vmax.f32 %v289, 0.0
  %v346 = vmax.f32 %v292, 0.0
  %v347 = vmax.f32 %v297, 0.0
  %v348 = vmax.f32 %v300, 0.0
  %v349 = vmax.f32 %v305, 0.0
  %v350 = vmax.f32 %v308, 0.0
  %v351 = vmax.f32 %v313, 0.0
  %v352 = vmax.f32 %v316, 0.0
  %v353 = vmax.f32 %v321, 0.0
  %v354 = vmax.f32 %v324, 0.0
  %v355 = vmax.f32 %v329, 0.0
  %v356 = vmax.f32 %v332, 0.0
  %v357 = vmax.f32 %v337, 0.0
  %v358 = vmax.f32 %v340, 0.0
  %359 = vst [vmem:[%s3] sm:$0xff] %v343
  %360 = vst [vmem:[%s3 + $0x8] sm:$0xff] %v344
  %361 = vst [vmem:[%s3 + $0x10] sm:$0xff] %v345
  %362 = vst [vmem:[%s3 + $0x18] sm:$0xff] %v346
  %363 = vst [vmem:[%s3 + $0x20] sm:$0xff] %v347
  %364 = vst [vmem:[%s3 + $0x28] sm:$0xff] %v348
  %365 = vst [vmem:[%s3 + $0x30] sm:$0xff] %v349
  %366 = vst [vmem:[%s3 + $0x38] sm:$0xff] %v350
  %367 = vst [vmem:[%s3 + $0x40] sm:$0xff] %v351
  %368 = vst [vmem:[%s3 + $0x48] sm:$0xff] %v352
  %369 = vst [vmem:[%s3 + $0x50] sm:$0xff] %v353
  %370 = vst [vmem:[%s3 + $0x58] sm:$0xff] %v354
  %371 = vst [vmem:[%s3 + $0x60] sm:$0xff] %v355
  %372 = vst [vmem:[%s3 + $0x68] sm:$0xff] %v356
  %373 = vst [vmem:[%s3 + $0x70] sm:$0xff] %v357
  %374 = vst [vmem:[%s3 + $0x78] sm:$0xff] %v358
  // Predicated region
  $region14: #{guidance_forward.11} parent=0 // pred_check
    _
  $region15: #{guidance_forward.11} parent=0 // pred_check_branch
    %376 = sbr.rel (0) target = $region17
  $region16: #{guidance_forward.11} parent=0 // pred_region
    _
  $region17: #{guidance_forward.11} parent=0 // pred_fallthru
    _
  // Predicated region
  $region18: #{guidance_forward.11} parent=0 // pred_check
    _
  $region19: #{guidance_forward.11} parent=0 // pred_check_branch
    %378 = sbr.rel (0) target = $region21
  $region20: #{guidance_forward.11} parent=0 // pred_region
    _
  $region21: #{guidance_forward.11} parent=0 // pred_fallthru
    _

// kernel: guidance_forward.13
$region0: #{guidance_forward.13}
  #allocation0 [shape = 'u32[]', space=smem, size = 0x4, offset = 0x4, fixed_abs, tag = 'smem constant byte address 0x4 - core index']
  #allocation1 [shape = 'u32[144,128]{1,0:T(1,128)}', space=vmem, size = 0x12000, scoped, tag = 'internal scratch']
  %s0 = inlined_call_operand.vmem [shape: bf16[128,384], index: 0, kind: input, shape index: {}]
  %s1 = inlined_call_operand.vmem [shape: bf16[384,128], index: 1, kind: input, shape index: {}]
  %s2 = inlined_call_operand.vmem [shape: f32[1,128], index: 2, kind: input, shape index: {}]
  %s3 = inlined_call_operand.vmem [shape: f32[128,128], index: 3, kind: input, shape index: {}]
  %s4 = inlined_call_operand.vmem [shape: f32[128,128], index: 4, kind: output, shape index: {}]
  %s5 = sld [smem:[#allocation0]]
  $region26: #{guidance_forward.13} parent=0
    _
  %s7 = ssub.s32 1, %s5
  %s8 = scalar_select 0, %s7, %s5
  // Predicated region
  $region2: #{guidance_forward.13} parent=0 // pred_check
    _
  $region3: #{guidance_forward.13} parent=0 // pred_check_branch
    %10 = sbr.rel (0) target = $region5
  $region4: #{guidance_forward.13} parent=0 // pred_region
    _
  $region5: #{guidance_forward.13} parent=0 // pred_fallthru
    _
  // Predicated region
  $region6: #{guidance_forward.13} parent=0 // pred_check
    _
  $region7: #{guidance_forward.13} parent=0 // pred_check_branch
    %12 = sbr.rel (0) target = $region9
  $region8: #{guidance_forward.13} parent=0 // pred_region
    _
  $region9: #{guidance_forward.13} parent=0 // pred_fallthru
    _
  // Predicated region
  $region10: #{guidance_forward.13} parent=0 // pred_check
    _
  $region11: #{guidance_forward.13} parent=0 // pred_check_branch
    %14 = sbr.rel (0) target = $region13
  $region12: #{guidance_forward.13} parent=0 // pred_region
    _
  $region13: #{guidance_forward.13} parent=0 // pred_fallthru
    _
  // Predicated region
  $region14: #{guidance_forward.13} parent=0 // pred_check
    _
  $region15: #{guidance_forward.13} parent=0 // pred_check_branch
    %16 = sbr.rel (0) target = $region17
  $region16: #{guidance_forward.13} parent=0 // pred_region
    _
  $region17: #{guidance_forward.13} parent=0 // pred_fallthru
    _
  %v18 = vld [vmem:[%s0] sm:$0xff]
  %v19 = vld [vmem:[%s0 + $0x8] sm:$0xf]
  %v20 = vld [vmem:[%s0 + $0xc] sm:$0xff]
  %v21 = vld [vmem:[%s0 + $0x14] sm:$0xf]
  %v22 = vld [vmem:[%s0 + $0x18] sm:$0xff]
  %v23 = vld [vmem:[%s0 + $0x20] sm:$0xf]
  %v24 = vld [vmem:[%s0 + $0x24] sm:$0xff]
  %v25 = vld [vmem:[%s0 + $0x2c] sm:$0xf]
  %v26 = vld [vmem:[%s0 + $0x30] sm:$0xff]
  %v27 = vld [vmem:[%s0 + $0x38] sm:$0xf]
  %v28 = vld [vmem:[%s0 + $0x3c] sm:$0xff]
  %v29 = vld [vmem:[%s0 + $0x44] sm:$0xf]
  %v30 = vld [vmem:[%s0 + $0x48] sm:$0xff]
  %v31 = vld [vmem:[%s0 + $0x50] sm:$0xf]
  %v32 = vld [vmem:[%s0 + $0x54] sm:$0xff]
  %v33 = vld [vmem:[%s0 + $0x5c] sm:$0xf]
  %v34 = vld [vmem:[%s0 + $0x60] sm:$0xff]
  %v35 = vld [vmem:[%s0 + $0x68] sm:$0xf]
  %v36 = vld [vmem:[%s0 + $0x6c] sm:$0xff]
  %v37 = vld [vmem:[%s0 + $0x74] sm:$0xf]
  %v38 = vld [vmem:[%s0 + $0x78] sm:$0xff]
  %v39 = vld [vmem:[%s0 + $0x80] sm:$0xf]
  %v40 = vld [vmem:[%s0 + $0x84] sm:$0xff]
  %v41 = vld [vmem:[%s0 + $0x8c] sm:$0xf]
  %v42 = vld [vmem:[%s0 + $0x90] sm:$0xff]
  %v43 = vld [vmem:[%s0 + $0x98] sm:$0xf]
  %v44 = vld [vmem:[%s0 + $0x9c] sm:$0xff]
  %v45 = vld [vmem:[%s0 + $0xa4] sm:$0xf]
  %v46 = vld [vmem:[%s0 + $0xa8] sm:$0xff]
  %v47 = vld [vmem:[%s0 + $0xb0] sm:$0xf]
  %v48 = vld [vmem:[%s0 + $0xb4] sm:$0xff]
  %v49 = vld [vmem:[%s0 + $0xbc] sm:$0xf]
  %v50 = vld [vmem:[%s1] sm:$0xf]
  %v51 = vld [vmem:[%s1 + $0x4] sm:$0xf]
  %v52 = vld [vmem:[%s1 + $0x8] sm:$0xf]
  %v53 = vld [vmem:[%s1 + $0xc] sm:$0xf]
  %v54 = vld [vmem:[%s1 + $0x10] sm:$0xf]
  %v55 = vld [vmem:[%s1 + $0x14] sm:$0xf]
  %v56 = vld [vmem:[%s1 + $0x18] sm:$0xf]
  %v57 = vld [vmem:[%s1 + $0x1c] sm:$0xf]
  %v58 = vld [vmem:[%s1 + $0x20] sm:$0xf]
  %v59 = vld [vmem:[%s1 + $0x24] sm:$0xf]
  %v60 = vld [vmem:[%s1 + $0x28] sm:$0xf]
  %v61 = vld [vmem:[%s1 + $0x2c] sm:$0xf]
  %v62 = vld [vmem:[%s1 + $0x30] sm:$0xf]
  %v63 = vld [vmem:[%s1 + $0x34] sm:$0xf]
  %v64 = vld [vmem:[%s1 + $0x38] sm:$0xf]
  %v65 = vld [vmem:[%s1 + $0x3c] sm:$0xf]
  %v66 = vld [vmem:[%s1 + $0x40] sm:$0xf]
  %v67 = vld [vmem:[%s1 + $0x44] sm:$0xf]
  %v68 = vld [vmem:[%s1 + $0x48] sm:$0xf]
  %v69 = vld [vmem:[%s1 + $0x4c] sm:$0xf]
  %v70 = vld [vmem:[%s1 + $0x50] sm:$0xf]
  %v71 = vld [vmem:[%s1 + $0x54] sm:$0xf]
  %v72 = vld [vmem:[%s1 + $0x58] sm:$0xf]
  %v73 = vld [vmem:[%s1 + $0x5c] sm:$0xf]
  %v74 = vld [vmem:[%s1 + $0x60] sm:$0xf]
  %v75 = vld [vmem:[%s1 + $0x64] sm:$0xf]
  %v76 = vld [vmem:[%s1 + $0x68] sm:$0xf]
  %v77 = vld [vmem:[%s1 + $0x6c] sm:$0xf]
  %v78 = vld [vmem:[%s1 + $0x70] sm:$0xf]
  %v79 = vld [vmem:[%s1 + $0x74] sm:$0xf]
  %v80 = vld [vmem:[%s1 + $0x78] sm:$0xf]
  %v81 = vld [vmem:[%s1 + $0x7c] sm:$0xf]
  %v82 = vld [vmem:[%s1 + $0x80] sm:$0xf]
  %v83 = vld [vmem:[%s1 + $0x84] sm:$0xf]
  %v84 = vld [vmem:[%s1 + $0x88] sm:$0xf]
  %v85 = vld [vmem:[%s1 + $0x8c] sm:$0xf]
  %v86 = vld [vmem:[%s1 + $0x90] sm:$0xf]
  %v87 = vld [vmem:[%s1 + $0x94] sm:$0xf]
  %v88 = vld [vmem:[%s1 + $0x98] sm:$0xf]
  %v89 = vld [vmem:[%s1 + $0x9c] sm:$0xf]
  %v90 = vld [vmem:[%s1 + $0xa0] sm:$0xf]
  %v91 = vld [vmem:[%s1 + $0xa4] sm:$0xf]
  %v92 = vld [vmem:[%s1 + $0xa8] sm:$0xf]
  %v93 = vld [vmem:[%s1 + $0xac] sm:$0xf]
  %v94 = vld [vmem:[%s1 + $0xb0] sm:$0xf]
  %v95 = vld [vmem:[%s1 + $0xb4] sm:$0xf]
  %v96 = vld [vmem:[%s1 + $0xb8] sm:$0xf]
  %v97 = vld [vmem:[%s1 + $0xbc] sm:$0xf]
  %v98 = vld [vmem:[%s2] sm:$0x1]
  %v100 = vlaneseq
  %v101 = vshrl.u32 %v100, 7
  %v102 = vsub.s32 0, %v101
  %v103 = vrot.slane %v98, %v102
  %v137 = vunpack.c.l.b16 %v18
  %v138 = vunpack.c.h.b16 %v18
  %v139 = vunpack.c.l.b16 %v19
  %v140 = vunpack.c.l.b16 %v20
  %v141 = vunpack.c.h.b16 %v20
  %v142 = vunpack.c.l.b16 %v21
  %v143 = vunpack.c.l.b16 %v22
  %v144 = vunpack.c.h.b16 %v22
  %v145 = vunpack.c.l.b16 %v23
  %v146 = vunpack.c.l.b16 %v24
  %v147 = vunpack.c.h.b16 %v24
  %v148 = vunpack.c.l.b16 %v25
  %v149 = vunpack.c.l.b16 %v26
  %v150 = vunpack.c.h.b16 %v26
  %v151 = vunpack.c.l.b16 %v27
  %v152 = vunpack.c.l.b16 %v28
  %v153 = vunpack.c.h.b16 %v28
  %v154 = vunpack.c.l.b16 %v29
  %v155 = vunpack.c.l.b16 %v30
  %v156 = vunpack.c.h.b16 %v30
  %v157 = vunpack.c.l.b16 %v31
  %v158 = vunpack.c.l.b16 %v32
  %v159 = vunpack.c.h.b16 %v32
  %v160 = vunpack.c.l.b16 %v33
  %v161 = vunpack.c.l.b16 %v34
  %v162 = vunpack.c.h.b16 %v34
  %v163 = vunpack.c.l.b16 %v35
  %v164 = vunpack.c.l.b16 %v36
  %v165 = vunpack.c.h.b16 %v36
  %v166 = vunpack.c.l.b16 %v37
  %v167 = vunpack.c.l.b16 %v38
  %v168 = vunpack.c.h.b16 %v38
  %v169 = vunpack.c.l.b16 %v39
  %v170 = vunpack.c.l.b16 %v40
  %v171 = vunpack.c.h.b16 %v40
  %v172 = vunpack.c.l.b16 %v41
  %v173 = vunpack.c.l.b16 %v42
  %v174 = vunpack.c.h.b16 %v42
  %v175 = vunpack.c.l.b16 %v43
  %v176 = vunpack.c.l.b16 %v44
  %v177 = vunpack.c.h.b16 %v44
  %v178 = vunpack.c.l.b16 %v45
  %v179 = vunpack.c.l.b16 %v46
  %v180 = vunpack.c.h.b16 %v46
  %v181 = vunpack.c.l.b16 %v47
  %v182 = vunpack.c.l.b16 %v48
  %v183 = vunpack.c.h.b16 %v48
  %v184 = vunpack.c.l.b16 %v49
  %v185 = vpack.c.b16 %v140, %v137
  %v186 = vpack.c.b16 %v141, %v138
  %v187 = vpack.c.b16 %v142, %v139
  %v188 = vpack.c.b16 %v146, %v143
  %v189 = vpack.c.b16 %v147, %v144
  %v190 = vpack.c.b16 %v148, %v145
  %v191 = vpack.c.b16 %v152, %v149
  %v192 = vpack.c.b16 %v153, %v150
  %v193 = vpack.c.b16 %v154, %v151
  %v194 = vpack.c.b16 %v158, %v155
  %v195 = vpack.c.b16 %v159, %v156
  %v196 = vpack.c.b16 %v160, %v157
  %v197 = vpack.c.b16 %v164, %v161
  %v198 = vpack.c.b16 %v165, %v162
  %v199 = vpack.c.b16 %v166, %v163
  %v200 = vpack.c.b16 %v170, %v167
  %v201 = vpack.c.b16 %v171, %v168
  %v202 = vpack.c.b16 %v172, %v169
  %v203 = vpack.c.b16 %v176, %v173
  %v204 = vpack.c.b16 %v177, %v174
  %v205 = vpack.c.b16 %v178, %v175
  %v206 = vpack.c.b16 %v182, %v179
  %v207 = vpack.c.b16 %v183, %v180
  %v208 = vpack.c.b16 %v184, %v181
  %v281 = vunpack.c.l.b16 %v50
  %v282 = vunpack.c.l.b16 %v51
  %v283 = vunpack.c.l.b16 %v52
  %v284 = vunpack.c.l.b16 %v53
  %v285 = vunpack.c.l.b16 %v54
  %v286 = vunpack.c.l.b16 %v55
  %v287 = vunpack.c.l.b16 %v56
  %v288 = vunpack.c.l.b16 %v57
  %v289 = vunpack.c.l.b16 %v58
  %v290 = vunpack.c.l.b16 %v59
  %v291 = vunpack.c.l.b16 %v60
  %v292 = vunpack.c.l.b16 %v61
  %v293 = vunpack.c.l.b16 %v62
  %v294 = vunpack.c.l.b16 %v63
  %v295 = vunpack.c.l.b16 %v64
  %v296 = vunpack.c.l.b16 %v65
  %v297 = vunpack.c.l.b16 %v66
  %v298 = vunpack.c.l.b16 %v67
  %v299 = vunpack.c.l.b16 %v68
  %v300 = vunpack.c.l.b16 %v69
  %v301 = vunpack.c.l.b16 %v70
  %v302 = vunpack.c.l.b16 %v71
  %v303 = vunpack.c.l.b16 %v72
  %v304 = vunpack.c.l.b16 %v73
  %v305 = vunpack.c.l.b16 %v74
  %v306 = vunpack.c.l.b16 %v75
  %v307 = vunpack.c.l.b16 %v76
  %v308 = vunpack.c.l.b16 %v77
  %v309 = vunpack.c.l.b16 %v78
  %v310 = vunpack.c.l.b16 %v79
  %v311 = vunpack.c.l.b16 %v80
  %v312 = vunpack.c.l.b16 %v81
  %v313 = vunpack.c.l.b16 %v82
  %v314 = vunpack.c.l.b16 %v83
  %v315 = vunpack.c.l.b16 %v84
  %v316 = vunpack.c.l.b16 %v85
  %v317 = vunpack.c.l.b16 %v86
  %v318 = vunpack.c.l.b16 %v87
  %v319 = vunpack.c.l.b16 %v88
  %v320 = vunpack.c.l.b16 %v89
  %v321 = vunpack.c.l.b16 %v90
  %v322 = vunpack.c.l.b16 %v91
  %v323 = vunpack.c.l.b16 %v92
  %v324 = vunpack.c.l.b16 %v93
  %v325 = vunpack.c.l.b16 %v94
  %v326 = vunpack.c.l.b16 %v95
  %v327 = vunpack.c.l.b16 %v96
  %v328 = vunpack.c.l.b16 %v97
  %v329 = vpack.c.b16 %v282, %v281
  %v330 = vpack.c.b16 %v284, %v283
  %v331 = vpack.c.b16 %v286, %v285
  %v332 = vpack.c.b16 %v288, %v287
  %v333 = vpack.c.b16 %v290, %v289
  %v334 = vpack.c.b16 %v292, %v291
  %v335 = vpack.c.b16 %v294, %v293
  %v336 = vpack.c.b16 %v296, %v295
  %v337 = vpack.c.b16 %v298, %v297
  %v338 = vpack.c.b16 %v300, %v299
  %v339 = vpack.c.b16 %v302, %v301
  %v340 = vpack.c.b16 %v304, %v303
  %v341 = vpack.c.b16 %v306, %v305
  %v342 = vpack.c.b16 %v308, %v307
  %v343 = vpack.c.b16 %v310, %v309
  %v344 = vpack.c.b16 %v312, %v311
  %v345 = vpack.c.b16 %v314, %v313
  %v346 = vpack.c.b16 %v316, %v315
  %v347 = vpack.c.b16 %v318, %v317
  %v348 = vpack.c.b16 %v320, %v319
  %v349 = vpack.c.b16 %v322, %v321
  %v350 = vpack.c.b16 %v324, %v323
  %v351 = vpack.c.b16 %v326, %v325
  %v352 = vpack.c.b16 %v328, %v327
  %377 = vmatprep.subr.bf16.mxu0 0
  %378 = vmatpush1.bf16.msra.mxu0 %v336
  %379 = vmatprep.subr.bf16.mxu0 0
  %380 = vmatpush1.bf16.msra.mxu0 %v335
  %381 = vmatprep.subr.bf16.mxu0 0
  %382 = vmatpush1.bf16.msra.mxu0 %v334
  %383 = vmatprep.subr.bf16.mxu0 0
  %384 = vmatpush1.bf16.msra.mxu0 %v333
  %385 = vmatprep.subr.bf16.mxu0 0
  %386 = vmatpush1.bf16.msra.mxu0 %v332
  %387 = vmatprep.subr.bf16.mxu0 0
  %388 = vmatpush1.bf16.msra.mxu0 %v331
  %389 = vmatprep.subr.bf16.mxu0 0
  %390 = vmatpush1.bf16.msra.mxu0 %v330
  %391 = vmatprep.subr.bf16.mxu0 0
  %392 = vmatpush1.bf16.msra.mxu0 %v329
  %393 = vmatprep.subr.bf16.mxu0 0
  %394 = vmatpush2.bf16.msra.mxu0 %v344
  %395 = vmatprep.subr.bf16.mxu0 0
  %396 = vmatpush2.bf16.msra.mxu0 %v343
  %397 = vmatprep.subr.bf16.mxu0 0
  %398 = vmatpush2.bf16.msra.mxu0 %v342
  %399 = vmatprep.subr.bf16.mxu0 0
  %400 = vmatpush2.bf16.msra.mxu0 %v341
  %401 = vmatprep.subr.bf16.mxu0 0
  %402 = vmatpush2.bf16.msra.mxu0 %v340
  %403 = vmatprep.subr.bf16.mxu0 0
  %404 = vmatpush2.bf16.msra.mxu0 %v339
  %405 = vmatprep.subr.bf16.mxu0 0
  %406 = vmatpush2.bf16.msra.mxu0 %v338
  %407 = vmatprep.subr.bf16.mxu0 0
  %408 = vmatpush2.bf16.msra.mxu0 %v337
  %409 = vmatprep.mubr.bf16.mxu0 %v186
  %410 = vmatmul.mubr.bf16.gmra.mxu0 %v185
  %v411 = vpop.f32.mrf.mxu0
  %v412 = vadd.f32 %v103, %v411
  %v413 = vpop.f32.mrf.mxu0
  %v414 = vpop.f32.mrf.mxu0
  %v415 = vadd.f32 %v103, %v414
  %v416 = vpop.f32.mrf.mxu0
  %417 = vmatprep.mubr.bf16.mxu0 %v189
  %418 = vmatmul.mubr.bf16.gmra.mxu0 %v188
  %v419 = vpop.f32.mrf.mxu0
  %v420 = vadd.f32 %v103, %v419
  %v421 = vpop.f32.mrf.mxu0
  %v422 = vpop.f32.mrf.mxu0
  %v423 = vadd.f32 %v103, %v422
  %v424 = vpop.f32.mrf.mxu0
  %425 = vmatprep.mubr.bf16.mxu0 %v192
  %426 = vmatmul.mubr.bf16.gmra.mxu0 %v191
  %v427 = vpop.f32.mrf.mxu0
  %v428 = vadd.f32 %v103, %v427
  %v429 = vpop.f32.mrf.mxu0
  %v430 = vpop.f32.mrf.mxu0
  %v431 = vadd.f32 %v103, %v430
  %v432 = vpop.f32.mrf.mxu0
  %433 = vmatprep.mubr.bf16.mxu0 %v195
  %434 = vmatmul.mubr.bf16.gmra.mxu0 %v194
  %v435 = vpop.f32.mrf.mxu0
  %v436 = vadd.f32 %v103, %v435
  %v437 = vpop.f32.mrf.mxu0
  %v438 = vpop.f32.mrf.mxu0
  %v439 = vadd.f32 %v103, %v438
  %v440 = vpop.f32.mrf.mxu0
  %441 = vmatprep.mubr.bf16.mxu0 %v198
  %442 = vmatmul.mubr.bf16.gmra.mxu0 %v197
  %v443 = vpop.f32.mrf.mxu0
  %v444 = vadd.f32 %v103, %v443
  %v445 = vpop.f32.mrf.mxu0
  %v446 = vpop.f32.mrf.mxu0
  %v447 = vadd.f32 %v103, %v446
  %v448 = vpop.f32.mrf.mxu0
  %449 = vmatprep.mubr.bf16.mxu0 %v201
  %450 = vmatmul.mubr.bf16.gmra.mxu0 %v200
  %v451 = vpop.f32.mrf.mxu0
  %v452 = vadd.f32 %v103, %v451
  %v453 = vpop.f32.mrf.mxu0
  %v454 = vpop.f32.mrf.mxu0
  %v455 = vadd.f32 %v103, %v454
  %v456 = vpop.f32.mrf.mxu0
  %457 = vmatprep.mubr.bf16.mxu0 %v204
  %458 = vmatmul.mubr.bf16.gmra.mxu0 %v203
  %v459 = vpop.f32.mrf.mxu0
  %v460 = vadd.f32 %v103, %v459
  %v461 = vpop.f32.mrf.mxu0
  %v462 = vpop.f32.mrf.mxu0
  %v463 = vadd.f32 %v103, %v462
  %v464 = vpop.f32.mrf.mxu0
  %465 = vmatprep.mubr.bf16.mxu0 %v207
  %466 = vmatmul.mubr.bf16.gmra.mxu0 %v206
  %v467 = vpop.f32.mrf.mxu0
  %v468 = vadd.f32 %v103, %v467
  %v469 = vpop.f32.mrf.mxu0
  %v470 = vpop.f32.mrf.mxu0
  %v471 = vadd.f32 %v103, %v470
  %v472 = vpop.f32.mrf.mxu0
  %473 = vdwg.mxu0
  %474 = vmatprep.subr.bf16.mxu0 0
  %475 = vmatpush1.bf16.msra.mxu0 %v352
  %476 = vmatprep.subr.bf16.mxu0 0
  %477 = vmatpush1.bf16.msra.mxu0 %v351
  %478 = vmatprep.subr.bf16.mxu0 0
  %479 = vmatpush1.bf16.msra.mxu0 %v350
  %480 = vmatprep.subr.bf16.mxu0 0
  %481 = vmatpush1.bf16.msra.mxu0 %v349
  %482 = vmatprep.subr.bf16.mxu0 0
  %483 = vmatpush1.bf16.msra.mxu0 %v348
  %484 = vmatprep.subr.bf16.mxu0 0
  %485 = vmatpush1.bf16.msra.mxu0 %v347
  %486 = vmatprep.subr.bf16.mxu0 0
  %487 = vmatpush1.bf16.msra.mxu0 %v346
  %488 = vmatprep.subr.bf16.mxu0 0
  %489 = vmatpush1.bf16.msra.mxu0 %v345
  %490 = vmatprep.subr.bf16.mxu0 0
  %491 = vmatpush2.bf16.msra.mxu0 0
  %492 = vmatprep.subr.bf16.mxu0 0
  %493 = vmatpush2.bf16.msra.mxu0 0
  %494 = vmatprep.subr.bf16.mxu0 0
  %495 = vmatpush2.bf16.msra.mxu0 0
  %496 = vmatprep.subr.bf16.mxu0 0
  %497 = vmatpush2.bf16.msra.mxu0 0
  %498 = vmatprep.subr.bf16.mxu0 0
  %499 = vmatpush2.bf16.msra.mxu0 0
  %500 = vmatprep.subr.bf16.mxu0 0
  %501 = vmatpush2.bf16.msra.mxu0 0
  %502 = vmatprep.subr.bf16.mxu0 0
  %503 = vmatpush2.bf16.msra.mxu0 0
  %504 = vmatprep.subr.bf16.mxu0 0
  %505 = vmatpush2.bf16.msra.mxu0 0
  %506 = vmatprep.mubr.bf16.mxu0 0
  %507 = vmatmul.mubr.bf16.gmra.mxu0 %v187
  %v508 = vpop.f32.mrf.mxu0
  %v509 = vadd.f32 %v412, %v508
  %v510 = vpop.f32.mrf.mxu0
  %v511 = vpop.f32.mrf.mxu0
  %v512 = vadd.f32 %v415, %v511
  %v513 = vpop.f32.mrf.mxu0
  %514 = vmatprep.mubr.bf16.mxu0 0
  %515 = vmatmul.mubr.bf16.gmra.mxu0 %v190
  %v516 = vpop.f32.mrf.mxu0
  %v517 = vadd.f32 %v420, %v516
  %v518 = vpop.f32.mrf.mxu0
  %v519 = vpop.f32.mrf.mxu0
  %v520 = vadd.f32 %v423, %v519
  %v521 = vpop.f32.mrf.mxu0
  %522 = vmatprep.mubr.bf16.mxu0 0
  %523 = vmatmul.mubr.bf16.gmra.mxu0 %v193
  %v524 = vpop.f32.mrf.mxu0
  %v525 = vadd.f32 %v428, %v524
  %v526 = vpop.f32.mrf.mxu0
  %v527 = vpop.f32.mrf.mxu0
  %v528 = vadd.f32 %v431, %v527
  %v529 = vpop.f32.mrf.mxu0
  %530 = vmatprep.mubr.bf16.mxu0 0
  %531 = vmatmul.mubr.bf16.gmra.mxu0 %v196
  %v532 = vpop.f32.mrf.mxu0
  %v533 = vadd.f32 %v436, %v532
  %v534 = vpop.f32.mrf.mxu0
  %v535 = vpop.f32.mrf.mxu0
  %v536 = vadd.f32 %v439, %v535
  %v537 = vpop.f32.mrf.mxu0
  %538 = vmatprep.mubr.bf16.mxu0 0
  %539 = vmatmul.mubr.bf16.gmra.mxu0 %v199
  %v540 = vpop.f32.mrf.mxu0
  %v541 = vadd.f32 %v444, %v540
  %v542 = vpop.f32.mrf.mxu0
  %v543 = vpop.f32.mrf.mxu0
  %v544 = vadd.f32 %v447, %v543
  %v545 = vpop.f32.mrf.mxu0
  %546 = vmatprep.mubr.bf16.mxu0 0
  %547 = vmatmul.mubr.bf16.gmra.mxu0 %v202
  %v548 = vpop.f32.mrf.mxu0
  %v549 = vadd.f32 %v452, %v548
  %v550 = vpop.f32.mrf.mxu0
  %v551 = vpop.f32.mrf.mxu0
  %v552 = vadd.f32 %v455, %v551
  %v553 = vpop.f32.mrf.mxu0
  %554 = vmatprep.mubr.bf16.mxu0 0
  %555 = vmatmul.mubr.bf16.gmra.mxu0 %v205
  %v556 = vpop.f32.mrf.mxu0
  %v557 = vadd.f32 %v460, %v556
  %v558 = vpop.f32.mrf.mxu0
  %v559 = vpop.f32.mrf.mxu0
  %v560 = vadd.f32 %v463, %v559
  %v561 = vpop.f32.mrf.mxu0
  %562 = vmatprep.mubr.bf16.mxu0 0
  %563 = vmatmul.mubr.bf16.gmra.mxu0 %v208
  %v564 = vpop.f32.mrf.mxu0
  %v565 = vadd.f32 %v468, %v564
  %v566 = vpop.f32.mrf.mxu0
  %v567 = vpop.f32.mrf.mxu0
  %v568 = vadd.f32 %v471, %v567
  %v569 = vpop.f32.mrf.mxu0
  %570 = vdwg.mxu0
  %v571 = vmax.f32 %v509, 0.0
  %v572 = vmax.f32 %v512, 0.0
  %v573 = vmax.f32 %v517, 0.0
  %v574 = vmax.f32 %v520, 0.0
  %v575 = vmax.f32 %v525, 0.0
  %v576 = vmax.f32 %v528, 0.0
  %v577 = vmax.f32 %v533, 0.0
  %v578 = vmax.f32 %v536, 0.0
  %v579 = vmax.f32 %v541, 0.0
  %v580 = vmax.f32 %v544, 0.0
  %v581 = vmax.f32 %v549, 0.0
  %v582 = vmax.f32 %v552, 0.0
  %v583 = vmax.f32 %v557, 0.0
  %v584 = vmax.f32 %v560, 0.0
  %v585 = vmax.f32 %v565, 0.0
  %v586 = vmax.f32 %v568, 0.0
  %v587 = vld [vmem:[%s3] sm:$0xff]
  %v588 = vld [vmem:[%s3 + $0x8] sm:$0xff]
  %v589 = vld [vmem:[%s3 + $0x10] sm:$0xff]
  %v590 = vld [vmem:[%s3 + $0x18] sm:$0xff]
  %v591 = vld [vmem:[%s3 + $0x20] sm:$0xff]
  %v592 = vld [vmem:[%s3 + $0x28] sm:$0xff]
  %v593 = vld [vmem:[%s3 + $0x30] sm:$0xff]
  %v594 = vld [vmem:[%s3 + $0x38] sm:$0xff]
  %v595 = vld [vmem:[%s3 + $0x40] sm:$0xff]
  %v596 = vld [vmem:[%s3 + $0x48] sm:$0xff]
  %v597 = vld [vmem:[%s3 + $0x50] sm:$0xff]
  %v598 = vld [vmem:[%s3 + $0x58] sm:$0xff]
  %v599 = vld [vmem:[%s3 + $0x60] sm:$0xff]
  %v600 = vld [vmem:[%s3 + $0x68] sm:$0xff]
  %v601 = vld [vmem:[%s3 + $0x70] sm:$0xff]
  %v602 = vld [vmem:[%s3 + $0x78] sm:$0xff]
  %v603 = vadd.f32 %v571, %v587
  %v604 = vadd.f32 %v572, %v588
  %v605 = vadd.f32 %v573, %v589
  %v606 = vadd.f32 %v574, %v590
  %v607 = vadd.f32 %v575, %v591
  %v608 = vadd.f32 %v576, %v592
  %v609 = vadd.f32 %v577, %v593
  %v610 = vadd.f32 %v578, %v594
  %v611 = vadd.f32 %v579, %v595
  %v612 = vadd.f32 %v580, %v596
  %v613 = vadd.f32 %v581, %v597
  %v614 = vadd.f32 %v582, %v598
  %v615 = vadd.f32 %v583, %v599
  %v616 = vadd.f32 %v584, %v600
  %v617 = vadd.f32 %v585, %v601
  %v618 = vadd.f32 %v586, %v602
  %v619 = vmax.f32 %v603, 0.0
  %v620 = vmax.f32 %v604, 0.0
  %v621 = vmax.f32 %v605, 0.0
  %v622 = vmax.f32 %v606, 0.0
  %v623 = vmax.f32 %v607, 0.0
  %v624 = vmax.f32 %v608, 0.0
  %v625 = vmax.f32 %v609, 0.0
  %v626 = vmax.f32 %v610, 0.0
  %v627 = vmax.f32 %v611, 0.0
  %v628 = vmax.f32 %v612, 0.0
  %v629 = vmax.f32 %v613, 0.0
  %v630 = vmax.f32 %v614, 0.0
  %v631 = vmax.f32 %v615, 0.0
  %v632 = vmax.f32 %v616, 0.0
  %v633 = vmax.f32 %v617, 0.0
  %v634 = vmax.f32 %v618, 0.0
  %635 = vst [vmem:[%s4] sm:$0xff] %v619
  %636 = vst [vmem:[%s4 + $0x8] sm:$0xff] %v620
  %637 = vst [vmem:[%s4 + $0x10] sm:$0xff] %v621
  %638 = vst [vmem:[%s4 + $0x18] sm:$0xff] %v622
  %639 = vst [vmem:[%s4 + $0x20] sm:$0xff] %v623
  %640 = vst [vmem:[%s4 + $0x28] sm:$0xff] %v624
  %641 = vst [vmem:[%s4 + $0x30] sm:$0xff] %v625
  %642 = vst [vmem:[%s4 + $0x38] sm:$0xff] %v626
  %643 = vst [vmem:[%s4 + $0x40] sm:$0xff] %v627
  %644 = vst [vmem:[%s4 + $0x48] sm:$0xff] %v628
  %645 = vst [vmem:[%s4 + $0x50] sm:$0xff] %v629
  %646 = vst [vmem:[%s4 + $0x58] sm:$0xff] %v630
  %647 = vst [vmem:[%s4 + $0x60] sm:$0xff] %v631
  %648 = vst [vmem:[%s4 + $0x68] sm:$0xff] %v632
  %649 = vst [vmem:[%s4 + $0x70] sm:$0xff] %v633
  %650 = vst [vmem:[%s4 + $0x78] sm:$0xff] %v634
  // Predicated region
  $region18: #{guidance_forward.13} parent=0 // pred_check
    _
  $region19: #{guidance_forward.13} parent=0 // pred_check_branch
    %652 = sbr.rel (0) target = $region21
  $region20: #{guidance_forward.13} parent=0 // pred_region
    _
  $region21: #{guidance_forward.13} parent=0 // pred_fallthru
    _
  // Predicated region
  $region22: #{guidance_forward.13} parent=0 // pred_check
    _
  $region23: #{guidance_forward.13} parent=0 // pred_check_branch
    %654 = sbr.rel (0) target = $region25
  $region24: #{guidance_forward.13} parent=0 // pred_region
    _
  $region25: #{guidance_forward.13} parent=0 // pred_fallthru
    _

// kernel: guidance_forward.16
$region0: #{guidance_forward.16}
  #allocation0 [shape = 'u32[]', space=smem, size = 0x4, offset = 0x4, fixed_abs, tag = 'smem constant byte address 0x4 - core index']
  #allocation1 [shape = 'u32[144,128]{1,0:T(1,128)}', space=vmem, size = 0x12000, scoped, tag = 'internal scratch']
  %s0 = inlined_call_operand.vmem [shape: bf16[32,384], index: 0, kind: input, shape index: {}]
  %s1 = inlined_call_operand.vmem [shape: bf16[384,128], index: 1, kind: input, shape index: {}]
  %s2 = inlined_call_operand.vmem [shape: f32[1,128], index: 2, kind: input, shape index: {}]
  %s3 = inlined_call_operand.vmem [shape: f32[32,128], index: 3, kind: output, shape index: {}]
  %s4 = sld [smem:[#allocation0]]
  $region22: #{guidance_forward.16} parent=0
    _
  %s6 = ssub.s32 1, %s4
  %s7 = scalar_select 0, %s6, %s4
  // Predicated region
  $region2: #{guidance_forward.16} parent=0 // pred_check
    _
  $region3: #{guidance_forward.16} parent=0 // pred_check_branch
    %9 = sbr.rel (0) target = $region5
  $region4: #{guidance_forward.16} parent=0 // pred_region
    _
  $region5: #{guidance_forward.16} parent=0 // pred_fallthru
    _
  // Predicated region
  $region6: #{guidance_forward.16} parent=0 // pred_check
    _
  $region7: #{guidance_forward.16} parent=0 // pred_check_branch
    %11 = sbr.rel (0) target = $region9
  $region8: #{guidance_forward.16} parent=0 // pred_region
    _
  $region9: #{guidance_forward.16} parent=0 // pred_fallthru
    _
  // Predicated region
  $region10: #{guidance_forward.16} parent=0 // pred_check
    _
  $region11: #{guidance_forward.16} parent=0 // pred_check_branch
    %13 = sbr.rel (0) target = $region13
  $region12: #{guidance_forward.16} parent=0 // pred_region
    _
  $region13: #{guidance_forward.16} parent=0 // pred_fallthru
    _
  %v15 = vld [vmem:[%s0] sm:$0xff]
  %v16 = vld [vmem:[%s0 + $0x8] sm:$0xf]
  %v17 = vld [vmem:[%s0 + $0xc] sm:$0xff]
  %v18 = vld [vmem:[%s0 + $0x14] sm:$0xf]
  %v19 = vld [vmem:[%s0 + $0x18] sm:$0xff]
  %v20 = vld [vmem:[%s0 + $0x20] sm:$0xf]
  %v21 = vld [vmem:[%s0 + $0x24] sm:$0xff]
  %v22 = vld [vmem:[%s0 + $0x2c] sm:$0xf]
  %v23 = vld [vmem:[%s1] sm:$0xf]
  %v24 = vld [vmem:[%s1 + $0x4] sm:$0xf]
  %v25 = vld [vmem:[%s1 + $0x8] sm:$0xf]
  %v26 = vld [vmem:[%s1 + $0xc] sm:$0xf]
  %v27 = vld [vmem:[%s1 + $0x10] sm:$0xf]
  %v28 = vld [vmem:[%s1 + $0x14] sm:$0xf]
  %v29 = vld [vmem:[%s1 + $0x18] sm:$0xf]
  %v30 = vld [vmem:[%s1 + $0x1c] sm:$0xf]
  %v31 = vld [vmem:[%s1 + $0x20] sm:$0xf]
  %v32 = vld [vmem:[%s1 + $0x24] sm:$0xf]
  %v33 = vld [vmem:[%s1 + $0x28] sm:$0xf]
  %v34 = vld [vmem:[%s1 + $0x2c] sm:$0xf]
  %v35 = vld [vmem:[%s1 + $0x30] sm:$0xf]
  %v36 = vld [vmem:[%s1 + $0x34] sm:$0xf]
  %v37 = vld [vmem:[%s1 + $0x38] sm:$0xf]
  %v38 = vld [vmem:[%s1 + $0x3c] sm:$0xf]
  %v39 = vld [vmem:[%s1 + $0x40] sm:$0xf]
  %v40 = vld [vmem:[%s1 + $0x44] sm:$0xf]
  %v41 = vld [vmem:[%s1 + $0x48] sm:$0xf]
  %v42 = vld [vmem:[%s1 + $0x4c] sm:$0xf]
  %v43 = vld [vmem:[%s1 + $0x50] sm:$0xf]
  %v44 = vld [vmem:[%s1 + $0x54] sm:$0xf]
  %v45 = vld [vmem:[%s1 + $0x58] sm:$0xf]
  %v46 = vld [vmem:[%s1 + $0x5c] sm:$0xf]
  %v47 = vld [vmem:[%s1 + $0x60] sm:$0xf]
  %v48 = vld [vmem:[%s1 + $0x64] sm:$0xf]
  %v49 = vld [vmem:[%s1 + $0x68] sm:$0xf]
  %v50 = vld [vmem:[%s1 + $0x6c] sm:$0xf]
  %v51 = vld [vmem:[%s1 + $0x70] sm:$0xf]
  %v52 = vld [vmem:[%s1 + $0x74] sm:$0xf]
  %v53 = vld [vmem:[%s1 + $0x78] sm:$0xf]
  %v54 = vld [vmem:[%s1 + $0x7c] sm:$0xf]
  %v55 = vld [vmem:[%s1 + $0x80] sm:$0xf]
  %v56 = vld [vmem:[%s1 + $0x84] sm:$0xf]
  %v57 = vld [vmem:[%s1 + $0x88] sm:$0xf]
  %v58 = vld [vmem:[%s1 + $0x8c] sm:$0xf]
  %v59 = vld [vmem:[%s1 + $0x90] sm:$0xf]
  %v60 = vld [vmem:[%s1 + $0x94] sm:$0xf]
  %v61 = vld [vmem:[%s1 + $0x98] sm:$0xf]
  %v62 = vld [vmem:[%s1 + $0x9c] sm:$0xf]
  %v63 = vld [vmem:[%s1 + $0xa0] sm:$0xf]
  %v64 = vld [vmem:[%s1 + $0xa4] sm:$0xf]
  %v65 = vld [vmem:[%s1 + $0xa8] sm:$0xf]
  %v66 = vld [vmem:[%s1 + $0xac] sm:$0xf]
  %v67 = vld [vmem:[%s1 + $0xb0] sm:$0xf]
  %v68 = vld [vmem:[%s1 + $0xb4] sm:$0xf]
  %v69 = vld [vmem:[%s1 + $0xb8] sm:$0xf]
  %v70 = vld [vmem:[%s1 + $0xbc] sm:$0xf]
  %v71 = vld [vmem:[%s2] sm:$0x1]
  %v73 = vlaneseq
  %v74 = vshrl.u32 %v73, 7
  %v75 = vsub.s32 0, %v74
  %v76 = vrot.slane %v71, %v75
  %v86 = vunpack.c.l.b16 %v15
  %v87 = vunpack.c.h.b16 %v15
  %v88 = vunpack.c.l.b16 %v16
  %v89 = vunpack.c.l.b16 %v17
  %v90 = vunpack.c.h.b16 %v17
  %v91 = vunpack.c.l.b16 %v18
  %v92 = vunpack.c.l.b16 %v19
  %v93 = vunpack.c.h.b16 %v19
  %v94 = vunpack.c.l.b16 %v20
  %v95 = vunpack.c.l.b16 %v21
  %v96 = vunpack.c.h.b16 %v21
  %v97 = vunpack.c.l.b16 %v22
  %v98 = vpack.c.b16 %v89, %v86
  %v99 = vpack.c.b16 %v90, %v87
  %v100 = vpack.c.b16 %v91, %v88
  %v101 = vpack.c.b16 %v95, %v92
  %v102 = vpack.c.b16 %v96, %v93
  %v103 = vpack.c.b16 %v97, %v94
  %v158 = vunpack.c.l.b16 %v23
  %v159 = vunpack.c.l.b16 %v24
  %v160 = vunpack.c.l.b16 %v25
  %v161 = vunpack.c.l.b16 %v26
  %v162 = vunpack.c.l.b16 %v27
  %v163 = vunpack.c.l.b16 %v28
  %v164 = vunpack.c.l.b16 %v29
  %v165 = vunpack.c.l.b16 %v30
  %v166 = vunpack.c.l.b16 %v31
  %v167 = vunpack.c.l.b16 %v32
  %v168 = vunpack.c.l.b16 %v33
  %v169 = vunpack.c.l.b16 %v34
  %v170 = vunpack.c.l.b16 %v35
  %v171 = vunpack.c.l.b16 %v36
  %v172 = vunpack.c.l.b16 %v37
  %v173 = vunpack.c.l.b16 %v38
  %v174 = vunpack.c.l.b16 %v39
  %v175 = vunpack.c.l.b16 %v40
  %v176 = vunpack.c.l.b16 %v41
  %v177 = vunpack.c.l.b16 %v42
  %v178 = vunpack.c.l.b16 %v43
  %v179 = vunpack.c.l.b16 %v44
  %v180 = vunpack.c.l.b16 %v45
  %v181 = vunpack.c.l.b16 %v46
  %v182 = vunpack.c.l.b16 %v47
  %v183 = vunpack.c.l.b16 %v48
  %v184 = vunpack.c.l.b16 %v49
  %v185 = vunpack.c.l.b16 %v50
  %v186 = vunpack.c.l.b16 %v51
  %v187 = vunpack.c.l.b16 %v52
  %v188 = vunpack.c.l.b16 %v53
  %v189 = vunpack.c.l.b16 %v54
  %v190 = vunpack.c.l.b16 %v55
  %v191 = vunpack.c.l.b16 %v56
  %v192 = vunpack.c.l.b16 %v57
  %v193 = vunpack.c.l.b16 %v58
  %v194 = vunpack.c.l.b16 %v59
  %v195 = vunpack.c.l.b16 %v60
  %v196 = vunpack.c.l.b16 %v61
  %v197 = vunpack.c.l.b16 %v62
  %v198 = vunpack.c.l.b16 %v63
  %v199 = vunpack.c.l.b16 %v64
  %v200 = vunpack.c.l.b16 %v65
  %v201 = vunpack.c.l.b16 %v66
  %v202 = vunpack.c.l.b16 %v67
  %v203 = vunpack.c.l.b16 %v68
  %v204 = vunpack.c.l.b16 %v69
  %v205 = vunpack.c.l.b16 %v70
  %v206 = vpack.c.b16 %v159, %v158
  %v207 = vpack.c.b16 %v161, %v160
  %v208 = vpack.c.b16 %v163, %v162
  %v209 = vpack.c.b16 %v165, %v164
  %v210 = vpack.c.b16 %v167, %v166
  %v211 = vpack.c.b16 %v169, %v168
  %v212 = vpack.c.b16 %v171, %v170
  %v213 = vpack.c.b16 %v173, %v172
  %v214 = vpack.c.b16 %v175, %v174
  %v215 = vpack.c.b16 %v177, %v176
  %v216 = vpack.c.b16 %v179, %v178
  %v217 = vpack.c.b16 %v181, %v180
  %v218 = vpack.c.b16 %v183, %v182
  %v219 = vpack.c.b16 %v185, %v184
  %v220 = vpack.c.b16 %v187, %v186
  %v221 = vpack.c.b16 %v189, %v188
  %v222 = vpack.c.b16 %v191, %v190
  %v223 = vpack.c.b16 %v193, %v192
  %v224 = vpack.c.b16 %v195, %v194
  %v225 = vpack.c.b16 %v197, %v196
  %v226 = vpack.c.b16 %v199, %v198
  %v227 = vpack.c.b16 %v201, %v200
  %v228 = vpack.c.b16 %v203, %v202
  %v229 = vpack.c.b16 %v205, %v204
  %254 = vmatprep.subr.bf16.mxu0 0
  %255 = vmatpush1.bf16.msra.mxu0 %v213
  %256 = vmatprep.subr.bf16.mxu0 0
  %257 = vmatpush1.bf16.msra.mxu0 %v212
  %258 = vmatprep.subr.bf16.mxu0 0
  %259 = vmatpush1.bf16.msra.mxu0 %v211
  %260 = vmatprep.subr.bf16.mxu0 0
  %261 = vmatpush1.bf16.msra.mxu0 %v210
  %262 = vmatprep.subr.bf16.mxu0 0
  %263 = vmatpush1.bf16.msra.mxu0 %v209
  %264 = vmatprep.subr.bf16.mxu0 0
  %265 = vmatpush1.bf16.msra.mxu0 %v208
  %266 = vmatprep.subr.bf16.mxu0 0
  %267 = vmatpush1.bf16.msra.mxu0 %v207
  %268 = vmatprep.subr.bf16.mxu0 0
  %269 = vmatpush1.bf16.msra.mxu0 %v206
  %270 = vmatprep.subr.bf16.mxu0 0
  %271 = vmatpush2.bf16.msra.mxu0 %v221
  %272 = vmatprep.subr.bf16.mxu0 0
  %273 = vmatpush2.bf16.msra.mxu0 %v220
  %274 = vmatprep.subr.bf16.mxu0 0
  %275 = vmatpush2.bf16.msra.mxu0 %v219
  %276 = vmatprep.subr.bf16.mxu0 0
  %277 = vmatpush2.bf16.msra.mxu0 %v218
  %278 = vmatprep.subr.bf16.mxu0 0
  %279 = vmatpush2.bf16.msra.mxu0 %v217
  %280 = vmatprep.subr.bf16.mxu0 0
  %281 = vmatpush2.bf16.msra.mxu0 %v216
  %282 = vmatprep.subr.bf16.mxu0 0
  %283 = vmatpush2.bf16.msra.mxu0 %v215
  %284 = vmatprep.subr.bf16.mxu0 0
  %285 = vmatpush2.bf16.msra.mxu0 %v214
  %286 = vmatprep.mubr.bf16.mxu0 %v99
  %287 = vmatmul.mubr.bf16.gmra.mxu0 %v98
  %v288 = vpop.f32.mrf.mxu0
  %v289 = vadd.f32 %v76, %v288
  %v290 = vpop.f32.mrf.mxu0
  %v291 = vpop.f32.mrf.mxu0
  %v292 = vadd.f32 %v76, %v291
  %v293 = vpop.f32.mrf.mxu0
  %294 = vmatprep.mubr.bf16.mxu0 %v102
  %295 = vmatmul.mubr.bf16.gmra.mxu0 %v101
  %v296 = vpop.f32.mrf.mxu0
  %v297 = vadd.f32 %v76, %v296
  %v298 = vpop.f32.mrf.mxu0
  %v299 = vpop.f32.mrf.mxu0
  %v300 = vadd.f32 %v76, %v299
  %v301 = vpop.f32.mrf.mxu0
  %302 = vdwg.mxu0
  %303 = vmatprep.subr.bf16.mxu0 0
  %304 = vmatpush1.bf16.msra.mxu0 %v229
  %305 = vmatprep.subr.bf16.mxu0 0
  %306 = vmatpush1.bf16.msra.mxu0 %v228
  %307 = vmatprep.subr.bf16.mxu0 0
  %308 = vmatpush1.bf16.msra.mxu0 %v227
  %309 = vmatprep.subr.bf16.mxu0 0
  %310 = vmatpush1.bf16.msra.mxu0 %v226
  %311 = vmatprep.subr.bf16.mxu0 0
  %312 = vmatpush1.bf16.msra.mxu0 %v225
  %313 = vmatprep.subr.bf16.mxu0 0
  %314 = vmatpush1.bf16.msra.mxu0 %v224
  %315 = vmatprep.subr.bf16.mxu0 0
  %316 = vmatpush1.bf16.msra.mxu0 %v223
  %317 = vmatprep.subr.bf16.mxu0 0
  %318 = vmatpush1.bf16.msra.mxu0 %v222
  %319 = vmatprep.subr.bf16.mxu0 0
  %320 = vmatpush2.bf16.msra.mxu0 0
  %321 = vmatprep.subr.bf16.mxu0 0
  %322 = vmatpush2.bf16.msra.mxu0 0
  %323 = vmatprep.subr.bf16.mxu0 0
  %324 = vmatpush2.bf16.msra.mxu0 0
  %325 = vmatprep.subr.bf16.mxu0 0
  %326 = vmatpush2.bf16.msra.mxu0 0
  %327 = vmatprep.subr.bf16.mxu0 0
  %328 = vmatpush2.bf16.msra.mxu0 0
  %329 = vmatprep.subr.bf16.mxu0 0
  %330 = vmatpush2.bf16.msra.mxu0 0
  %331 = vmatprep.subr.bf16.mxu0 0
  %332 = vmatpush2.bf16.msra.mxu0 0
  %333 = vmatprep.subr.bf16.mxu0 0
  %334 = vmatpush2.bf16.msra.mxu0 0
  %335 = vmatprep.mubr.bf16.mxu0 0
  %336 = vmatmul.mubr.bf16.gmra.mxu0 %v100
  %v337 = vpop.f32.mrf.mxu0
  %v338 = vadd.f32 %v289, %v337
  %v339 = vpop.f32.mrf.mxu0
  %v340 = vpop.f32.mrf.mxu0
  %v341 = vadd.f32 %v292, %v340
  %v342 = vpop.f32.mrf.mxu0
  %343 = vmatprep.mubr.bf16.mxu0 0
  %344 = vmatmul.mubr.bf16.gmra.mxu0 %v103
  %v345 = vpop.f32.mrf.mxu0
  %v346 = vadd.f32 %v297, %v345
  %v347 = vpop.f32.mrf.mxu0
  %v348 = vpop.f32.mrf.mxu0
  %v349 = vadd.f32 %v300, %v348
  %v350 = vpop.f32.mrf.mxu0
  %351 = vdwg.mxu0
  %v352 = vmax.f32 %v338, 0.0
  %v353 = vmax.f32 %v341, 0.0
  %v354 = vmax.f32 %v346, 0.0
  %v355 = vmax.f32 %v349, 0.0
  %356 = vst [vmem:[%s3] sm:$0xff] %v352
  %357 = vst [vmem:[%s3 + $0x8] sm:$0xff] %v353
  %358 = vst [vmem:[%s3 + $0x10] sm:$0xff] %v354
  %359 = vst [vmem:[%s3 + $0x18] sm:$0xff] %v355
  // Predicated region
  $region14: #{guidance_forward.16} parent=0 // pred_check
    _
  $region15: #{guidance_forward.16} parent=0 // pred_check_branch
    %361 = sbr.rel (0) target = $region17
  $region16: #{guidance_forward.16} parent=0 // pred_region
    _
  $region17: #{guidance_forward.16} parent=0 // pred_fallthru
    _
  // Predicated region
  $region18: #{guidance_forward.16} parent=0 // pred_check
    _
  $region19: #{guidance_forward.16} parent=0 // pred_check_branch
    %363 = sbr.rel (0) target = $region21
  $region20: #{guidance_forward.16} parent=0 // pred_region
    _
  $region21: #{guidance_forward.16} parent=0 // pred_fallthru
    _

// kernel: guidance_forward.17
$region0: #{guidance_forward.17}
  #allocation0 [shape = 'u32[]', space=smem, size = 0x4, offset = 0x4, fixed_abs, tag = 'smem constant byte address 0x4 - core index']
  #allocation1 [shape = 'u32[144,128]{1,0:T(1,128)}', space=vmem, size = 0x12000, scoped, tag = 'internal scratch']
  %s0 = inlined_call_operand.vmem [shape: bf16[32,128], index: 0, kind: input, shape index: {}]
  %s1 = inlined_call_operand.vmem [shape: bf16[128,128], index: 1, kind: input, shape index: {}]
  %s2 = inlined_call_operand.vmem [shape: f32[1,128], index: 2, kind: input, shape index: {}]
  %s3 = inlined_call_operand.vmem [shape: f32[32,128], index: 3, kind: output, shape index: {}]
  %s4 = sld [smem:[#allocation0]]
  $region22: #{guidance_forward.17} parent=0
    _
  %s6 = ssub.s32 1, %s4
  %s7 = scalar_select 0, %s6, %s4
  // Predicated region
  $region2: #{guidance_forward.17} parent=0 // pred_check
    _
  $region3: #{guidance_forward.17} parent=0 // pred_check_branch
    %9 = sbr.rel (0) target = $region5
  $region4: #{guidance_forward.17} parent=0 // pred_region
    _
  $region5: #{guidance_forward.17} parent=0 // pred_fallthru
    _
  // Predicated region
  $region6: #{guidance_forward.17} parent=0 // pred_check
    _
  $region7: #{guidance_forward.17} parent=0 // pred_check_branch
    %11 = sbr.rel (0) target = $region9
  $region8: #{guidance_forward.17} parent=0 // pred_region
    _
  $region9: #{guidance_forward.17} parent=0 // pred_fallthru
    _
  // Predicated region
  $region10: #{guidance_forward.17} parent=0 // pred_check
    _
  $region11: #{guidance_forward.17} parent=0 // pred_check_branch
    %13 = sbr.rel (0) target = $region13
  $region12: #{guidance_forward.17} parent=0 // pred_region
    _
  $region13: #{guidance_forward.17} parent=0 // pred_fallthru
    _
  %v15 = vld [vmem:[%s0] sm:$0xf]
  %v16 = vld [vmem:[%s0 + $0x4] sm:$0xf]
  %v17 = vld [vmem:[%s0 + $0x8] sm:$0xf]
  %v18 = vld [vmem:[%s0 + $0xc] sm:$0xf]
  %v19 = vld [vmem:[%s1] sm:$0xf]
  %v20 = vld [vmem:[%s1 + $0x4] sm:$0xf]
  %v21 = vld [vmem:[%s1 + $0x8] sm:$0xf]
  %v22 = vld [vmem:[%s1 + $0xc] sm:$0xf]
  %v23 = vld [vmem:[%s1 + $0x10] sm:$0xf]
  %v24 = vld [vmem:[%s1 + $0x14] sm:$0xf]
  %v25 = vld [vmem:[%s1 + $0x18] sm:$0xf]
  %v26 = vld [vmem:[%s1 + $0x1c] sm:$0xf]
  %v27 = vld [vmem:[%s1 + $0x20] sm:$0xf]
  %v28 = vld [vmem:[%s1 + $0x24] sm:$0xf]
  %v29 = vld [vmem:[%s1 + $0x28] sm:$0xf]
  %v30 = vld [vmem:[%s1 + $0x2c] sm:$0xf]
  %v31 = vld [vmem:[%s1 + $0x30] sm:$0xf]
  %v32 = vld [vmem:[%s1 + $0x34] sm:$0xf]
  %v33 = vld [vmem:[%s1 + $0x38] sm:$0xf]
  %v34 = vld [vmem:[%s1 + $0x3c] sm:$0xf]
  %v35 = vld [vmem:[%s2] sm:$0x1]
  %v37 = vlaneseq
  %v38 = vshrl.u32 %v37, 7
  %v39 = vsub.s32 0, %v38
  %v40 = vrot.slane %v35, %v39
  %v46 = vunpack.c.l.b16 %v15
  %v47 = vunpack.c.l.b16 %v16
  %v48 = vunpack.c.l.b16 %v17
  %v49 = vunpack.c.l.b16 %v18
  %v50 = vpack.c.b16 %v47, %v46
  %v51 = vpack.c.b16 %v49, %v48
  %v70 = vunpack.c.l.b16 %v19
  %v71 = vunpack.c.l.b16 %v20
  %v72 = vunpack.c.l.b16 %v21
  %v73 = vunpack.c.l.b16 %v22
  %v74 = vunpack.c.l.b16 %v23
  %v75 = vunpack.c.l.b16 %v24
  %v76 = vunpack.c.l.b16 %v25
  %v77 = vunpack.c.l.b16 %v26
  %v78 = vunpack.c.l.b16 %v27
  %v79 = vunpack.c.l.b16 %v28
  %v80 = vunpack.c.l.b16 %v29
  %v81 = vunpack.c.l.b16 %v30
  %v82 = vunpack.c.l.b16 %v31
  %v83 = vunpack.c.l.b16 %v32
  %v84 = vunpack.c.l.b16 %v33
  %v85 = vunpack.c.l.b16 %v34
  %v86 = vpack.c.b16 %v71, %v70
  %v87 = vpack.c.b16 %v73, %v72
  %v88 = vpack.c.b16 %v75, %v74
  %v89 = vpack.c.b16 %v77, %v76
  %v90 = vpack.c.b16 %v79, %v78
  %v91 = vpack.c.b16 %v81, %v80
  %v92 = vpack.c.b16 %v83, %v82
  %v93 = vpack.c.b16 %v85, %v84
  %102 = vmatprep.subr.bf16.mxu0 0
  %103 = vmatpush1.bf16.msra.mxu0 %v93
  %104 = vmatprep.subr.bf16.mxu0 0
  %105 = vmatpush1.bf16.msra.mxu0 %v92
  %106 = vmatprep.subr.bf16.mxu0 0
  %107 = vmatpush1.bf16.msra.mxu0 %v91
  %108 = vmatprep.subr.bf16.mxu0 0
  %109 = vmatpush1.bf16.msra.mxu0 %v90
  %110 = vmatprep.subr.bf16.mxu0 0
  %111 = vmatpush1.bf16.msra.mxu0 %v89
  %112 = vmatprep.subr.bf16.mxu0 0
  %113 = vmatpush1.bf16.msra.mxu0 %v88
  %114 = vmatprep.subr.bf16.mxu0 0
  %115 = vmatpush1.bf16.msra.mxu0 %v87
  %116 = vmatprep.subr.bf16.mxu0 0
  %117 = vmatpush1.bf16.msra.mxu0 %v86
  %118 = vmatprep.subr.bf16.mxu0 0
  %119 = vmatpush2.bf16.msra.mxu0 0
  %120 = vmatprep.subr.bf16.mxu0 0
  %121 = vmatpush2.bf16.msra.mxu0 0
  %122 = vmatprep.subr.bf16.mxu0 0
  %123 = vmatpush2.bf16.msra.mxu0 0
  %124 = vmatprep.subr.bf16.mxu0 0
  %125 = vmatpush2.bf16.msra.mxu0 0
  %126 = vmatprep.subr.bf16.mxu0 0
  %127 = vmatpush2.bf16.msra.mxu0 0
  %128 = vmatprep.subr.bf16.mxu0 0
  %129 = vmatpush2.bf16.msra.mxu0 0
  %130 = vmatprep.subr.bf16.mxu0 0
  %131 = vmatpush2.bf16.msra.mxu0 0
  %132 = vmatprep.subr.bf16.mxu0 0
  %133 = vmatpush2.bf16.msra.mxu0 0
  %134 = vmatprep.mubr.bf16.mxu0 0
  %135 = vmatmul.mubr.bf16.gmra.mxu0 %v50
  %v136 = vpop.f32.mrf.mxu0
  %v137 = vadd.f32 %v40, %v136
  %v138 = vpop.f32.mrf.mxu0
  %v139 = vpop.f32.mrf.mxu0
  %v140 = vadd.f32 %v40, %v139
  %v141 = vpop.f32.mrf.mxu0
  %142 = vmatprep.mubr.bf16.mxu0 0
  %143 = vmatmul.mubr.bf16.gmra.mxu0 %v51
  %v144 = vpop.f32.mrf.mxu0
  %v145 = vadd.f32 %v40, %v144
  %v146 = vpop.f32.mrf.mxu0
  %v147 = vpop.f32.mrf.mxu0
  %v148 = vadd.f32 %v40, %v147
  %v149 = vpop.f32.mrf.mxu0
  %150 = vdwg.mxu0
  %151 = vst [vmem:[%s3] sm:$0xff] %v137
  %152 = vst [vmem:[%s3 + $0x8] sm:$0xff] %v140
  %153 = vst [vmem:[%s3 + $0x10] sm:$0xff] %v145
  %154 = vst [vmem:[%s3 + $0x18] sm:$0xff] %v148
  // Predicated region
  $region14: #{guidance_forward.17} parent=0 // pred_check
    _
  $region15: #{guidance_forward.17} parent=0 // pred_check_branch
    %156 = sbr.rel (0) target = $region17
  $region16: #{guidance_forward.17} parent=0 // pred_region
    _
  $region17: #{guidance_forward.17} parent=0 // pred_fallthru
    _
  // Predicated region
  $region18: #{guidance_forward.17} parent=0 // pred_check
    _
  $region19: #{guidance_forward.17} parent=0 // pred_check_branch
    %158 = sbr.rel (0) target = $region21
  $region20: #{guidance_forward.17} parent=0 // pred_region
    _
  $region21: #{guidance_forward.17} parent=0 // pred_fallthru
    _

// kernel: guidance_forward.19
$region0: #{guidance_forward.19}
  #allocation0 [shape = 'u32[]', space=smem, size = 0x4, offset = 0x4, fixed_abs, tag = 'smem constant byte address 0x4 - core index']
  #allocation1 [shape = 'u32[144,128]{1,0:T(1,128)}', space=vmem, size = 0x12000, scoped, tag = 'internal scratch']
  %s0 = inlined_call_operand.vmem [shape: bf16[32,640], index: 0, kind: input, shape index: {}]
  %s1 = inlined_call_operand.vmem [shape: bf16[640,128], index: 1, kind: input, shape index: {}]
  %s2 = inlined_call_operand.vmem [shape: f32[1,128], index: 2, kind: input, shape index: {}]
  %s3 = inlined_call_operand.vmem [shape: f32[32,128], index: 3, kind: output, shape index: {}]
  %s4 = sld [smem:[#allocation0]]
  $region22: #{guidance_forward.19} parent=0
    _
  %s6 = ssub.s32 1, %s4
  %s7 = scalar_select 0, %s6, %s4
  // Predicated region
  $region2: #{guidance_forward.19} parent=0 // pred_check
    _
  $region3: #{guidance_forward.19} parent=0 // pred_check_branch
    %9 = sbr.rel (0) target = $region5
  $region4: #{guidance_forward.19} parent=0 // pred_region
    _
  $region5: #{guidance_forward.19} parent=0 // pred_fallthru
    _
  // Predicated region
  $region6: #{guidance_forward.19} parent=0 // pred_check
    _
  $region7: #{guidance_forward.19} parent=0 // pred_check_branch
    %11 = sbr.rel (0) target = $region9
  $region8: #{guidance_forward.19} parent=0 // pred_region
    _
  $region9: #{guidance_forward.19} parent=0 // pred_fallthru
    _
  // Predicated region
  $region10: #{guidance_forward.19} parent=0 // pred_check
    _
  $region11: #{guidance_forward.19} parent=0 // pred_check_branch
    %13 = sbr.rel (0) target = $region13
  $region12: #{guidance_forward.19} parent=0 // pred_region
    _
  $region13: #{guidance_forward.19} parent=0 // pred_fallthru
    _
  %v15 = vld [vmem:[%s0] sm:$0xff]
  %v16 = vld [vmem:[%s0 + $0x8] sm:$0xff]
  %v17 = vld [vmem:[%s0 + $0x10] sm:$0xf]
  %v18 = vld [vmem:[%s0 + $0x14] sm:$0xff]
  %v19 = vld [vmem:[%s0 + $0x1c] sm:$0xff]
  %v20 = vld [vmem:[%s0 + $0x24] sm:$0xf]
  %v21 = vld [vmem:[%s0 + $0x28] sm:$0xff]
  %v22 = vld [vmem:[%s0 + $0x30] sm:$0xff]
  %v23 = vld [vmem:[%s0 + $0x38] sm:$0xf]
  %v24 = vld [vmem:[%s0 + $0x3c] sm:$0xff]
  %v25 = vld [vmem:[%s0 + $0x44] sm:$0xff]
  %v26 = vld [vmem:[%s0 + $0x4c] sm:$0xf]
  %v27 = vld [vmem:[%s1] sm:$0xf]
  %v28 = vld [vmem:[%s1 + $0x4] sm:$0xf]
  %v29 = vld [vmem:[%s1 + $0x8] sm:$0xf]
  %v30 = vld [vmem:[%s1 + $0xc] sm:$0xf]
  %v31 = vld [vmem:[%s1 + $0x10] sm:$0xf]
  %v32 = vld [vmem:[%s1 + $0x14] sm:$0xf]
  %v33 = vld [vmem:[%s1 + $0x18] sm:$0xf]
  %v34 = vld [vmem:[%s1 + $0x1c] sm:$0xf]
  %v35 = vld [vmem:[%s1 + $0x20] sm:$0xf]
  %v36 = vld [vmem:[%s1 + $0x24] sm:$0xf]
  %v37 = vld [vmem:[%s1 + $0x28] sm:$0xf]
  %v38 = vld [vmem:[%s1 + $0x2c] sm:$0xf]
  %v39 = vld [vmem:[%s1 + $0x30] sm:$0xf]
  %v40 = vld [vmem:[%s1 + $0x34] sm:$0xf]
  %v41 = vld [vmem:[%s1 + $0x38] sm:$0xf]
  %v42 = vld [vmem:[%s1 + $0x3c] sm:$0xf]
  %v43 = vld [vmem:[%s1 + $0x40] sm:$0xf]
  %v44 = vld [vmem:[%s1 + $0x44] sm:$0xf]
  %v45 = vld [vmem:[%s1 + $0x48] sm:$0xf]
  %v46 = vld [vmem:[%s1 + $0x4c] sm:$0xf]
  %v47 = vld [vmem:[%s1 + $0x50] sm:$0xf]
  %v48 = vld [vmem:[%s1 + $0x54] sm:$0xf]
  %v49 = vld [vmem:[%s1 + $0x58] sm:$0xf]
  %v50 = vld [vmem:[%s1 + $0x5c] sm:$0xf]
  %v51 = vld [vmem:[%s1 + $0x60] sm:$0xf]
  %v52 = vld [vmem:[%s1 + $0x64] sm:$0xf]
  %v53 = vld [vmem:[%s1 + $0x68] sm:$0xf]
  %v54 = vld [vmem:[%s1 + $0x6c] sm:$0xf]
  %v55 = vld [vmem:[%s1 + $0x70] sm:$0xf]
  %v56 = vld [vmem:[%s1 + $0x74] sm:$0xf]
  %v57 = vld [vmem:[%s1 + $0x78] sm:$0xf]
  %v58 = vld [vmem:[%s1 + $0x7c] sm:$0xf]
  %v59 = vld [vmem:[%s1 + $0x80] sm:$0xf]
  %v60 = vld [vmem:[%s1 + $0x84] sm:$0xf]
  %v61 = vld [vmem:[%s1 + $0x88] sm:$0xf]
  %v62 = vld [vmem:[%s1 + $0x8c] sm:$0xf]
  %v63 = vld [vmem:[%s1 + $0x90] sm:$0xf]
  %v64 = vld [vmem:[%s1 + $0x94] sm:$0xf]
  %v65 = vld [vmem:[%s1 + $0x98] sm:$0xf]
  %v66 = vld [vmem:[%s1 + $0x9c] sm:$0xf]
  %v67 = vld [vmem:[%s1 + $0xa0] sm:$0xf]
  %v68 = vld [vmem:[%s1 + $0xa4] sm:$0xf]
  %v69 = vld [vmem:[%s1 + $0xa8] sm:$0xf]
  %v70 = vld [vmem:[%s1 + $0xac] sm:$0xf]
  %v71 = vld [vmem:[%s1 + $0xb0] sm:$0xf]
  %v72 = vld [vmem:[%s1 + $0xb4] sm:$0xf]
  %v73 = vld [vmem:[%s1 + $0xb8] sm:$0xf]
  %v74 = vld [vmem:[%s1 + $0xbc] sm:$0xf]
  %v75 = vld [vmem:[%s1 + $0xc0] sm:$0xf]
  %v76 = vld [vmem:[%s1 + $0xc4] sm:$0xf]
  %v77 = vld [vmem:[%s1 + $0xc8] sm:$0xf]
  %v78 = vld [vmem:[%s1 + $0xcc] sm:$0xf]
  %v79 = vld [vmem:[%s1 + $0xd0] sm:$0xf]
  %v80 = vld [vmem:[%s1 + $0xd4] sm:$0xf]
  %v81 = vld [vmem:[%s1 + $0xd8] sm:$0xf]
  %v82 = vld [vmem:[%s1 + $0xdc] sm:$0xf]
  %v83 = vld [vmem:[%s1 + $0xe0] sm:$0xf]
  %v84 = vld [vmem:[%s1 + $0xe4] sm:$0xf]
  %v85 = vld [vmem:[%s1 + $0xe8] sm:$0xf]
  %v86 = vld [vmem:[%s1 + $0xec] sm:$0xf]
  %v87 = vld [vmem:[%s1 + $0xf0] sm:$0xf]
  %v88 = vld [vmem:[%s1 + $0xf4] sm:$0xf]
  %v89 = vld [vmem:[%s1 + $0xf8] sm:$0xf]
  %v90 = vld [vmem:[%s1 + $0xfc] sm:$0xf]
  %v91 = vld [vmem:[%s1 + $0x100] sm:$0xf]
  %v92 = vld [vmem:[%s1 + $0x104] sm:$0xf]
  %v93 = vld [vmem:[%s1 + $0x108] sm:$0xf]
  %v94 = vld [vmem:[%s1 + $0x10c] sm:$0xf]
  %v95 = vld [vmem:[%s1 + $0x110] sm:$0xf]
  %v96 = vld [vmem:[%s1 + $0x114] sm:$0xf]
  %v97 = vld [vmem:[%s1 + $0x118] sm:$0xf]
  %v98 = vld [vmem:[%s1 + $0x11c] sm:$0xf]
  %v99 = vld [vmem:[%s1 + $0x120] sm:$0xf]
  %v100 = vld [vmem:[%s1 + $0x124] sm:$0xf]
  %v101 = vld [vmem:[%s1 + $0x128] sm:$0xf]
  %v102 = vld [vmem:[%s1 + $0x12c] sm:$0xf]
  %v103 = vld [vmem:[%s1 + $0x130] sm:$0xf]
  %v104 = vld [vmem:[%s1 + $0x134] sm:$0xf]
  %v105 = vld [vmem:[%s1 + $0x138] sm:$0xf]
  %v106 = vld [vmem:[%s1 + $0x13c] sm:$0xf]
  %v107 = vld [vmem:[%s2] sm:$0x1]
  %v109 = vlaneseq
  %v110 = vshrl.u32 %v109, 7
  %v111 = vsub.s32 0, %v110
  %v112 = vrot.slane %v107, %v111
  %v126 = vunpack.c.l.b16 %v15
  %v127 = vunpack.c.h.b16 %v15
  %v128 = vunpack.c.l.b16 %v16
  %v129 = vunpack.c.h.b16 %v16
  %v130 = vunpack.c.l.b16 %v17
  %v131 = vunpack.c.l.b16 %v18
  %v132 = vunpack.c.h.b16 %v18
  %v133 = vunpack.c.l.b16 %v19
  %v134 = vunpack.c.h.b16 %v19
  %v135 = vunpack.c.l.b16 %v20
  %v136 = vunpack.c.l.b16 %v21
  %v137 = vunpack.c.h.b16 %v21
  %v138 = vunpack.c.l.b16 %v22
  %v139 = vunpack.c.h.b16 %v22
  %v140 = vunpack.c.l.b16 %v23
  %v141 = vunpack.c.l.b16 %v24
  %v142 = vunpack.c.h.b16 %v24
  %v143 = vunpack.c.l.b16 %v25
  %v144 = vunpack.c.h.b16 %v25
  %v145 = vunpack.c.l.b16 %v26
  %v146 = vpack.c.b16 %v131, %v126
  %v147 = vpack.c.b16 %v132, %v127
  %v148 = vpack.c.b16 %v133, %v128
  %v149 = vpack.c.b16 %v134, %v129
  %v150 = vpack.c.b16 %v135, %v130
  %v151 = vpack.c.b16 %v141, %v136
  %v152 = vpack.c.b16 %v142, %v137
  %v153 = vpack.c.b16 %v143, %v138
  %v154 = vpack.c.b16 %v144, %v139
  %v155 = vpack.c.b16 %v145, %v140
  %v246 = vunpack.c.l.b16 %v27
  %v247 = vunpack.c.l.b16 %v28
  %v248 = vunpack.c.l.b16 %v29
  %v249 = vunpack.c.l.b16 %v30
  %v250 = vunpack.c.l.b16 %v31
  %v251 = vunpack.c.l.b16 %v32
  %v252 = vunpack.c.l.b16 %v33
  %v253 = vunpack.c.l.b16 %v34
  %v254 = vunpack.c.l.b16 %v35
  %v255 = vunpack.c.l.b16 %v36
  %v256 = vunpack.c.l.b16 %v37
  %v257 = vunpack.c.l.b16 %v38
  %v258 = vunpack.c.l.b16 %v39
  %v259 = vunpack.c.l.b16 %v40
  %v260 = vunpack.c.l.b16 %v41
  %v261 = vunpack.c.l.b16 %v42
  %v262 = vunpack.c.l.b16 %v43
  %v263 = vunpack.c.l.b16 %v44
  %v264 = vunpack.c.l.b16 %v45
  %v265 = vunpack.c.l.b16 %v46
  %v266 = vunpack.c.l.b16 %v47
  %v267 = vunpack.c.l.b16 %v48
  %v268 = vunpack.c.l.b16 %v49
  %v269 = vunpack.c.l.b16 %v50
  %v270 = vunpack.c.l.b16 %v51
  %v271 = vunpack.c.l.b16 %v52
  %v272 = vunpack.c.l.b16 %v53
  %v273 = vunpack.c.l.b16 %v54
  %v274 = vunpack.c.l.b16 %v55
  %v275 = vunpack.c.l.b16 %v56
  %v276 = vunpack.c.l.b16 %v57
  %v277 = vunpack.c.l.b16 %v58
  %v278 = vunpack.c.l.b16 %v59
  %v279 = vunpack.c.l.b16 %v60
  %v280 = vunpack.c.l.b16 %v61
  %v281 = vunpack.c.l.b16 %v62
  %v282 = vunpack.c.l.b16 %v63
  %v283 = vunpack.c.l.b16 %v64
  %v284 = vunpack.c.l.b16 %v65
  %v285 = vunpack.c.l.b16 %v66
  %v286 = vunpack.c.l.b16 %v67
  %v287 = vunpack.c.l.b16 %v68
  %v288 = vunpack.c.l.b16 %v69
  %v289 = vunpack.c.l.b16 %v70
  %v290 = vunpack.c.l.b16 %v71
  %v291 = vunpack.c.l.b16 %v72
  %v292 = vunpack.c.l.b16 %v73
  %v293 = vunpack.c.l.b16 %v74
  %v294 = vunpack.c.l.b16 %v75
  %v295 = vunpack.c.l.b16 %v76
  %v296 = vunpack.c.l.b16 %v77
  %v297 = vunpack.c.l.b16 %v78
  %v298 = vunpack.c.l.b16 %v79
  %v299 = vunpack.c.l.b16 %v80
  %v300 = vunpack.c.l.b16 %v81
  %v301 = vunpack.c.l.b16 %v82
  %v302 = vunpack.c.l.b16 %v83
  %v303 = vunpack.c.l.b16 %v84
  %v304 = vunpack.c.l.b16 %v85
  %v305 = vunpack.c.l.b16 %v86
  %v306 = vunpack.c.l.b16 %v87
  %v307 = vunpack.c.l.b16 %v88
  %v308 = vunpack.c.l.b16 %v89
  %v309 = vunpack.c.l.b16 %v90
  %v310 = vunpack.c.l.b16 %v91
  %v311 = vunpack.c.l.b16 %v92
  %v312 = vunpack.c.l.b16 %v93
  %v313 = vunpack.c.l.b16 %v94
  %v314 = vunpack.c.l.b16 %v95
  %v315 = vunpack.c.l.b16 %v96
  %v316 = vunpack.c.l.b16 %v97
  %v317 = vunpack.c.l.b16 %v98
  %v318 = vunpack.c.l.b16 %v99
  %v319 = vunpack.c.l.b16 %v100
  %v320 = vunpack.c.l.b16 %v101
  %v321 = vunpack.c.l.b16 %v102
  %v322 = vunpack.c.l.b16 %v103
  %v323 = vunpack.c.l.b16 %v104
  %v324 = vunpack.c.l.b16 %v105
  %v325 = vunpack.c.l.b16 %v106
  %v326 = vpack.c.b16 %v247, %v246
  %v327 = vpack.c.b16 %v249, %v248
  %v328 = vpack.c.b16 %v251, %v250
  %v329 = vpack.c.b16 %v253, %v252
  %v330 = vpack.c.b16 %v255, %v254
  %v331 = vpack.c.b16 %v257, %v256
  %v332 = vpack.c.b16 %v259, %v258
  %v333 = vpack.c.b16 %v261, %v260
  %v334 = vpack.c.b16 %v263, %v262
  %v335 = vpack.c.b16 %v265, %v264
  %v336 = vpack.c.b16 %v267, %v266
  %v337 = vpack.c.b16 %v269, %v268
  %v338 = vpack.c.b16 %v271, %v270
  %v339 = vpack.c.b16 %v273, %v272
  %v340 = vpack.c.b16 %v275, %v274
  %v341 = vpack.c.b16 %v277, %v276
  %v342 = vpack.c.b16 %v279, %v278
  %v343 = vpack.c.b16 %v281, %v280
  %v344 = vpack.c.b16 %v283, %v282
  %v345 = vpack.c.b16 %v285, %v284
  %v346 = vpack.c.b16 %v287, %v286
  %v347 = vpack.c.b16 %v289, %v288
  %v348 = vpack.c.b16 %v291, %v290
  %v349 = vpack.c.b16 %v293, %v292
  %v350 = vpack.c.b16 %v295, %v294
  %v351 = vpack.c.b16 %v297, %v296
  %v352 = vpack.c.b16 %v299, %v298
  %v353 = vpack.c.b16 %v301, %v300
  %v354 = vpack.c.b16 %v303, %v302
  %v355 = vpack.c.b16 %v305, %v304
  %v356 = vpack.c.b16 %v307, %v306
  %v357 = vpack.c.b16 %v309, %v308
  %v358 = vpack.c.b16 %v311, %v310
  %v359 = vpack.c.b16 %v313, %v312
  %v360 = vpack.c.b16 %v315, %v314
  %v361 = vpack.c.b16 %v317, %v316
  %v362 = vpack.c.b16 %v319, %v318
  %v363 = vpack.c.b16 %v321, %v320
  %v364 = vpack.c.b16 %v323, %v322
  %v365 = vpack.c.b16 %v325, %v324
  %406 = vmatprep.subr.bf16.mxu0 0
  %407 = vmatpush1.bf16.msra.mxu0 %v333
  %408 = vmatprep.subr.bf16.mxu0 0
  %409 = vmatpush1.bf16.msra.mxu0 %v332
  %410 = vmatprep.subr.bf16.mxu0 0
  %411 = vmatpush1.bf16.msra.mxu0 %v331
  %412 = vmatprep.subr.bf16.mxu0 0
  %413 = vmatpush1.bf16.msra.mxu0 %v330
  %414 = vmatprep.subr.bf16.mxu0 0
  %415 = vmatpush1.bf16.msra.mxu0 %v329
  %416 = vmatprep.subr.bf16.mxu0 0
  %417 = vmatpush1.bf16.msra.mxu0 %v328
  %418 = vmatprep.subr.bf16.mxu0 0
  %419 = vmatpush1.bf16.msra.mxu0 %v327
  %420 = vmatprep.subr.bf16.mxu0 0
  %421 = vmatpush1.bf16.msra.mxu0 %v326
  %422 = vmatprep.subr.bf16.mxu0 0
  %423 = vmatpush2.bf16.msra.mxu0 %v341
  %424 = vmatprep.subr.bf16.mxu0 0
  %425 = vmatpush2.bf16.msra.mxu0 %v340
  %426 = vmatprep.subr.bf16.mxu0 0
  %427 = vmatpush2.bf16.msra.mxu0 %v339
  %428 = vmatprep.subr.bf16.mxu0 0
  %429 = vmatpush2.bf16.msra.mxu0 %v338
  %430 = vmatprep.subr.bf16.mxu0 0
  %431 = vmatpush2.bf16.msra.mxu0 %v337
  %432 = vmatprep.subr.bf16.mxu0 0
  %433 = vmatpush2.bf16.msra.mxu0 %v336
  %434 = vmatprep.subr.bf16.mxu0 0
  %435 = vmatpush2.bf16.msra.mxu0 %v335
  %436 = vmatprep.subr.bf16.mxu0 0
  %437 = vmatpush2.bf16.msra.mxu0 %v334
  %438 = vmatprep.mubr.bf16.mxu0 %v147
  %439 = vmatmul.mubr.bf16.gmra.mxu0 %v146
  %v440 = vpop.f32.mrf.mxu0
  %v441 = vadd.f32 %v112, %v440
  %v442 = vpop.f32.mrf.mxu0
  %v443 = vpop.f32.mrf.mxu0
  %v444 = vadd.f32 %v112, %v443
  %v445 = vpop.f32.mrf.mxu0
  %446 = vmatprep.mubr.bf16.mxu0 %v152
  %447 = vmatmul.mubr.bf16.gmra.mxu0 %v151
  %v448 = vpop.f32.mrf.mxu0
  %v449 = vadd.f32 %v112, %v448
  %v450 = vpop.f32.mrf.mxu0
  %v451 = vpop.f32.mrf.mxu0
  %v452 = vadd.f32 %v112, %v451
  %v453 = vpop.f32.mrf.mxu0
  %454 = vdwg.mxu0
  %455 = vmatprep.subr.bf16.mxu0 0
  %456 = vmatpush1.bf16.msra.mxu0 %v349
  %457 = vmatprep.subr.bf16.mxu0 0
  %458 = vmatpush1.bf16.msra.mxu0 %v348
  %459 = vmatprep.subr.bf16.mxu0 0
  %460 = vmatpush1.bf16.msra.mxu0 %v347
  %461 = vmatprep.subr.bf16.mxu0 0
  %462 = vmatpush1.bf16.msra.mxu0 %v346
  %463 = vmatprep.subr.bf16.mxu0 0
  %464 = vmatpush1.bf16.msra.mxu0 %v345
  %465 = vmatprep.subr.bf16.mxu0 0
  %466 = vmatpush1.bf16.msra.mxu0 %v344
  %467 = vmatprep.subr.bf16.mxu0 0
  %468 = vmatpush1.bf16.msra.mxu0 %v343
  %469 = vmatprep.subr.bf16.mxu0 0
  %470 = vmatpush1.bf16.msra.mxu0 %v342
  %471 = vmatprep.subr.bf16.mxu0 0
  %472 = vmatpush2.bf16.msra.mxu0 %v357
  %473 = vmatprep.subr.bf16.mxu0 0
  %474 = vmatpush2.bf16.msra.mxu0 %v356
  %475 = vmatprep.subr.bf16.mxu0 0
  %476 = vmatpush2.bf16.msra.mxu0 %v355
  %477 = vmatprep.subr.bf16.mxu0 0
  %478 = vmatpush2.bf16.msra.mxu0 %v354
  %479 = vmatprep.subr.bf16.mxu0 0
  %480 = vmatpush2.bf16.msra.mxu0 %v353
  %481 = vmatprep.subr.bf16.mxu0 0
  %482 = vmatpush2.bf16.msra.mxu0 %v352
  %483 = vmatprep.subr.bf16.mxu0 0
  %484 = vmatpush2.bf16.msra.mxu0 %v351
  %485 = vmatprep.subr.bf16.mxu0 0
  %486 = vmatpush2.bf16.msra.mxu0 %v350
  %487 = vmatprep.mubr.bf16.mxu0 %v149
  %488 = vmatmul.mubr.bf16.gmra.mxu0 %v148
  %v489 = vpop.f32.mrf.mxu0
  %v490 = vadd.f32 %v441, %v489
  %v491 = vpop.f32.mrf.mxu0
  %v492 = vpop.f32.mrf.mxu0
  %v493 = vadd.f32 %v444, %v492
  %v494 = vpop.f32.mrf.mxu0
  %495 = vmatprep.mubr.bf16.mxu0 %v154
  %496 = vmatmul.mubr.bf16.gmra.mxu0 %v153
  %v497 = vpop.f32.mrf.mxu0
  %v498 = vadd.f32 %v449, %v497
  %v499 = vpop.f32.mrf.mxu0
  %v500 = vpop.f32.mrf.mxu0
  %v501 = vadd.f32 %v452, %v500
  %v502 = vpop.f32.mrf.mxu0
  %503 = vdwg.mxu0
  %504 = vmatprep.subr.bf16.mxu0 0
  %505 = vmatpush1.bf16.msra.mxu0 %v365
  %506 = vmatprep.subr.bf16.mxu0 0
  %507 = vmatpush1.bf16.msra.mxu0 %v364
  %508 = vmatprep.subr.bf16.mxu0 0
  %509 = vmatpush1.bf16.msra.mxu0 %v363
  %510 = vmatprep.subr.bf16.mxu0 0
  %511 = vmatpush1.bf16.msra.mxu0 %v362
  %512 = vmatprep.subr.bf16.mxu0 0
  %513 = vmatpush1.bf16.msra.mxu0 %v361
  %514 = vmatprep.subr.bf16.mxu0 0
  %515 = vmatpush1.bf16.msra.mxu0 %v360
  %516 = vmatprep.subr.bf16.mxu0 0
  %517 = vmatpush1.bf16.msra.mxu0 %v359
  %518 = vmatprep.subr.bf16.mxu0 0
  %519 = vmatpush1.bf16.msra.mxu0 %v358
  %520 = vmatprep.subr.bf16.mxu0 0
  %521 = vmatpush2.bf16.msra.mxu0 0
  %522 = vmatprep.subr.bf16.mxu0 0
  %523 = vmatpush2.bf16.msra.mxu0 0
  %524 = vmatprep.subr.bf16.mxu0 0
  %525 = vmatpush2.bf16.msra.mxu0 0
  %526 = vmatprep.subr.bf16.mxu0 0
  %527 = vmatpush2.bf16.msra.mxu0 0
  %528 = vmatprep.subr.bf16.mxu0 0
  %529 = vmatpush2.bf16.msra.mxu0 0
  %530 = vmatprep.subr.bf16.mxu0 0
  %531 = vmatpush2.bf16.msra.mxu0 0
  %532 = vmatprep.subr.bf16.mxu0 0
  %533 = vmatpush2.bf16.msra.mxu0 0
  %534 = vmatprep.subr.bf16.mxu0 0
  %535 = vmatpush2.bf16.msra.mxu0 0
  %536 = vmatprep.mubr.bf16.mxu0 0
  %537 = vmatmul.mubr.bf16.gmra.mxu0 %v150
  %v538 = vpop.f32.mrf.mxu0
  %v539 = vadd.f32 %v490, %v538
  %v540 = vpop.f32.mrf.mxu0
  %v541 = vpop.f32.mrf.mxu0
  %v542 = vadd.f32 %v493, %v541
  %v543 = vpop.f32.mrf.mxu0
  %544 = vmatprep.mubr.bf16.mxu0 0
  %545 = vmatmul.mubr.bf16.gmra.mxu0 %v155
  %v546 = vpop.f32.mrf.mxu0
  %v547 = vadd.f32 %v498, %v546
  %v548 = vpop.f32.mrf.mxu0
  %v549 = vpop.f32.mrf.mxu0
  %v550 = vadd.f32 %v501, %v549
  %v551 = vpop.f32.mrf.mxu0
  %552 = vdwg.mxu0
  %v553 = vmax.f32 %v539, 0.0
  %v554 = vmax.f32 %v542, 0.0
  %v555 = vmax.f32 %v547, 0.0
  %v556 = vmax.f32 %v550, 0.0
  %557 = vst [vmem:[%s3] sm:$0xff] %v553
  %558 = vst [vmem:[%s3 + $0x8] sm:$0xff] %v554
  %559 = vst [vmem:[%s3 + $0x10] sm:$0xff] %v555
  %560 = vst [vmem:[%s3 + $0x18] sm:$0xff] %v556
  // Predicated region
  $region14: #{guidance_forward.19} parent=0 // pred_check
    _
  $region15: #{guidance_forward.19} parent=0 // pred_check_branch
    %562 = sbr.rel (0) target = $region17
  $region16: #{guidance_forward.19} parent=0 // pred_region
    _
  $region17: #{guidance_forward.19} parent=0 // pred_fallthru
    _
  // Predicated region
  $region18: #{guidance_forward.19} parent=0 // pred_check
    _
  $region19: #{guidance_forward.19} parent=0 // pred_check_branch
    %564 = sbr.rel (0) target = $region21
  $region20: #{guidance_forward.19} parent=0 // pred_region
    _
  $region21: #{guidance_forward.19} parent=0 // pred_fallthru
    _

// kernel: guidance_forward.18
$region0: #{guidance_forward.18}
  #allocation0 [shape = 'u32[]', space=smem, size = 0x4, offset = 0x4, fixed_abs, tag = 'smem constant byte address 0x4 - core index']
  #allocation1 [shape = 'u32[144,128]{1,0:T(1,128)}', space=vmem, size = 0x12000, scoped, tag = 'internal scratch']
  %s0 = inlined_call_operand.vmem [shape: bf16[32,640], index: 0, kind: input, shape index: {}]
  %s1 = inlined_call_operand.vmem [shape: bf16[640,128], index: 1, kind: input, shape index: {}]
  %s2 = inlined_call_operand.vmem [shape: f32[1,128], index: 2, kind: input, shape index: {}]
  %s3 = inlined_call_operand.vmem [shape: f32[32,128], index: 3, kind: input, shape index: {}]
  %s4 = inlined_call_operand.vmem [shape: f32[32,128], index: 4, kind: output, shape index: {}]
  %s5 = sld [smem:[#allocation0]]
  $region26: #{guidance_forward.18} parent=0
    _
  %s7 = ssub.s32 1, %s5
  %s8 = scalar_select 0, %s7, %s5
  // Predicated region
  $region2: #{guidance_forward.18} parent=0 // pred_check
    _
  $region3: #{guidance_forward.18} parent=0 // pred_check_branch
    %10 = sbr.rel (0) target = $region5
  $region4: #{guidance_forward.18} parent=0 // pred_region
    _
  $region5: #{guidance_forward.18} parent=0 // pred_fallthru
    _
  // Predicated region
  $region6: #{guidance_forward.18} parent=0 // pred_check
    _
  $region7: #{guidance_forward.18} parent=0 // pred_check_branch
    %12 = sbr.rel (0) target = $region9
  $region8: #{guidance_forward.18} parent=0 // pred_region
    _
  $region9: #{guidance_forward.18} parent=0 // pred_fallthru
    _
  // Predicated region
  $region10: #{guidance_forward.18} parent=0 // pred_check
    _
  $region11: #{guidance_forward.18} parent=0 // pred_check_branch
    %14 = sbr.rel (0) target = $region13
  $region12: #{guidance_forward.18} parent=0 // pred_region
    _
  $region13: #{guidance_forward.18} parent=0 // pred_fallthru
    _
  // Predicated region
  $region14: #{guidance_forward.18} parent=0 // pred_check
    _
  $region15: #{guidance_forward.18} parent=0 // pred_check_branch
    %16 = sbr.rel (0) target = $region17
  $region16: #{guidance_forward.18} parent=0 // pred_region
    _
  $region17: #{guidance_forward.18} parent=0 // pred_fallthru
    _
  %v18 = vld [vmem:[%s0] sm:$0xff]
  %v19 = vld [vmem:[%s0 + $0x8] sm:$0xff]
  %v20 = vld [vmem:[%s0 + $0x10] sm:$0xf]
  %v21 = vld [vmem:[%s0 + $0x14] sm:$0xff]
  %v22 = vld [vmem:[%s0 + $0x1c] sm:$0xff]
  %v23 = vld [vmem:[%s0 + $0x24] sm:$0xf]
  %v24 = vld [vmem:[%s0 + $0x28] sm:$0xff]
  %v25 = vld [vmem:[%s0 + $0x30] sm:$0xff]
  %v26 = vld [vmem:[%s0 + $0x38] sm:$0xf]
  %v27 = vld [vmem:[%s0 + $0x3c] sm:$0xff]
  %v28 = vld [vmem:[%s0 + $0x44] sm:$0xff]
  %v29 = vld [vmem:[%s0 + $0x4c] sm:$0xf]
  %v30 = vld [vmem:[%s1] sm:$0xf]
  %v31 = vld [vmem:[%s1 + $0x4] sm:$0xf]
  %v32 = vld [vmem:[%s1 + $0x8] sm:$0xf]
  %v33 = vld [vmem:[%s1 + $0xc] sm:$0xf]
  %v34 = vld [vmem:[%s1 + $0x10] sm:$0xf]
  %v35 = vld [vmem:[%s1 + $0x14] sm:$0xf]
  %v36 = vld [vmem:[%s1 + $0x18] sm:$0xf]
  %v37 = vld [vmem:[%s1 + $0x1c] sm:$0xf]
  %v38 = vld [vmem:[%s1 + $0x20] sm:$0xf]
  %v39 = vld [vmem:[%s1 + $0x24] sm:$0xf]
  %v40 = vld [vmem:[%s1 + $0x28] sm:$0xf]
  %v41 = vld [vmem:[%s1 + $0x2c] sm:$0xf]
  %v42 = vld [vmem:[%s1 + $0x30] sm:$0xf]
  %v43 = vld [vmem:[%s1 + $0x34] sm:$0xf]
  %v44 = vld [vmem:[%s1 + $0x38] sm:$0xf]
  %v45 = vld [vmem:[%s1 + $0x3c] sm:$0xf]
  %v46 = vld [vmem:[%s1 + $0x40] sm:$0xf]
  %v47 = vld [vmem:[%s1 + $0x44] sm:$0xf]
  %v48 = vld [vmem:[%s1 + $0x48] sm:$0xf]
  %v49 = vld [vmem:[%s1 + $0x4c] sm:$0xf]
  %v50 = vld [vmem:[%s1 + $0x50] sm:$0xf]
  %v51 = vld [vmem:[%s1 + $0x54] sm:$0xf]
  %v52 = vld [vmem:[%s1 + $0x58] sm:$0xf]
  %v53 = vld [vmem:[%s1 + $0x5c] sm:$0xf]
  %v54 = vld [vmem:[%s1 + $0x60] sm:$0xf]
  %v55 = vld [vmem:[%s1 + $0x64] sm:$0xf]
  %v56 = vld [vmem:[%s1 + $0x68] sm:$0xf]
  %v57 = vld [vmem:[%s1 + $0x6c] sm:$0xf]
  %v58 = vld [vmem:[%s1 + $0x70] sm:$0xf]
  %v59 = vld [vmem:[%s1 + $0x74] sm:$0xf]
  %v60 = vld [vmem:[%s1 + $0x78] sm:$0xf]
  %v61 = vld [vmem:[%s1 + $0x7c] sm:$0xf]
  %v62 = vld [vmem:[%s1 + $0x80] sm:$0xf]
  %v63 = vld [vmem:[%s1 + $0x84] sm:$0xf]
  %v64 = vld [vmem:[%s1 + $0x88] sm:$0xf]
  %v65 = vld [vmem:[%s1 + $0x8c] sm:$0xf]
  %v66 = vld [vmem:[%s1 + $0x90] sm:$0xf]
  %v67 = vld [vmem:[%s1 + $0x94] sm:$0xf]
  %v68 = vld [vmem:[%s1 + $0x98] sm:$0xf]
  %v69 = vld [vmem:[%s1 + $0x9c] sm:$0xf]
  %v70 = vld [vmem:[%s1 + $0xa0] sm:$0xf]
  %v71 = vld [vmem:[%s1 + $0xa4] sm:$0xf]
  %v72 = vld [vmem:[%s1 + $0xa8] sm:$0xf]
  %v73 = vld [vmem:[%s1 + $0xac] sm:$0xf]
  %v74 = vld [vmem:[%s1 + $0xb0] sm:$0xf]
  %v75 = vld [vmem:[%s1 + $0xb4] sm:$0xf]
  %v76 = vld [vmem:[%s1 + $0xb8] sm:$0xf]
  %v77 = vld [vmem:[%s1 + $0xbc] sm:$0xf]
  %v78 = vld [vmem:[%s1 + $0xc0] sm:$0xf]
  %v79 = vld [vmem:[%s1 + $0xc4] sm:$0xf]
  %v80 = vld [vmem:[%s1 + $0xc8] sm:$0xf]
  %v81 = vld [vmem:[%s1 + $0xcc] sm:$0xf]
  %v82 = vld [vmem:[%s1 + $0xd0] sm:$0xf]
  %v83 = vld [vmem:[%s1 + $0xd4] sm:$0xf]
  %v84 = vld [vmem:[%s1 + $0xd8] sm:$0xf]
  %v85 = vld [vmem:[%s1 + $0xdc] sm:$0xf]
  %v86 = vld [vmem:[%s1 + $0xe0] sm:$0xf]
  %v87 = vld [vmem:[%s1 + $0xe4] sm:$0xf]
  %v88 = vld [vmem:[%s1 + $0xe8] sm:$0xf]
  %v89 = vld [vmem:[%s1 + $0xec] sm:$0xf]
  %v90 = vld [vmem:[%s1 + $0xf0] sm:$0xf]
  %v91 = vld [vmem:[%s1 + $0xf4] sm:$0xf]
  %v92 = vld [vmem:[%s1 + $0xf8] sm:$0xf]
  %v93 = vld [vmem:[%s1 + $0xfc] sm:$0xf]
  %v94 = vld [vmem:[%s1 + $0x100] sm:$0xf]
  %v95 = vld [vmem:[%s1 + $0x104] sm:$0xf]
  %v96 = vld [vmem:[%s1 + $0x108] sm:$0xf]
  %v97 = vld [vmem:[%s1 + $0x10c] sm:$0xf]
  %v98 = vld [vmem:[%s1 + $0x110] sm:$0xf]
  %v99 = vld [vmem:[%s1 + $0x114] sm:$0xf]
  %v100 = vld [vmem:[%s1 + $0x118] sm:$0xf]
  %v101 = vld [vmem:[%s1 + $0x11c] sm:$0xf]
  %v102 = vld [vmem:[%s1 + $0x120] sm:$0xf]
  %v103 = vld [vmem:[%s1 + $0x124] sm:$0xf]
  %v104 = vld [vmem:[%s1 + $0x128] sm:$0xf]
  %v105 = vld [vmem:[%s1 + $0x12c] sm:$0xf]
  %v106 = vld [vmem:[%s1 + $0x130] sm:$0xf]
  %v107 = vld [vmem:[%s1 + $0x134] sm:$0xf]
  %v108 = vld [vmem:[%s1 + $0x138] sm:$0xf]
  %v109 = vld [vmem:[%s1 + $0x13c] sm:$0xf]
  %v110 = vld [vmem:[%s2] sm:$0x1]
  %v112 = vlaneseq
  %v113 = vshrl.u32 %v112, 7
  %v114 = vsub.s32 0, %v113
  %v115 = vrot.slane %v110, %v114
  %v129 = vunpack.c.l.b16 %v18
  %v130 = vunpack.c.h.b16 %v18
  %v131 = vunpack.c.l.b16 %v19
  %v132 = vunpack.c.h.b16 %v19
  %v133 = vunpack.c.l.b16 %v20
  %v134 = vunpack.c.l.b16 %v21
  %v135 = vunpack.c.h.b16 %v21
  %v136 = vunpack.c.l.b16 %v22
  %v137 = vunpack.c.h.b16 %v22
  %v138 = vunpack.c.l.b16 %v23
  %v139 = vunpack.c.l.b16 %v24
  %v140 = vunpack.c.h.b16 %v24
  %v141 = vunpack.c.l.b16 %v25
  %v142 = vunpack.c.h.b16 %v25
  %v143 = vunpack.c.l.b16 %v26
  %v144 = vunpack.c.l.b16 %v27
  %v145 = vunpack.c.h.b16 %v27
  %v146 = vunpack.c.l.b16 %v28
  %v147 = vunpack.c.h.b16 %v28
  %v148 = vunpack.c.l.b16 %v29
  %v149 = vpack.c.b16 %v134, %v129
  %v150 = vpack.c.b16 %v135, %v130
  %v151 = vpack.c.b16 %v136, %v131
  %v152 = vpack.c.b16 %v137, %v132
  %v153 = vpack.c.b16 %v138, %v133
  %v154 = vpack.c.b16 %v144, %v139
  %v155 = vpack.c.b16 %v145, %v140
  %v156 = vpack.c.b16 %v146, %v141
  %v157 = vpack.c.b16 %v147, %v142
  %v158 = vpack.c.b16 %v148, %v143
  %v249 = vunpack.c.l.b16 %v30
  %v250 = vunpack.c.l.b16 %v31
  %v251 = vunpack.c.l.b16 %v32
  %v252 = vunpack.c.l.b16 %v33
  %v253 = vunpack.c.l.b16 %v34
  %v254 = vunpack.c.l.b16 %v35
  %v255 = vunpack.c.l.b16 %v36
  %v256 = vunpack.c.l.b16 %v37
  %v257 = vunpack.c.l.b16 %v38
  %v258 = vunpack.c.l.b16 %v39
  %v259 = vunpack.c.l.b16 %v40
  %v260 = vunpack.c.l.b16 %v41
  %v261 = vunpack.c.l.b16 %v42
  %v262 = vunpack.c.l.b16 %v43
  %v263 = vunpack.c.l.b16 %v44
  %v264 = vunpack.c.l.b16 %v45
  %v265 = vunpack.c.l.b16 %v46
  %v266 = vunpack.c.l.b16 %v47
  %v267 = vunpack.c.l.b16 %v48
  %v268 = vunpack.c.l.b16 %v49
  %v269 = vunpack.c.l.b16 %v50
  %v270 = vunpack.c.l.b16 %v51
  %v271 = vunpack.c.l.b16 %v52
  %v272 = vunpack.c.l.b16 %v53
  %v273 = vunpack.c.l.b16 %v54
  %v274 = vunpack.c.l.b16 %v55
  %v275 = vunpack.c.l.b16 %v56
  %v276 = vunpack.c.l.b16 %v57
  %v277 = vunpack.c.l.b16 %v58
  %v278 = vunpack.c.l.b16 %v59
  %v279 = vunpack.c.l.b16 %v60
  %v280 = vunpack.c.l.b16 %v61
  %v281 = vunpack.c.l.b16 %v62
  %v282 = vunpack.c.l.b16 %v63
  %v283 = vunpack.c.l.b16 %v64
  %v284 = vunpack.c.l.b16 %v65
  %v285 = vunpack.c.l.b16 %v66
  %v286 = vunpack.c.l.b16 %v67
  %v287 = vunpack.c.l.b16 %v68
  %v288 = vunpack.c.l.b16 %v69
  %v289 = vunpack.c.l.b16 %v70
  %v290 = vunpack.c.l.b16 %v71
  %v291 = vunpack.c.l.b16 %v72
  %v292 = vunpack.c.l.b16 %v73
  %v293 = vunpack.c.l.b16 %v74
  %v294 = vunpack.c.l.b16 %v75
  %v295 = vunpack.c.l.b16 %v76
  %v296 = vunpack.c.l.b16 %v77
  %v297 = vunpack.c.l.b16 %v78
  %v298 = vunpack.c.l.b16 %v79
  %v299 = vunpack.c.l.b16 %v80
  %v300 = vunpack.c.l.b16 %v81
  %v301 = vunpack.c.l.b16 %v82
  %v302 = vunpack.c.l.b16 %v83
  %v303 = vunpack.c.l.b16 %v84
  %v304 = vunpack.c.l.b16 %v85
  %v305 = vunpack.c.l.b16 %v86
  %v306 = vunpack.c.l.b16 %v87
  %v307 = vunpack.c.l.b16 %v88
  %v308 = vunpack.c.l.b16 %v89
  %v309 = vunpack.c.l.b16 %v90
  %v310 = vunpack.c.l.b16 %v91
  %v311 = vunpack.c.l.b16 %v92
  %v312 = vunpack.c.l.b16 %v93
  %v313 = vunpack.c.l.b16 %v94
  %v314 = vunpack.c.l.b16 %v95
  %v315 = vunpack.c.l.b16 %v96
  %v316 = vunpack.c.l.b16 %v97
  %v317 = vunpack.c.l.b16 %v98
  %v318 = vunpack.c.l.b16 %v99
  %v319 = vunpack.c.l.b16 %v100
  %v320 = vunpack.c.l.b16 %v101
  %v321 = vunpack.c.l.b16 %v102
  %v322 = vunpack.c.l.b16 %v103
  %v323 = vunpack.c.l.b16 %v104
  %v324 = vunpack.c.l.b16 %v105
  %v325 = vunpack.c.l.b16 %v106
  %v326 = vunpack.c.l.b16 %v107
  %v327 = vunpack.c.l.b16 %v108
  %v328 = vunpack.c.l.b16 %v109
  %v329 = vpack.c.b16 %v250, %v249
  %v330 = vpack.c.b16 %v252, %v251
  %v331 = vpack.c.b16 %v254, %v253
  %v332 = vpack.c.b16 %v256, %v255
  %v333 = vpack.c.b16 %v258, %v257
  %v334 = vpack.c.b16 %v260, %v259
  %v335 = vpack.c.b16 %v262, %v261
  %v336 = vpack.c.b16 %v264, %v263
  %v337 = vpack.c.b16 %v266, %v265
  %v338 = vpack.c.b16 %v268, %v267
  %v339 = vpack.c.b16 %v270, %v269
  %v340 = vpack.c.b16 %v272, %v271
  %v341 = vpack.c.b16 %v274, %v273
  %v342 = vpack.c.b16 %v276, %v275
  %v343 = vpack.c.b16 %v278, %v277
  %v344 = vpack.c.b16 %v280, %v279
  %v345 = vpack.c.b16 %v282, %v281
  %v346 = vpack.c.b16 %v284, %v283
  %v347 = vpack.c.b16 %v286, %v285
  %v348 = vpack.c.b16 %v288, %v287
  %v349 = vpack.c.b16 %v290, %v289
  %v350 = vpack.c.b16 %v292, %v291
  %v351 = vpack.c.b16 %v294, %v293
  %v352 = vpack.c.b16 %v296, %v295
  %v353 = vpack.c.b16 %v298, %v297
  %v354 = vpack.c.b16 %v300, %v299
  %v355 = vpack.c.b16 %v302, %v301
  %v356 = vpack.c.b16 %v304, %v303
  %v357 = vpack.c.b16 %v306, %v305
  %v358 = vpack.c.b16 %v308, %v307
  %v359 = vpack.c.b16 %v310, %v309
  %v360 = vpack.c.b16 %v312, %v311
  %v361 = vpack.c.b16 %v314, %v313
  %v362 = vpack.c.b16 %v316, %v315
  %v363 = vpack.c.b16 %v318, %v317
  %v364 = vpack.c.b16 %v320, %v319
  %v365 = vpack.c.b16 %v322, %v321
  %v366 = vpack.c.b16 %v324, %v323
  %v367 = vpack.c.b16 %v326, %v325
  %v368 = vpack.c.b16 %v328, %v327
  %409 = vmatprep.subr.bf16.mxu0 0
  %410 = vmatpush1.bf16.msra.mxu0 %v336
  %411 = vmatprep.subr.bf16.mxu0 0
  %412 = vmatpush1.bf16.msra.mxu0 %v335
  %413 = vmatprep.subr.bf16.mxu0 0
  %414 = vmatpush1.bf16.msra.mxu0 %v334
  %415 = vmatprep.subr.bf16.mxu0 0
  %416 = vmatpush1.bf16.msra.mxu0 %v333
  %417 = vmatprep.subr.bf16.mxu0 0
  %418 = vmatpush1.bf16.msra.mxu0 %v332
  %419 = vmatprep.subr.bf16.mxu0 0
  %420 = vmatpush1.bf16.msra.mxu0 %v331
  %421 = vmatprep.subr.bf16.mxu0 0
  %422 = vmatpush1.bf16.msra.mxu0 %v330
  %423 = vmatprep.subr.bf16.mxu0 0
  %424 = vmatpush1.bf16.msra.mxu0 %v329
  %425 = vmatprep.subr.bf16.mxu0 0
  %426 = vmatpush2.bf16.msra.mxu0 %v344
  %427 = vmatprep.subr.bf16.mxu0 0
  %428 = vmatpush2.bf16.msra.mxu0 %v343
  %429 = vmatprep.subr.bf16.mxu0 0
  %430 = vmatpush2.bf16.msra.mxu0 %v342
  %431 = vmatprep.subr.bf16.mxu0 0
  %432 = vmatpush2.bf16.msra.mxu0 %v341
  %433 = vmatprep.subr.bf16.mxu0 0
  %434 = vmatpush2.bf16.msra.mxu0 %v340
  %435 = vmatprep.subr.bf16.mxu0 0
  %436 = vmatpush2.bf16.msra.mxu0 %v339
  %437 = vmatprep.subr.bf16.mxu0 0
  %438 = vmatpush2.bf16.msra.mxu0 %v338
  %439 = vmatprep.subr.bf16.mxu0 0
  %440 = vmatpush2.bf16.msra.mxu0 %v337
  %441 = vmatprep.mubr.bf16.mxu0 %v150
  %442 = vmatmul.mubr.bf16.gmra.mxu0 %v149
  %v443 = vpop.f32.mrf.mxu0
  %v444 = vadd.f32 %v115, %v443
  %v445 = vpop.f32.mrf.mxu0
  %v446 = vpop.f32.mrf.mxu0
  %v447 = vadd.f32 %v115, %v446
  %v448 = vpop.f32.mrf.mxu0
  %449 = vmatprep.mubr.bf16.mxu0 %v155
  %450 = vmatmul.mubr.bf16.gmra.mxu0 %v154
  %v451 = vpop.f32.mrf.mxu0
  %v452 = vadd.f32 %v115, %v451
  %v453 = vpop.f32.mrf.mxu0
  %v454 = vpop.f32.mrf.mxu0
  %v455 = vadd.f32 %v115, %v454
  %v456 = vpop.f32.mrf.mxu0
  %457 = vdwg.mxu0
  %458 = vmatprep.subr.bf16.mxu0 0
  %459 = vmatpush1.bf16.msra.mxu0 %v352
  %460 = vmatprep.subr.bf16.mxu0 0
  %461 = vmatpush1.bf16.msra.mxu0 %v351
  %462 = vmatprep.subr.bf16.mxu0 0
  %463 = vmatpush1.bf16.msra.mxu0 %v350
  %464 = vmatprep.subr.bf16.mxu0 0
  %465 = vmatpush1.bf16.msra.mxu0 %v349
  %466 = vmatprep.subr.bf16.mxu0 0
  %467 = vmatpush1.bf16.msra.mxu0 %v348
  %468 = vmatprep.subr.bf16.mxu0 0
  %469 = vmatpush1.bf16.msra.mxu0 %v347
  %470 = vmatprep.subr.bf16.mxu0 0
  %471 = vmatpush1.bf16.msra.mxu0 %v346
  %472 = vmatprep.subr.bf16.mxu0 0
  %473 = vmatpush1.bf16.msra.mxu0 %v345
  %474 = vmatprep.subr.bf16.mxu0 0
  %475 = vmatpush2.bf16.msra.mxu0 %v360
  %476 = vmatprep.subr.bf16.mxu0 0
  %477 = vmatpush2.bf16.msra.mxu0 %v359
  %478 = vmatprep.subr.bf16.mxu0 0
  %479 = vmatpush2.bf16.msra.mxu0 %v358
  %480 = vmatprep.subr.bf16.mxu0 0
  %481 = vmatpush2.bf16.msra.mxu0 %v357
  %482 = vmatprep.subr.bf16.mxu0 0
  %483 = vmatpush2.bf16.msra.mxu0 %v356
  %484 = vmatprep.subr.bf16.mxu0 0
  %485 = vmatpush2.bf16.msra.mxu0 %v355
  %486 = vmatprep.subr.bf16.mxu0 0
  %487 = vmatpush2.bf16.msra.mxu0 %v354
  %488 = vmatprep.subr.bf16.mxu0 0
  %489 = vmatpush2.bf16.msra.mxu0 %v353
  %490 = vmatprep.mubr.bf16.mxu0 %v152
  %491 = vmatmul.mubr.bf16.gmra.mxu0 %v151
  %v492 = vpop.f32.mrf.mxu0
  %v493 = vadd.f32 %v444, %v492
  %v494 = vpop.f32.mrf.mxu0
  %v495 = vpop.f32.mrf.mxu0
  %v496 = vadd.f32 %v447, %v495
  %v497 = vpop.f32.mrf.mxu0
  %498 = vmatprep.mubr.bf16.mxu0 %v157
  %499 = vmatmul.mubr.bf16.gmra.mxu0 %v156
  %v500 = vpop.f32.mrf.mxu0
  %v501 = vadd.f32 %v452, %v500
  %v502 = vpop.f32.mrf.mxu0
  %v503 = vpop.f32.mrf.mxu0
  %v504 = vadd.f32 %v455, %v503
  %v505 = vpop.f32.mrf.mxu0
  %506 = vdwg.mxu0
  %507 = vmatprep.subr.bf16.mxu0 0
  %508 = vmatpush1.bf16.msra.mxu0 %v368
  %509 = vmatprep.subr.bf16.mxu0 0
  %510 = vmatpush1.bf16.msra.mxu0 %v367
  %511 = vmatprep.subr.bf16.mxu0 0
  %512 = vmatpush1.bf16.msra.mxu0 %v366
  %513 = vmatprep.subr.bf16.mxu0 0
  %514 = vmatpush1.bf16.msra.mxu0 %v365
  %515 = vmatprep.subr.bf16.mxu0 0
  %516 = vmatpush1.bf16.msra.mxu0 %v364
  %517 = vmatprep.subr.bf16.mxu0 0
  %518 = vmatpush1.bf16.msra.mxu0 %v363
  %519 = vmatprep.subr.bf16.mxu0 0
  %520 = vmatpush1.bf16.msra.mxu0 %v362
  %521 = vmatprep.subr.bf16.mxu0 0
  %522 = vmatpush1.bf16.msra.mxu0 %v361
  %523 = vmatprep.subr.bf16.mxu0 0
  %524 = vmatpush2.bf16.msra.mxu0 0
  %525 = vmatprep.subr.bf16.mxu0 0
  %526 = vmatpush2.bf16.msra.mxu0 0
  %527 = vmatprep.subr.bf16.mxu0 0
  %528 = vmatpush2.bf16.msra.mxu0 0
  %529 = vmatprep.subr.bf16.mxu0 0
  %530 = vmatpush2.bf16.msra.mxu0 0
  %531 = vmatprep.subr.bf16.mxu0 0
  %532 = vmatpush2.bf16.msra.mxu0 0
  %533 = vmatprep.subr.bf16.mxu0 0
  %534 = vmatpush2.bf16.msra.mxu0 0
  %535 = vmatprep.subr.bf16.mxu0 0
  %536 = vmatpush2.bf16.msra.mxu0 0
  %537 = vmatprep.subr.bf16.mxu0 0
  %538 = vmatpush2.bf16.msra.mxu0 0
  %539 = vmatprep.mubr.bf16.mxu0 0
  %540 = vmatmul.mubr.bf16.gmra.mxu0 %v153
  %v541 = vpop.f32.mrf.mxu0
  %v542 = vadd.f32 %v493, %v541
  %v543 = vpop.f32.mrf.mxu0
  %v544 = vpop.f32.mrf.mxu0
  %v545 = vadd.f32 %v496, %v544
  %v546 = vpop.f32.mrf.mxu0
  %547 = vmatprep.mubr.bf16.mxu0 0
  %548 = vmatmul.mubr.bf16.gmra.mxu0 %v158
  %v549 = vpop.f32.mrf.mxu0
  %v550 = vadd.f32 %v501, %v549
  %v551 = vpop.f32.mrf.mxu0
  %v552 = vpop.f32.mrf.mxu0
  %v553 = vadd.f32 %v504, %v552
  %v554 = vpop.f32.mrf.mxu0
  %555 = vdwg.mxu0
  %v556 = vmax.f32 %v542, 0.0
  %v557 = vmax.f32 %v545, 0.0
  %v558 = vmax.f32 %v550, 0.0
  %v559 = vmax.f32 %v553, 0.0
  %v560 = vld [vmem:[%s3] sm:$0xff]
  %v561 = vld [vmem:[%s3 + $0x8] sm:$0xff]
  %v562 = vld [vmem:[%s3 + $0x10] sm:$0xff]
  %v563 = vld [vmem:[%s3 + $0x18] sm:$0xff]
  %v564 = vadd.f32 %v556, %v560
  %v565 = vadd.f32 %v557, %v561
  %v566 = vadd.f32 %v558, %v562
  %v567 = vadd.f32 %v559, %v563
  %v568 = vmax.f32 %v564, 0.0
  %v569 = vmax.f32 %v565, 0.0
  %v570 = vmax.f32 %v566, 0.0
  %v571 = vmax.f32 %v567, 0.0
  %572 = vst [vmem:[%s4] sm:$0xff] %v568
  %573 = vst [vmem:[%s4 + $0x8] sm:$0xff] %v569
  %574 = vst [vmem:[%s4 + $0x10] sm:$0xff] %v570
  %575 = vst [vmem:[%s4 + $0x18] sm:$0xff] %v571
  // Predicated region
  $region18: #{guidance_forward.18} parent=0 // pred_check
    _
  $region19: #{guidance_forward.18} parent=0 // pred_check_branch
    %577 = sbr.rel (0) target = $region21
  $region20: #{guidance_forward.18} parent=0 // pred_region
    _
  $region21: #{guidance_forward.18} parent=0 // pred_fallthru
    _
  // Predicated region
  $region22: #{guidance_forward.18} parent=0 // pred_check
    _
  $region23: #{guidance_forward.18} parent=0 // pred_check_branch
    %579 = sbr.rel (0) target = $region25
  $region24: #{guidance_forward.18} parent=0 // pred_region
    _
  $region25: #{guidance_forward.18} parent=0 // pred_fallthru
    _

// kernel: guidance_forward.21
$region0: #{guidance_forward.21}
  #allocation0 [shape = 'u32[]', space=smem, size = 0x4, offset = 0x4, fixed_abs, tag = 'smem constant byte address 0x4 - core index']
  #allocation1 [shape = 'u32[144,128]{1,0:T(1,128)}', space=vmem, size = 0x12000, scoped, tag = 'internal scratch']
  %s0 = inlined_call_operand.vmem [shape: bf16[32,640], index: 0, kind: input, shape index: {}]
  %s1 = inlined_call_operand.vmem [shape: bf16[640,128], index: 1, kind: input, shape index: {}]
  %s2 = inlined_call_operand.vmem [shape: f32[1,128], index: 2, kind: input, shape index: {}]
  %s3 = inlined_call_operand.hbm [shape: f32[32,128], index: 3, kind: output, shape index: {}]
  %s4 = sld [smem:[#allocation0]]
  $region22: #{guidance_forward.21} parent=0
    _
  %s6 = ssub.s32 1, %s4
  %s7 = scalar_select 0, %s6, %s4
  $region1: #{guidance_forward.21} parent=0
    #allocation2 [shape = 'u8[16384]{0}', space=vmem, size = 0x4000, scoped, tag = 'output window, operand 0, single buffered']
    #allocation3 [shape = 's32[1]{0}', space=sflag, size = 0x4, scoped, tag = 'scoped memory for guidance_forward.21']
    %8 = vsyncpa [#allocation3], 0
    // Predicated region
    $region2: #{guidance_forward.21} parent=1 // pred_check
      _
    $region3: #{guidance_forward.21} parent=1 // pred_check_branch
      %10 = sbr.rel (0) target = $region5
    $region4: #{guidance_forward.21} parent=1 // pred_region
      _
    $region5: #{guidance_forward.21} parent=1 // pred_fallthru
      _
    // Predicated region
    $region6: #{guidance_forward.21} parent=1 // pred_check
      _
    $region7: #{guidance_forward.21} parent=1 // pred_check_branch
      %12 = sbr.rel (0) target = $region9
    $region8: #{guidance_forward.21} parent=1 // pred_region
      _
    $region9: #{guidance_forward.21} parent=1 // pred_fallthru
      _
    // Predicated region
    $region10: #{guidance_forward.21} parent=1 // pred_check
      _
    $region11: #{guidance_forward.21} parent=1 // pred_check_branch
      %14 = sbr.rel (0) target = $region13
    $region12: #{guidance_forward.21} parent=1 // pred_region
      _
    $region13: #{guidance_forward.21} parent=1 // pred_fallthru
      _
    %v16 = vld [vmem:[%s0] sm:$0xff]
    %v17 = vld [vmem:[%s0 + $0x8] sm:$0xff]
    %v18 = vld [vmem:[%s0 + $0x10] sm:$0xf]
    %v19 = vld [vmem:[%s0 + $0x14] sm:$0xff]
    %v20 = vld [vmem:[%s0 + $0x1c] sm:$0xff]
    %v21 = vld [vmem:[%s0 + $0x24] sm:$0xf]
    %v22 = vld [vmem:[%s0 + $0x28] sm:$0xff]
    %v23 = vld [vmem:[%s0 + $0x30] sm:$0xff]
    %v24 = vld [vmem:[%s0 + $0x38] sm:$0xf]
    %v25 = vld [vmem:[%s0 + $0x3c] sm:$0xff]
    %v26 = vld [vmem:[%s0 + $0x44] sm:$0xff]
    %v27 = vld [vmem:[%s0 + $0x4c] sm:$0xf]
    %v28 = vld [vmem:[%s1] sm:$0xf]
    %v29 = vld [vmem:[%s1 + $0x4] sm:$0xf]
    %v30 = vld [vmem:[%s1 + $0x8] sm:$0xf]
    %v31 = vld [vmem:[%s1 + $0xc] sm:$0xf]
    %v32 = vld [vmem:[%s1 + $0x10] sm:$0xf]
    %v33 = vld [vmem:[%s1 + $0x14] sm:$0xf]
    %v34 = vld [vmem:[%s1 + $0x18] sm:$0xf]
    %v35 = vld [vmem:[%s1 + $0x1c] sm:$0xf]
    %v36 = vld [vmem:[%s1 + $0x20] sm:$0xf]
    %v37 = vld [vmem:[%s1 + $0x24] sm:$0xf]
    %v38 = vld [vmem:[%s1 + $0x28] sm:$0xf]
    %v39 = vld [vmem:[%s1 + $0x2c] sm:$0xf]
    %v40 = vld [vmem:[%s1 + $0x30] sm:$0xf]
    %v41 = vld [vmem:[%s1 + $0x34] sm:$0xf]
    %v42 = vld [vmem:[%s1 + $0x38] sm:$0xf]
    %v43 = vld [vmem:[%s1 + $0x3c] sm:$0xf]
    %v44 = vld [vmem:[%s1 + $0x40] sm:$0xf]
    %v45 = vld [vmem:[%s1 + $0x44] sm:$0xf]
    %v46 = vld [vmem:[%s1 + $0x48] sm:$0xf]
    %v47 = vld [vmem:[%s1 + $0x4c] sm:$0xf]
    %v48 = vld [vmem:[%s1 + $0x50] sm:$0xf]
    %v49 = vld [vmem:[%s1 + $0x54] sm:$0xf]
    %v50 = vld [vmem:[%s1 + $0x58] sm:$0xf]
    %v51 = vld [vmem:[%s1 + $0x5c] sm:$0xf]
    %v52 = vld [vmem:[%s1 + $0x60] sm:$0xf]
    %v53 = vld [vmem:[%s1 + $0x64] sm:$0xf]
    %v54 = vld [vmem:[%s1 + $0x68] sm:$0xf]
    %v55 = vld [vmem:[%s1 + $0x6c] sm:$0xf]
    %v56 = vld [vmem:[%s1 + $0x70] sm:$0xf]
    %v57 = vld [vmem:[%s1 + $0x74] sm:$0xf]
    %v58 = vld [vmem:[%s1 + $0x78] sm:$0xf]
    %v59 = vld [vmem:[%s1 + $0x7c] sm:$0xf]
    %v60 = vld [vmem:[%s1 + $0x80] sm:$0xf]
    %v61 = vld [vmem:[%s1 + $0x84] sm:$0xf]
    %v62 = vld [vmem:[%s1 + $0x88] sm:$0xf]
    %v63 = vld [vmem:[%s1 + $0x8c] sm:$0xf]
    %v64 = vld [vmem:[%s1 + $0x90] sm:$0xf]
    %v65 = vld [vmem:[%s1 + $0x94] sm:$0xf]
    %v66 = vld [vmem:[%s1 + $0x98] sm:$0xf]
    %v67 = vld [vmem:[%s1 + $0x9c] sm:$0xf]
    %v68 = vld [vmem:[%s1 + $0xa0] sm:$0xf]
    %v69 = vld [vmem:[%s1 + $0xa4] sm:$0xf]
    %v70 = vld [vmem:[%s1 + $0xa8] sm:$0xf]
    %v71 = vld [vmem:[%s1 + $0xac] sm:$0xf]
    %v72 = vld [vmem:[%s1 + $0xb0] sm:$0xf]
    %v73 = vld [vmem:[%s1 + $0xb4] sm:$0xf]
    %v74 = vld [vmem:[%s1 + $0xb8] sm:$0xf]
    %v75 = vld [vmem:[%s1 + $0xbc] sm:$0xf]
    %v76 = vld [vmem:[%s1 + $0xc0] sm:$0xf]
    %v77 = vld [vmem:[%s1 + $0xc4] sm:$0xf]
    %v78 = vld [vmem:[%s1 + $0xc8] sm:$0xf]
    %v79 = vld [vmem:[%s1 + $0xcc] sm:$0xf]
    %v80 = vld [vmem:[%s1 + $0xd0] sm:$0xf]
    %v81 = vld [vmem:[%s1 + $0xd4] sm:$0xf]
    %v82 = vld [vmem:[%s1 + $0xd8] sm:$0xf]
    %v83 = vld [vmem:[%s1 + $0xdc] sm:$0xf]
    %v84 = vld [vmem:[%s1 + $0xe0] sm:$0xf]
    %v85 = vld [vmem:[%s1 + $0xe4] sm:$0xf]
    %v86 = vld [vmem:[%s1 + $0xe8] sm:$0xf]
    %v87 = vld [vmem:[%s1 + $0xec] sm:$0xf]
    %v88 = vld [vmem:[%s1 + $0xf0] sm:$0xf]
    %v89 = vld [vmem:[%s1 + $0xf4] sm:$0xf]
    %v90 = vld [vmem:[%s1 + $0xf8] sm:$0xf]
    %v91 = vld [vmem:[%s1 + $0xfc] sm:$0xf]
    %v92 = vld [vmem:[%s1 + $0x100] sm:$0xf]
    %v93 = vld [vmem:[%s1 + $0x104] sm:$0xf]
    %v94 = vld [vmem:[%s1 + $0x108] sm:$0xf]
    %v95 = vld [vmem:[%s1 + $0x10c] sm:$0xf]
    %v96 = vld [vmem:[%s1 + $0x110] sm:$0xf]
    %v97 = vld [vmem:[%s1 + $0x114] sm:$0xf]
    %v98 = vld [vmem:[%s1 + $0x118] sm:$0xf]
    %v99 = vld [vmem:[%s1 + $0x11c] sm:$0xf]
    %v100 = vld [vmem:[%s1 + $0x120] sm:$0xf]
    %v101 = vld [vmem:[%s1 + $0x124] sm:$0xf]
    %v102 = vld [vmem:[%s1 + $0x128] sm:$0xf]
    %v103 = vld [vmem:[%s1 + $0x12c] sm:$0xf]
    %v104 = vld [vmem:[%s1 + $0x130] sm:$0xf]
    %v105 = vld [vmem:[%s1 + $0x134] sm:$0xf]
    %v106 = vld [vmem:[%s1 + $0x138] sm:$0xf]
    %v107 = vld [vmem:[%s1 + $0x13c] sm:$0xf]
    %v108 = vld [vmem:[%s2] sm:$0x1]
    %v110 = vlaneseq
    %v111 = vshrl.u32 %v110, 7
    %v112 = vsub.s32 0, %v111
    %v113 = vrot.slane %v108, %v112
    %v127 = vunpack.c.l.b16 %v16
    %v128 = vunpack.c.h.b16 %v16
    %v129 = vunpack.c.l.b16 %v17
    %v130 = vunpack.c.h.b16 %v17
    %v131 = vunpack.c.l.b16 %v18
    %v132 = vunpack.c.l.b16 %v19
    %v133 = vunpack.c.h.b16 %v19
    %v134 = vunpack.c.l.b16 %v20
    %v135 = vunpack.c.h.b16 %v20
    %v136 = vunpack.c.l.b16 %v21
    %v137 = vunpack.c.l.b16 %v22
    %v138 = vunpack.c.h.b16 %v22
    %v139 = vunpack.c.l.b16 %v23
    %v140 = vunpack.c.h.b16 %v23
    %v141 = vunpack.c.l.b16 %v24
    %v142 = vunpack.c.l.b16 %v25
    %v143 = vunpack.c.h.b16 %v25
    %v144 = vunpack.c.l.b16 %v26
    %v145 = vunpack.c.h.b16 %v26
    %v146 = vunpack.c.l.b16 %v27
    %v147 = vpack.c.b16 %v132, %v127
    %v148 = vpack.c.b16 %v133, %v128
    %v149 = vpack.c.b16 %v134, %v129
    %v150 = vpack.c.b16 %v135, %v130
    %v151 = vpack.c.b16 %v136, %v131
    %v152 = vpack.c.b16 %v142, %v137
    %v153 = vpack.c.b16 %v143, %v138
    %v154 = vpack.c.b16 %v144, %v139
    %v155 = vpack.c.b16 %v145, %v140
    %v156 = vpack.c.b16 %v146, %v141
    %v247 = vunpack.c.l.b16 %v28
    %v248 = vunpack.c.l.b16 %v29
    %v249 = vunpack.c.l.b16 %v30
    %v250 = vunpack.c.l.b16 %v31
    %v251 = vunpack.c.l.b16 %v32
    %v252 = vunpack.c.l.b16 %v33
    %v253 = vunpack.c.l.b16 %v34
    %v254 = vunpack.c.l.b16 %v35
    %v255 = vunpack.c.l.b16 %v36
    %v256 = vunpack.c.l.b16 %v37
    %v257 = vunpack.c.l.b16 %v38
    %v258 = vunpack.c.l.b16 %v39
    %v259 = vunpack.c.l.b16 %v40
    %v260 = vunpack.c.l.b16 %v41
    %v261 = vunpack.c.l.b16 %v42
    %v262 = vunpack.c.l.b16 %v43
    %v263 = vunpack.c.l.b16 %v44
    %v264 = vunpack.c.l.b16 %v45
    %v265 = vunpack.c.l.b16 %v46
    %v266 = vunpack.c.l.b16 %v47
    %v267 = vunpack.c.l.b16 %v48
    %v268 = vunpack.c.l.b16 %v49
    %v269 = vunpack.c.l.b16 %v50
    %v270 = vunpack.c.l.b16 %v51
    %v271 = vunpack.c.l.b16 %v52
    %v272 = vunpack.c.l.b16 %v53
    %v273 = vunpack.c.l.b16 %v54
    %v274 = vunpack.c.l.b16 %v55
    %v275 = vunpack.c.l.b16 %v56
    %v276 = vunpack.c.l.b16 %v57
    %v277 = vunpack.c.l.b16 %v58
    %v278 = vunpack.c.l.b16 %v59
    %v279 = vunpack.c.l.b16 %v60
    %v280 = vunpack.c.l.b16 %v61
    %v281 = vunpack.c.l.b16 %v62
    %v282 = vunpack.c.l.b16 %v63
    %v283 = vunpack.c.l.b16 %v64
    %v284 = vunpack.c.l.b16 %v65
    %v285 = vunpack.c.l.b16 %v66
    %v286 = vunpack.c.l.b16 %v67
    %v287 = vunpack.c.l.b16 %v68
    %v288 = vunpack.c.l.b16 %v69
    %v289 = vunpack.c.l.b16 %v70
    %v290 = vunpack.c.l.b16 %v71
    %v291 = vunpack.c.l.b16 %v72
    %v292 = vunpack.c.l.b16 %v73
    %v293 = vunpack.c.l.b16 %v74
    %v294 = vunpack.c.l.b16 %v75
    %v295 = vunpack.c.l.b16 %v76
    %v296 = vunpack.c.l.b16 %v77
    %v297 = vunpack.c.l.b16 %v78
    %v298 = vunpack.c.l.b16 %v79
    %v299 = vunpack.c.l.b16 %v80
    %v300 = vunpack.c.l.b16 %v81
    %v301 = vunpack.c.l.b16 %v82
    %v302 = vunpack.c.l.b16 %v83
    %v303 = vunpack.c.l.b16 %v84
    %v304 = vunpack.c.l.b16 %v85
    %v305 = vunpack.c.l.b16 %v86
    %v306 = vunpack.c.l.b16 %v87
    %v307 = vunpack.c.l.b16 %v88
    %v308 = vunpack.c.l.b16 %v89
    %v309 = vunpack.c.l.b16 %v90
    %v310 = vunpack.c.l.b16 %v91
    %v311 = vunpack.c.l.b16 %v92
    %v312 = vunpack.c.l.b16 %v93
    %v313 = vunpack.c.l.b16 %v94
    %v314 = vunpack.c.l.b16 %v95
    %v315 = vunpack.c.l.b16 %v96
    %v316 = vunpack.c.l.b16 %v97
    %v317 = vunpack.c.l.b16 %v98
    %v318 = vunpack.c.l.b16 %v99
    %v319 = vunpack.c.l.b16 %v100
    %v320 = vunpack.c.l.b16 %v101
    %v321 = vunpack.c.l.b16 %v102
    %v322 = vunpack.c.l.b16 %v103
    %v323 = vunpack.c.l.b16 %v104
    %v324 = vunpack.c.l.b16 %v105
    %v325 = vunpack.c.l.b16 %v106
    %v326 = vunpack.c.l.b16 %v107
    %v327 = vpack.c.b16 %v248, %v247
    %v328 = vpack.c.b16 %v250, %v249
    %v329 = vpack.c.b16 %v252, %v251
    %v330 = vpack.c.b16 %v254, %v253
    %v331 = vpack.c.b16 %v256, %v255
    %v332 = vpack.c.b16 %v258, %v257
    %v333 = vpack.c.b16 %v260, %v259
    %v334 = vpack.c.b16 %v262, %v261
    %v335 = vpack.c.b16 %v264, %v263
    %v336 = vpack.c.b16 %v266, %v265
    %v337 = vpack.c.b16 %v268, %v267
    %v338 = vpack.c.b16 %v270, %v269
    %v339 = vpack.c.b16 %v272, %v271
    %v340 = vpack.c.b16 %v274, %v273
    %v341 = vpack.c.b16 %v276, %v275
    %v342 = vpack.c.b16 %v278, %v277
    %v343 = vpack.c.b16 %v280, %v279
    %v344 = vpack.c.b16 %v282, %v281
    %v345 = vpack.c.b16 %v284, %v283
    %v346 = vpack.c.b16 %v286, %v285
    %v347 = vpack.c.b16 %v288, %v287
    %v348 = vpack.c.b16 %v290, %v289
    %v349 = vpack.c.b16 %v292, %v291
    %v350 = vpack.c.b16 %v294, %v293
    %v351 = vpack.c.b16 %v296, %v295
    %v352 = vpack.c.b16 %v298, %v297
    %v353 = vpack.c.b16 %v300, %v299
    %v354 = vpack.c.b16 %v302, %v301
    %v355 = vpack.c.b16 %v304, %v303
    %v356 = vpack.c.b16 %v306, %v305
    %v357 = vpack.c.b16 %v308, %v307
    %v358 = vpack.c.b16 %v310, %v309
    %v359 = vpack.c.b16 %v312, %v311
    %v360 = vpack.c.b16 %v314, %v313
    %v361 = vpack.c.b16 %v316, %v315
    %v362 = vpack.c.b16 %v318, %v317
    %v363 = vpack.c.b16 %v320, %v319
    %v364 = vpack.c.b16 %v322, %v321
    %v365 = vpack.c.b16 %v324, %v323
    %v366 = vpack.c.b16 %v326, %v325
    %407 = vmatprep.subr.bf16.mxu0 0
    %408 = vmatpush1.bf16.msra.mxu0 %v334
    %409 = vmatprep.subr.bf16.mxu0 0
    %410 = vmatpush1.bf16.msra.mxu0 %v333
    %411 = vmatprep.subr.bf16.mxu0 0
    %412 = vmatpush1.bf16.msra.mxu0 %v332
    %413 = vmatprep.subr.bf16.mxu0 0
    %414 = vmatpush1.bf16.msra.mxu0 %v331
    %415 = vmatprep.subr.bf16.mxu0 0
    %416 = vmatpush1.bf16.msra.mxu0 %v330
    %417 = vmatprep.subr.bf16.mxu0 0
    %418 = vmatpush1.bf16.msra.mxu0 %v329
    %419 = vmatprep.subr.bf16.mxu0 0
    %420 = vmatpush1.bf16.msra.mxu0 %v328
    %421 = vmatprep.subr.bf16.mxu0 0
    %422 = vmatpush1.bf16.msra.mxu0 %v327
    %423 = vmatprep.subr.bf16.mxu0 0
    %424 = vmatpush2.bf16.msra.mxu0 %v342
    %425 = vmatprep.subr.bf16.mxu0 0
    %426 = vmatpush2.bf16.msra.mxu0 %v341
    %427 = vmatprep.subr.bf16.mxu0 0
    %428 = vmatpush2.bf16.msra.mxu0 %v340
    %429 = vmatprep.subr.bf16.mxu0 0
    %430 = vmatpush2.bf16.msra.mxu0 %v339
    %431 = vmatprep.subr.bf16.mxu0 0
    %432 = vmatpush2.bf16.msra.mxu0 %v338
    %433 = vmatprep.subr.bf16.mxu0 0
    %434 = vmatpush2.bf16.msra.mxu0 %v337
    %435 = vmatprep.subr.bf16.mxu0 0
    %436 = vmatpush2.bf16.msra.mxu0 %v336
    %437 = vmatprep.subr.bf16.mxu0 0
    %438 = vmatpush2.bf16.msra.mxu0 %v335
    %439 = vmatprep.mubr.bf16.mxu0 %v148
    %440 = vmatmul.mubr.bf16.gmra.mxu0 %v147
    %v441 = vpop.f32.mrf.mxu0
    %v442 = vadd.f32 %v113, %v441
    %v443 = vpop.f32.mrf.mxu0
    %v444 = vpop.f32.mrf.mxu0
    %v445 = vadd.f32 %v113, %v444
    %v446 = vpop.f32.mrf.mxu0
    %447 = vmatprep.mubr.bf16.mxu0 %v153
    %448 = vmatmul.mubr.bf16.gmra.mxu0 %v152
    %v449 = vpop.f32.mrf.mxu0
    %v450 = vadd.f32 %v113, %v449
    %v451 = vpop.f32.mrf.mxu0
    %v452 = vpop.f32.mrf.mxu0
    %v453 = vadd.f32 %v113, %v452
    %v454 = vpop.f32.mrf.mxu0
    %455 = vdwg.mxu0
    %456 = vmatprep.subr.bf16.mxu0 0
    %457 = vmatpush1.bf16.msra.mxu0 %v350
    %458 = vmatprep.subr.bf16.mxu0 0
    %459 = vmatpush1.bf16.msra.mxu0 %v349
    %460 = vmatprep.subr.bf16.mxu0 0
    %461 = vmatpush1.bf16.msra.mxu0 %v348
    %462 = vmatprep.subr.bf16.mxu0 0
    %463 = vmatpush1.bf16.msra.mxu0 %v347
    %464 = vmatprep.subr.bf16.mxu0 0
    %465 = vmatpush1.bf16.msra.mxu0 %v346
    %466 = vmatprep.subr.bf16.mxu0 0
    %467 = vmatpush1.bf16.msra.mxu0 %v345
    %468 = vmatprep.subr.bf16.mxu0 0
    %469 = vmatpush1.bf16.msra.mxu0 %v344
    %470 = vmatprep.subr.bf16.mxu0 0
    %471 = vmatpush1.bf16.msra.mxu0 %v343
    %472 = vmatprep.subr.bf16.mxu0 0
    %473 = vmatpush2.bf16.msra.mxu0 %v358
    %474 = vmatprep.subr.bf16.mxu0 0
    %475 = vmatpush2.bf16.msra.mxu0 %v357
    %476 = vmatprep.subr.bf16.mxu0 0
    %477 = vmatpush2.bf16.msra.mxu0 %v356
    %478 = vmatprep.subr.bf16.mxu0 0
    %479 = vmatpush2.bf16.msra.mxu0 %v355
    %480 = vmatprep.subr.bf16.mxu0 0
    %481 = vmatpush2.bf16.msra.mxu0 %v354
    %482 = vmatprep.subr.bf16.mxu0 0
    %483 = vmatpush2.bf16.msra.mxu0 %v353
    %484 = vmatprep.subr.bf16.mxu0 0
    %485 = vmatpush2.bf16.msra.mxu0 %v352
    %486 = vmatprep.subr.bf16.mxu0 0
    %487 = vmatpush2.bf16.msra.mxu0 %v351
    %488 = vmatprep.mubr.bf16.mxu0 %v150
    %489 = vmatmul.mubr.bf16.gmra.mxu0 %v149
    %v490 = vpop.f32.mrf.mxu0
    %v491 = vadd.f32 %v442, %v490
    %v492 = vpop.f32.mrf.mxu0
    %v493 = vpop.f32.mrf.mxu0
    %v494 = vadd.f32 %v445, %v493
    %v495 = vpop.f32.mrf.mxu0
    %496 = vmatprep.mubr.bf16.mxu0 %v155
    %497 = vmatmul.mubr.bf16.gmra.mxu0 %v154
    %v498 = vpop.f32.mrf.mxu0
    %v499 = vadd.f32 %v450, %v498
    %v500 = vpop.f32.mrf.mxu0
    %v501 = vpop.f32.mrf.mxu0
    %v502 = vadd.f32 %v453, %v501
    %v503 = vpop.f32.mrf.mxu0
    %504 = vdwg.mxu0
    %505 = vmatprep.subr.bf16.mxu0 0
    %506 = vmatpush1.bf16.msra.mxu0 %v366
    %507 = vmatprep.subr.bf16.mxu0 0
    %508 = vmatpush1.bf16.msra.mxu0 %v365
    %509 = vmatprep.subr.bf16.mxu0 0
    %510 = vmatpush1.bf16.msra.mxu0 %v364
    %511 = vmatprep.subr.bf16.mxu0 0
    %512 = vmatpush1.bf16.msra.mxu0 %v363
    %513 = vmatprep.subr.bf16.mxu0 0
    %514 = vmatpush1.bf16.msra.mxu0 %v362
    %515 = vmatprep.subr.bf16.mxu0 0
    %516 = vmatpush1.bf16.msra.mxu0 %v361
    %517 = vmatprep.subr.bf16.mxu0 0
    %518 = vmatpush1.bf16.msra.mxu0 %v360
    %519 = vmatprep.subr.bf16.mxu0 0
    %520 = vmatpush1.bf16.msra.mxu0 %v359
    %521 = vmatprep.subr.bf16.mxu0 0
    %522 = vmatpush2.bf16.msra.mxu0 0
    %523 = vmatprep.subr.bf16.mxu0 0
    %524 = vmatpush2.bf16.msra.mxu0 0
    %525 = vmatprep.subr.bf16.mxu0 0
    %526 = vmatpush2.bf16.msra.mxu0 0
    %527 = vmatprep.subr.bf16.mxu0 0
    %528 = vmatpush2.bf16.msra.mxu0 0
    %529 = vmatprep.subr.bf16.mxu0 0
    %530 = vmatpush2.bf16.msra.mxu0 0
    %531 = vmatprep.subr.bf16.mxu0 0
    %532 = vmatpush2.bf16.msra.mxu0 0
    %533 = vmatprep.subr.bf16.mxu0 0
    %534 = vmatpush2.bf16.msra.mxu0 0
    %535 = vmatprep.subr.bf16.mxu0 0
    %536 = vmatpush2.bf16.msra.mxu0 0
    %537 = vmatprep.mubr.bf16.mxu0 0
    %538 = vmatmul.mubr.bf16.gmra.mxu0 %v151
    %v539 = vpop.f32.mrf.mxu0
    %v540 = vadd.f32 %v491, %v539
    %v541 = vpop.f32.mrf.mxu0
    %v542 = vpop.f32.mrf.mxu0
    %v543 = vadd.f32 %v494, %v542
    %v544 = vpop.f32.mrf.mxu0
    %545 = vmatprep.mubr.bf16.mxu0 0
    %546 = vmatmul.mubr.bf16.gmra.mxu0 %v156
    %v547 = vpop.f32.mrf.mxu0
    %v548 = vadd.f32 %v499, %v547
    %v549 = vpop.f32.mrf.mxu0
    %v550 = vpop.f32.mrf.mxu0
    %v551 = vadd.f32 %v502, %v550
    %v552 = vpop.f32.mrf.mxu0
    %553 = vdwg.mxu0
    %554 = vst [vmem:[#allocation2] sm:$0xff] %v540
    %555 = vst [vmem:[#allocation2 + $0x8] sm:$0xff] %v543
    %556 = vst [vmem:[#allocation2 + $0x10] sm:$0xff] %v548
    %557 = vst [vmem:[#allocation2 + $0x18] sm:$0xff] %v551
    // Predicated region
    $region14: #{guidance_forward.21} parent=1 // pred_check
      _
    $region15: #{guidance_forward.21} parent=1 // pred_check_branch
      %559 = sbr.rel (0) target = $region17
    $region16: #{guidance_forward.21} parent=1 // pred_region
      %s561 = ssub.s32 512, 512
      %562 = vsyncadd [#allocation3], %s561
      %s563 = sshll.u32 [#allocation2], 4
      %s564 = int_to_ptr.vmem [resolvable:$true] %s563
      %569 = dma.vmem_to_hbm [thread:$0]  %s564, 512, %s3, [#allocation3], 128, 128, 8
    $region17: #{guidance_forward.21} parent=1 // pred_fallthru
      _
    // Predicated region
    $region18: #{guidance_forward.21} parent=1 // pred_check
      _
    $region19: #{guidance_forward.21} parent=1 // pred_check_branch
      %571 = sbr.rel (0) target = $region21
    $region20: #{guidance_forward.21} parent=1 // pred_region
      %572 = dma.done [#allocation3], 512
    $region21: #{guidance_forward.21} parent=1 // pred_fallthru
      _
    %573 = vsyncpa [#allocation3], 1

</llo_original>
